<compile_context>
chip_gen: v7x
topology: tpu7x:2x2x1
jax: 0.10.0
libtpu: 0.0.40
codegen_flags: <defaults>
</compile_context>

<pallas_src>
import functools

import jax
import jax.numpy as jnp
from jax.experimental import pallas as pl
from jax.experimental.pallas import tpu as pltpu


def _round_up(x, m):
    return (x + m - 1) // m * m


# ----------------------------------------------------------------------------
# Fused kernel: T timesteps of ConvLSTM + pool + FC head.
#   Layout: channels on sublanes, flattened spatial index n = b*H*W + y*W + x
#   on lanes (padded to Np, a multiple of 128).
# ----------------------------------------------------------------------------
def _convlstm_fused_kernel(x_ref, mask_ref, wx_ref, wh_ref, bconv_ref,
                           pool_ref, extras_ref, w1h_ref, w1e_ref, b1_ref,
                           w2_ref, b2_ref,
                           out_ref,
                           h_sc, c_sc,
                           *, hidden_dim, width):
    HD = hidden_dim
    W = width
    t = pl.program_id(0)
    num_t = pl.num_programs(0)

    @pl.when(t == 0)
    def _init():
        h_sc[...] = jnp.zeros_like(h_sc)
        c_sc[...] = jnp.zeros_like(c_sc)

    x = x_ref[...]            # (Cin_p, Np)
    h = h_sc[...]             # (HD,   Np)
    n_lanes = h.shape[-1]

    # 3x3 conv (cross-correlation, padding=1) as 9 shifted accumulating
    # matmuls.  For tap (dy, dx) the source flat offset is s = dy*W + dx;
    # a lane roll by (-s) mod Np gives out[:, n] = in[:, n + s], and the
    # precomputed mask zeroes positions whose source falls off the image.
    pre = jnp.broadcast_to(bconv_ref[...], (4 * HD, n_lanes))

    tap = 0
    for dy in (-1, 0, 1):
        for dx in (-1, 0, 1):
            s = dy * W + dx
            if s == 0:
                xs, hs = x, h
            else:
                r = (-s) % n_lanes
                xs = pltpu.roll(x, r, 1)
                hs = pltpu.roll(h, r, 1)
            if (dy, dx) != (0, 0):
                m = mask_ref[tap]                      # (1, Np)
                xs = xs * m
                hs = hs * m
            pre = pre + jnp.dot(wx_ref[tap], xs,
                                preferred_element_type=jnp.float32)
            pre = pre + jnp.dot(wh_ref[tap], hs,
                                preferred_element_type=jnp.float32)
            tap += 1

    # Gate slices are sublane-tile aligned (multiples of HD=16 rows).
    cc_i = pre[0 * HD:1 * HD, :]
    cc_f = pre[1 * HD:2 * HD, :]
    cc_o = pre[2 * HD:3 * HD, :]
    cc_g = pre[3 * HD:4 * HD, :]
    gi = jax.nn.sigmoid(cc_i)
    gf = jax.nn.sigmoid(cc_f)
    go = jax.nn.sigmoid(cc_o)
    gg = jnp.tanh(cc_g)

    c_new = gf * c_sc[...] + gi * gg
    h_new = go * jnp.tanh(c_new)
    c_sc[...] = c_new
    h_sc[...] = h_new

    # Epilogue at the last timestep: avg-pool as a matmul + the FC head.
    @pl.when(t == num_t - 1)
    def _head():
        pooled = jnp.dot(h_new, pool_ref[...],
                         preferred_element_type=jnp.float32)        # (HD, Bp)
        z = (jnp.dot(w1h_ref[...], pooled,
                     preferred_element_type=jnp.float32)
             + jnp.dot(w1e_ref[...], extras_ref[...],
                       preferred_element_type=jnp.float32)
             + b1_ref[...])
        z = jnp.maximum(z, 0.0)
        out = jnp.dot(w2_ref[...], z,
                      preferred_element_type=jnp.float32) + b2_ref[...]
        out_ref[...] = out


# ----------------------------------------------------------------------------
# Wrapper: layout conversion + one pallas_call.
# ----------------------------------------------------------------------------
@functools.partial(jax.jit, static_argnames=("hidden_dim",))
def flood_predictor_forward(spatial, gage_scalar, prev_runoff, params,
                            hidden_dim):
    B, T, Cin, H, W = spatial.shape
    HD = hidden_dim
    N = B * H * W
    Np = _round_up(N, 128)          # lane axis
    Cin_p = _round_up(Cin, 8)       # sublane-align the x channels
    Bp = _round_up(B, 8)
    Ep = 8                          # padded width of [gage, prev_runoff]
    HID = params["w_fc1"].shape[0]  # 64

    # x: (B,T,Cin,H,W) -> (T, Cin_p, Np), channels on sublanes, spatial lanes.
    x = jnp.transpose(spatial, (1, 2, 0, 3, 4)).reshape(T, Cin, N)
    x = jnp.pad(x, ((0, 0), (0, Cin_p - Cin), (0, Np - N)))

    # Per-tap source-validity masks and the pooling matrix (data independent).
    n = jnp.arange(Np)
    inside = n < N
    yy = (n % (H * W)) // W
    xx = n % W
    masks = []
    for dy in (-1, 0, 1):
        for dx in (-1, 0, 1):
            ok = (inside & (yy + dy >= 0) & (yy + dy < H)
                  & (xx + dx >= 0) & (xx + dx < W))
            masks.append(ok)
    masks = jnp.stack(masks).astype(jnp.float32).reshape(9, 1, Np)

    bidx = n // (H * W)
    pool_mat = (inside[:, None] & (bidx[:, None] == jnp.arange(Bp)[None, :]))
    pool_mat = pool_mat.astype(jnp.float32) / float(H * W)          # (Np, Bp)

    extras = jnp.zeros((Ep, Bp), jnp.float32)
    extras = extras.at[0, :B].set(gage_scalar)
    extras = extras.at[1, :B].set(prev_runoff)

    # Weights, padded / transposed for the (channels, N) layout.
    G = 4 * HD
    wx = jnp.pad(params["w_conv_x"], ((0, 0), (0, 0), (0, Cin_p - Cin)))
    wh = params["w_conv_h"]                                   # (9, G, HD)
    bconv = params["b_conv"].reshape(G, 1)
    w1h = params["w_fc1"][:, :HD]                             # (HID, HD)
    w1e = jnp.pad(params["w_fc1"][:, HD:], ((0, 0), (0, Ep - 2)))
    b1 = params["b_fc1"].reshape(HID, 1)
    w2 = jnp.pad(params["w_fc2"], ((0, 8 - params["w_fc2"].shape[0]), (0, 0)))
    b2 = jnp.pad(params["b_fc2"].reshape(1, 1), ((0, 7), (0, 0)))

    kernel = functools.partial(_convlstm_fused_kernel,
                               hidden_dim=HD, width=W)

    out = pl.pallas_call(
        kernel,
        out_shape=jax.ShapeDtypeStruct((8, Bp), jnp.float32),
        grid=(T,),
        in_specs=[
            pl.BlockSpec((None, Cin_p, Np), lambda t: (t, 0, 0)),  # x_t stream
            pl.BlockSpec((9, 1, Np), lambda t: (0, 0, 0)),         # tap masks
            pl.BlockSpec((9, G, Cin_p), lambda t: (0, 0, 0)),      # conv W (x)
            pl.BlockSpec((9, G, HD), lambda t: (0, 0, 0)),         # conv W (h)
            pl.BlockSpec((G, 1), lambda t: (0, 0)),                # conv bias
            pl.BlockSpec((Np, Bp), lambda t: (0, 0)),              # pool matrix
            pl.BlockSpec((Ep, Bp), lambda t: (0, 0)),              # extras
            pl.BlockSpec((HID, HD), lambda t: (0, 0)),             # fc1 (pool)
            pl.BlockSpec((HID, Ep), lambda t: (0, 0)),             # fc1 (extras)
            pl.BlockSpec((HID, 1), lambda t: (0, 0)),              # fc1 bias
            pl.BlockSpec((8, HID), lambda t: (0, 0)),              # fc2 weight
            pl.BlockSpec((8, 1), lambda t: (0, 0)),                # fc2 bias
        ],
        out_specs=pl.BlockSpec((8, Bp), lambda t: (0, 0)),
        scratch_shapes=[pltpu.VMEM((HD, Np), jnp.float32),         # h state
                        pltpu.VMEM((HD, Np), jnp.float32)],        # c state
        compiler_params=pltpu.CompilerParams(
            dimension_semantics=("arbitrary",)),                   # recurrent
    )(x, masks, wx, wh, bconv, pool_mat, extras, w1h, w1e, b1, w2, b2)

    return out[0, :B]


# ----------------------------------------------------------------------------
# Pure-JAX reference (matches the PyTorch FloodPredictor semantics).
# ----------------------------------------------------------------------------
def flood_predictor_reference(spatial, gage_scalar, prev_runoff, params,
                              hidden_dim):
    B, T, Cin, H, W = spatial.shape
    HD = hidden_dim
    hp = jax.lax.Precision.HIGHEST

    # Rebuild the dense (4HD, Cin+HD, 3, 3) conv weight from the taps.
    wx = params["w_conv_x"]
    wh = params["w_conv_h"]
    w = jnp.zeros((4 * HD, Cin + HD, 3, 3), jnp.float32)
    tap = 0
    for dy in (-1, 0, 1):
        for dx in (-1, 0, 1):
            w = w.at[:, :Cin, dy + 1, dx + 1].set(wx[tap])
            w = w.at[:, Cin:, dy + 1, dx + 1].set(wh[tap])
            tap += 1
    b = params["b_conv"]

    h = jnp.zeros((B, HD, H, W), jnp.float32)
    c = jnp.zeros((B, HD, H, W), jnp.float32)
    for t in range(T):
        combined = jnp.concatenate([spatial[:, t], h], axis=1)
        pre = jax.lax.conv_general_dilated(
            combined, w, window_strides=(1, 1), padding="SAME",
            dimension_numbers=("NCHW", "OIHW", "NCHW"),
            precision=hp) + b[None, :, None, None]
        gi = jax.nn.sigmoid(pre[:, 0 * HD:1 * HD])
        gf = jax.nn.sigmoid(pre[:, 1 * HD:2 * HD])
        go = jax.nn.sigmoid(pre[:, 2 * HD:3 * HD])
        gg = jnp.tanh(pre[:, 3 * HD:4 * HD])
        c = gf * c + gi * gg
        h = go * jnp.tanh(c)

    pooled = h.mean(axis=(2, 3))                                  # (B, HD)
    xcat = jnp.concatenate(
        [pooled, gage_scalar[:, None], prev_runoff[:, None]], axis=1)
    z = jnp.maximum(
        jnp.dot(xcat, params["w_fc1"].T, precision=hp) + params["b_fc1"], 0.0)
    out = jnp.dot(z, params["w_fc2"].T, precision=hp) + params["b_fc2"]
    return out[:, 0]


# ----------------------------------------------------------------------------
# Deterministic synthetic parameters (stored unpadded / logical layout).
# ----------------------------------------------------------------------------
def init_params(key, input_dim, hidden_dim, fc_hidden=64):
    ks = jax.random.split(key, 7)
    g = 4 * hidden_dim
    return dict(
        w_conv_x=0.05 * jax.random.normal(ks[0], (9, g, input_dim),
                                          jnp.float32),
        w_conv_h=0.05 * jax.random.normal(ks[1], (9, g, hidden_dim),
                                          jnp.float32),
        b_conv=0.05 * jax.random.normal(ks[2], (g,), jnp.float32),
        w_fc1=0.05 * jax.random.normal(ks[3], (fc_hidden, hidden_dim + 2),
                                       jnp.float32),
        b_fc1=0.05 * jax.random.normal(ks[4], (fc_hidden,), jnp.float32),
        w_fc2=0.05 * jax.random.normal(ks[5], (1, fc_hidden), jnp.float32),
        b_fc2=0.05 * jax.random.normal(ks[6], (1,), jnp.float32),
    )


if __name__ == "__main__":
    B, T, C_IN, H, W = 2, 8, 2, 8, 8
    HIDDEN = 16

    key = jax.random.PRNGKey(0)
    k_sp, k_g, k_r, k_p = jax.random.split(key, 4)
    spatial = jax.random.normal(k_sp, (B, T, C_IN, H, W), jnp.float32)
    gage_scalar = jax.random.normal(k_g, (B,), jnp.float32)
    prev_runoff = jax.random.normal(k_r, (B,), jnp.float32)
    params = init_params(k_p, C_IN, HIDDEN)

    out = flood_predictor_forward(spatial, gage_scalar, prev_runoff, params,
                                  hidden_dim=HIDDEN)
    out = jax.block_until_ready(out)
    assert out.shape == (B,)

    ref = flood_predictor_reference(spatial, gage_scalar, prev_runoff, params,
                                    HIDDEN)
    ref = jax.block_until_ready(ref)
    if not bool(jnp.allclose(out, ref, rtol=2e-3, atol=2e-3)):
        max_err = float(jnp.max(jnp.abs(out - ref)))
        raise AssertionError(f"kernel mismatch vs reference: "
                             f"max|diff|={max_err:.3e}")
    print("KERNEL_OK")
</pallas_src>

<mosaic_0001>
module attributes {stable_mosaic.version = 11 : i64} {
  func.func @_convlstm_fused_kernel(%arg0: i32, %arg1: memref<1x8x128xf32, #tpu.memory_space<vmem>>, %arg2: memref<9x1x128xf32, #tpu.memory_space<vmem>>, %arg3: memref<9x64x8xf32, #tpu.memory_space<vmem>>, %arg4: memref<9x64x16xf32, #tpu.memory_space<vmem>>, %arg5: memref<64x1xf32, #tpu.memory_space<vmem>>, %arg6: memref<128x8xf32, #tpu.memory_space<vmem>>, %arg7: memref<8x8xf32, #tpu.memory_space<vmem>>, %arg8: memref<64x16xf32, #tpu.memory_space<vmem>>, %arg9: memref<64x8xf32, #tpu.memory_space<vmem>>, %arg10: memref<64x1xf32, #tpu.memory_space<vmem>>, %arg11: memref<8x64xf32, #tpu.memory_space<vmem>>, %arg12: memref<8x1xf32, #tpu.memory_space<vmem>>, %arg13: memref<8x8xf32, #tpu.memory_space<vmem>>, %arg14: memref<16x128xf32, #tpu.memory_space<vmem>>, %arg15: memref<16x128xf32, #tpu.memory_space<vmem>>) attributes {dimension_semantics = [#tpu.dimension_semantics<arbitrary>], iteration_bounds = array<i64: 8>, scalar_prefetch = 0 : i64, scratch_operands = 2 : i64, tpu.core_type = #tpu.core_type<tc>, window_params = [{transform_indices = @transform_0, window_bounds = array<i64: 1, 8, 128>}, {pipeline_mode = #tpu.pipeline_mode<synchronous>, transform_indices = @transform_1, window_bounds = array<i64: 9, 1, 128>}, {pipeline_mode = #tpu.pipeline_mode<synchronous>, transform_indices = @transform_2, window_bounds = array<i64: 9, 64, 8>}, {pipeline_mode = #tpu.pipeline_mode<synchronous>, transform_indices = @transform_3, window_bounds = array<i64: 9, 64, 16>}, {pipeline_mode = #tpu.pipeline_mode<synchronous>, transform_indices = @transform_4, window_bounds = array<i64: 64, 1>}, {pipeline_mode = #tpu.pipeline_mode<synchronous>, transform_indices = @transform_5, window_bounds = array<i64: 128, 8>}, {pipeline_mode = #tpu.pipeline_mode<synchronous>, transform_indices = @transform_6, window_bounds = array<i64: 8, 8>}, {pipeline_mode = #tpu.pipeline_mode<synchronous>, transform_indices = @transform_7, window_bounds = array<i64: 64, 16>}, {pipeline_mode = #tpu.pipeline_mode<synchronous>, transform_indices = @transform_8, window_bounds = array<i64: 64, 8>}, {pipeline_mode = #tpu.pipeline_mode<synchronous>, transform_indices = @transform_9, window_bounds = array<i64: 64, 1>}, {pipeline_mode = #tpu.pipeline_mode<synchronous>, transform_indices = @transform_10, window_bounds = array<i64: 8, 64>}, {pipeline_mode = #tpu.pipeline_mode<synchronous>, transform_indices = @transform_11, window_bounds = array<i64: 8, 1>}, {pipeline_mode = #tpu.pipeline_mode<synchronous>, transform_indices = @transform_12, window_bounds = array<i64: 8, 8>}]} {
    %c0_i32 = arith.constant 0 : i32
    %0 = arith.cmpi eq, %arg0, %c0_i32 : i32
    %1 = arith.extui %0 : i1 to i32
    %c0_i32_0 = arith.constant 0 : i32
    %2 = arith.cmpi ne, %1, %c0_i32_0 : i32
    scf.if %2 {
      %cst_113 = arith.constant 0.000000e+00 : f32
      %176 = vector.broadcast %cst_113 : f32 to vector<16x128xf32>
      %c0_114 = arith.constant 0 : index
      %c0_115 = arith.constant 0 : index
      %177 = vector.load %arg14[%c0_114, %c0_115] : memref<16x128xf32, #tpu.memory_space<vmem>>, vector<16x128xf32>
      tpu.vector_store %arg14[%c0_114, %c0_115], %176 {strides = array<i32>} : memref<16x128xf32, #tpu.memory_space<vmem>>, vector<16x128xf32>,
      %cst_116 = arith.constant 0.000000e+00 : f32
      %178 = vector.broadcast %cst_116 : f32 to vector<16x128xf32>
      %c0_117 = arith.constant 0 : index
      %c0_118 = arith.constant 0 : index
      %179 = vector.load %arg15[%c0_117, %c0_118] : memref<16x128xf32, #tpu.memory_space<vmem>>, vector<16x128xf32>
      tpu.vector_store %arg15[%c0_117, %c0_118], %178 {strides = array<i32>} : memref<16x128xf32, #tpu.memory_space<vmem>>, vector<16x128xf32>,
    } else {
    }
    %c0 = arith.constant 0 : index
    %c0_1 = arith.constant 0 : index
    %c0_2 = arith.constant 0 : index
    %3 = vector.load %arg1[%c0, %c0_1, %c0_2] : memref<1x8x128xf32, #tpu.memory_space<vmem>>, vector<1x8x128xf32>
    %4 = vector.shape_cast %3 : vector<1x8x128xf32> to vector<8x128xf32>
    %c0_3 = arith.constant 0 : index
    %c0_4 = arith.constant 0 : index
    %5 = vector.load %arg14[%c0_3, %c0_4] : memref<16x128xf32, #tpu.memory_space<vmem>>, vector<16x128xf32>
    %c0_5 = arith.constant 0 : index
    %c0_6 = arith.constant 0 : index
    %6 = vector.load %arg5[%c0_5, %c0_6] : memref<64x1xf32, #tpu.memory_space<vmem>>, vector<64x1xf32>
    %7 = vector.shape_cast %6 : vector<64x1xf32> to vector<64x1xf32>
    %8 = vector.broadcast %7 : vector<64x1xf32> to vector<64x128xf32>
    %c9_i32 = arith.constant 9 : i32
    %9 = tpu.dynamic_rotate %4 by %c9_i32 dim 1 : vector<8x128xf32>, i32 -> vector<8x128xf32>
    %c9_i32_7 = arith.constant 9 : i32
    %10 = tpu.dynamic_rotate %5 by %c9_i32_7 dim 1 : vector<16x128xf32>, i32 -> vector<16x128xf32>
    %c0_8 = arith.constant 0 : index
    %c0_9 = arith.constant 0 : index
    %c0_10 = arith.constant 0 : index
    %11 = vector.load %arg2[%c0_8, %c0_9, %c0_10] : memref<9x1x128xf32, #tpu.memory_space<vmem>>, vector<1x1x128xf32>
    %12 = vector.shape_cast %11 : vector<1x1x128xf32> to vector<1x128xf32>
    %13 = vector.broadcast %12 : vector<1x128xf32> to vector<8x128xf32>
    %14 = arith.mulf %9, %13 : vector<8x128xf32>
    %15 = vector.broadcast %12 : vector<1x128xf32> to vector<16x128xf32>
    %16 = arith.mulf %10, %15 : vector<16x128xf32>
    %c0_11 = arith.constant 0 : index
    %c0_12 = arith.constant 0 : index
    %c0_13 = arith.constant 0 : index
    %17 = vector.load %arg3[%c0_11, %c0_12, %c0_13] : memref<9x64x8xf32, #tpu.memory_space<vmem>>, vector<1x64x8xf32>
    %18 = vector.shape_cast %17 : vector<1x64x8xf32> to vector<64x8xf32>
    %cst = arith.constant dense<0.000000e+00> : vector<64x128xf32>
    %19 = tpu.matmul %18, %14, %cst {dimension_numbers = #tpu.dot_dimension_numbers<[1], [0], [0], [1], [0, 0, 1, 1], [], []>} : vector<64x8xf32>, vector<8x128xf32>, vector<64x128xf32> -> vector<64x128xf32>
    %20 = arith.addf %8, %19 : vector<64x128xf32>
    %c0_14 = arith.constant 0 : index
    %c0_15 = arith.constant 0 : index
    %c0_16 = arith.constant 0 : index
    %21 = vector.load %arg4[%c0_14, %c0_15, %c0_16] : memref<9x64x16xf32, #tpu.memory_space<vmem>>, vector<1x64x16xf32>
    %22 = vector.shape_cast %21 : vector<1x64x16xf32> to vector<64x16xf32>
    %cst_17 = arith.constant dense<0.000000e+00> : vector<64x128xf32>
    %23 = tpu.matmul %22, %16, %cst_17 {dimension_numbers = #tpu.dot_dimension_numbers<[1], [0], [0], [1], [0, 0, 1, 1], [], []>} : vector<64x16xf32>, vector<16x128xf32>, vector<64x128xf32> -> vector<64x128xf32>
    %24 = arith.addf %20, %23 : vector<64x128xf32>
    %c8_i32 = arith.constant 8 : i32
    %25 = tpu.dynamic_rotate %4 by %c8_i32 dim 1 : vector<8x128xf32>, i32 -> vector<8x128xf32>
    %c8_i32_18 = arith.constant 8 : i32
    %26 = tpu.dynamic_rotate %5 by %c8_i32_18 dim 1 : vector<16x128xf32>, i32 -> vector<16x128xf32>
    %c1 = arith.constant 1 : index
    %c0_19 = arith.constant 0 : index
    %c0_20 = arith.constant 0 : index
    %27 = vector.load %arg2[%c1, %c0_19, %c0_20] : memref<9x1x128xf32, #tpu.memory_space<vmem>>, vector<1x1x128xf32>
    %28 = vector.shape_cast %27 : vector<1x1x128xf32> to vector<1x128xf32>
    %29 = vector.broadcast %28 : vector<1x128xf32> to vector<8x128xf32>
    %30 = arith.mulf %25, %29 : vector<8x128xf32>
    %31 = vector.broadcast %28 : vector<1x128xf32> to vector<16x128xf32>
    %32 = arith.mulf %26, %31 : vector<16x128xf32>
    %c1_21 = arith.constant 1 : index
    %c0_22 = arith.constant 0 : index
    %c0_23 = arith.constant 0 : index
    %33 = vector.load %arg3[%c1_21, %c0_22, %c0_23] : memref<9x64x8xf32, #tpu.memory_space<vmem>>, vector<1x64x8xf32>
    %34 = vector.shape_cast %33 : vector<1x64x8xf32> to vector<64x8xf32>
    %cst_24 = arith.constant dense<0.000000e+00> : vector<64x128xf32>
    %35 = tpu.matmul %34, %30, %cst_24 {dimension_numbers = #tpu.dot_dimension_numbers<[1], [0], [0], [1], [0, 0, 1, 1], [], []>} : vector<64x8xf32>, vector<8x128xf32>, vector<64x128xf32> -> vector<64x128xf32>
    %36 = arith.addf %24, %35 : vector<64x128xf32>
    %c1_25 = arith.constant 1 : index
    %c0_26 = arith.constant 0 : index
    %c0_27 = arith.constant 0 : index
    %37 = vector.load %arg4[%c1_25, %c0_26, %c0_27] : memref<9x64x16xf32, #tpu.memory_space<vmem>>, vector<1x64x16xf32>
    %38 = vector.shape_cast %37 : vector<1x64x16xf32> to vector<64x16xf32>
    %cst_28 = arith.constant dense<0.000000e+00> : vector<64x128xf32>
    %39 = tpu.matmul %38, %32, %cst_28 {dimension_numbers = #tpu.dot_dimension_numbers<[1], [0], [0], [1], [0, 0, 1, 1], [], []>} : vector<64x16xf32>, vector<16x128xf32>, vector<64x128xf32> -> vector<64x128xf32>
    %40 = arith.addf %36, %39 : vector<64x128xf32>
    %c7_i32 = arith.constant 7 : i32
    %41 = tpu.dynamic_rotate %4 by %c7_i32 dim 1 : vector<8x128xf32>, i32 -> vector<8x128xf32>
    %c7_i32_29 = arith.constant 7 : i32
    %42 = tpu.dynamic_rotate %5 by %c7_i32_29 dim 1 : vector<16x128xf32>, i32 -> vector<16x128xf32>
    %c2 = arith.constant 2 : index
    %c0_30 = arith.constant 0 : index
    %c0_31 = arith.constant 0 : index
    %43 = vector.load %arg2[%c2, %c0_30, %c0_31] : memref<9x1x128xf32, #tpu.memory_space<vmem>>, vector<1x1x128xf32>
    %44 = vector.shape_cast %43 : vector<1x1x128xf32> to vector<1x128xf32>
    %45 = vector.broadcast %44 : vector<1x128xf32> to vector<8x128xf32>
    %46 = arith.mulf %41, %45 : vector<8x128xf32>
    %47 = vector.broadcast %44 : vector<1x128xf32> to vector<16x128xf32>
    %48 = arith.mulf %42, %47 : vector<16x128xf32>
    %c2_32 = arith.constant 2 : index
    %c0_33 = arith.constant 0 : index
    %c0_34 = arith.constant 0 : index
    %49 = vector.load %arg3[%c2_32, %c0_33, %c0_34] : memref<9x64x8xf32, #tpu.memory_space<vmem>>, vector<1x64x8xf32>
    %50 = vector.shape_cast %49 : vector<1x64x8xf32> to vector<64x8xf32>
    %cst_35 = arith.constant dense<0.000000e+00> : vector<64x128xf32>
    %51 = tpu.matmul %50, %46, %cst_35 {dimension_numbers = #tpu.dot_dimension_numbers<[1], [0], [0], [1], [0, 0, 1, 1], [], []>} : vector<64x8xf32>, vector<8x128xf32>, vector<64x128xf32> -> vector<64x128xf32>
    %52 = arith.addf %40, %51 : vector<64x128xf32>
    %c2_36 = arith.constant 2 : index
    %c0_37 = arith.constant 0 : index
    %c0_38 = arith.constant 0 : index
    %53 = vector.load %arg4[%c2_36, %c0_37, %c0_38] : memref<9x64x16xf32, #tpu.memory_space<vmem>>, vector<1x64x16xf32>
    %54 = vector.shape_cast %53 : vector<1x64x16xf32> to vector<64x16xf32>
    %cst_39 = arith.constant dense<0.000000e+00> : vector<64x128xf32>
    %55 = tpu.matmul %54, %48, %cst_39 {dimension_numbers = #tpu.dot_dimension_numbers<[1], [0], [0], [1], [0, 0, 1, 1], [], []>} : vector<64x16xf32>, vector<16x128xf32>, vector<64x128xf32> -> vector<64x128xf32>
    %56 = arith.addf %52, %55 : vector<64x128xf32>
    %c1_i32 = arith.constant 1 : i32
    %57 = tpu.dynamic_rotate %4 by %c1_i32 dim 1 : vector<8x128xf32>, i32 -> vector<8x128xf32>
    %c1_i32_40 = arith.constant 1 : i32
    %58 = tpu.dynamic_rotate %5 by %c1_i32_40 dim 1 : vector<16x128xf32>, i32 -> vector<16x128xf32>
    %c3 = arith.constant 3 : index
    %c0_41 = arith.constant 0 : index
    %c0_42 = arith.constant 0 : index
    %59 = vector.load %arg2[%c3, %c0_41, %c0_42] : memref<9x1x128xf32, #tpu.memory_space<vmem>>, vector<1x1x128xf32>
    %60 = vector.shape_cast %59 : vector<1x1x128xf32> to vector<1x128xf32>
    %61 = vector.broadcast %60 : vector<1x128xf32> to vector<8x128xf32>
    %62 = arith.mulf %57, %61 : vector<8x128xf32>
    %63 = vector.broadcast %60 : vector<1x128xf32> to vector<16x128xf32>
    %64 = arith.mulf %58, %63 : vector<16x128xf32>
    %c3_43 = arith.constant 3 : index
    %c0_44 = arith.constant 0 : index
    %c0_45 = arith.constant 0 : index
    %65 = vector.load %arg3[%c3_43, %c0_44, %c0_45] : memref<9x64x8xf32, #tpu.memory_space<vmem>>, vector<1x64x8xf32>
    %66 = vector.shape_cast %65 : vector<1x64x8xf32> to vector<64x8xf32>
    %cst_46 = arith.constant dense<0.000000e+00> : vector<64x128xf32>
    %67 = tpu.matmul %66, %62, %cst_46 {dimension_numbers = #tpu.dot_dimension_numbers<[1], [0], [0], [1], [0, 0, 1, 1], [], []>} : vector<64x8xf32>, vector<8x128xf32>, vector<64x128xf32> -> vector<64x128xf32>
    %68 = arith.addf %56, %67 : vector<64x128xf32>
    %c3_47 = arith.constant 3 : index
    %c0_48 = arith.constant 0 : index
    %c0_49 = arith.constant 0 : index
    %69 = vector.load %arg4[%c3_47, %c0_48, %c0_49] : memref<9x64x16xf32, #tpu.memory_space<vmem>>, vector<1x64x16xf32>
    %70 = vector.shape_cast %69 : vector<1x64x16xf32> to vector<64x16xf32>
    %cst_50 = arith.constant dense<0.000000e+00> : vector<64x128xf32>
    %71 = tpu.matmul %70, %64, %cst_50 {dimension_numbers = #tpu.dot_dimension_numbers<[1], [0], [0], [1], [0, 0, 1, 1], [], []>} : vector<64x16xf32>, vector<16x128xf32>, vector<64x128xf32> -> vector<64x128xf32>
    %72 = arith.addf %68, %71 : vector<64x128xf32>
    %c4 = arith.constant 4 : index
    %c0_51 = arith.constant 0 : index
    %c0_52 = arith.constant 0 : index
    %73 = vector.load %arg3[%c4, %c0_51, %c0_52] : memref<9x64x8xf32, #tpu.memory_space<vmem>>, vector<1x64x8xf32>
    %74 = vector.shape_cast %73 : vector<1x64x8xf32> to vector<64x8xf32>
    %cst_53 = arith.constant dense<0.000000e+00> : vector<64x128xf32>
    %75 = tpu.matmul %74, %4, %cst_53 {dimension_numbers = #tpu.dot_dimension_numbers<[1], [0], [0], [1], [0, 0, 1, 1], [], []>} : vector<64x8xf32>, vector<8x128xf32>, vector<64x128xf32> -> vector<64x128xf32>
    %76 = arith.addf %72, %75 : vector<64x128xf32>
    %c4_54 = arith.constant 4 : index
    %c0_55 = arith.constant 0 : index
    %c0_56 = arith.constant 0 : index
    %77 = vector.load %arg4[%c4_54, %c0_55, %c0_56] : memref<9x64x16xf32, #tpu.memory_space<vmem>>, vector<1x64x16xf32>
    %78 = vector.shape_cast %77 : vector<1x64x16xf32> to vector<64x16xf32>
    %cst_57 = arith.constant dense<0.000000e+00> : vector<64x128xf32>
    %79 = tpu.matmul %78, %5, %cst_57 {dimension_numbers = #tpu.dot_dimension_numbers<[1], [0], [0], [1], [0, 0, 1, 1], [], []>} : vector<64x16xf32>, vector<16x128xf32>, vector<64x128xf32> -> vector<64x128xf32>
    %80 = arith.addf %76, %79 : vector<64x128xf32>
    %c127_i32 = arith.constant 127 : i32
    %81 = tpu.dynamic_rotate %4 by %c127_i32 dim 1 : vector<8x128xf32>, i32 -> vector<8x128xf32>
    %c127_i32_58 = arith.constant 127 : i32
    %82 = tpu.dynamic_rotate %5 by %c127_i32_58 dim 1 : vector<16x128xf32>, i32 -> vector<16x128xf32>
    %c5 = arith.constant 5 : index
    %c0_59 = arith.constant 0 : index
    %c0_60 = arith.constant 0 : index
    %83 = vector.load %arg2[%c5, %c0_59, %c0_60] : memref<9x1x128xf32, #tpu.memory_space<vmem>>, vector<1x1x128xf32>
    %84 = vector.shape_cast %83 : vector<1x1x128xf32> to vector<1x128xf32>
    %85 = vector.broadcast %84 : vector<1x128xf32> to vector<8x128xf32>
    %86 = arith.mulf %81, %85 : vector<8x128xf32>
    %87 = vector.broadcast %84 : vector<1x128xf32> to vector<16x128xf32>
    %88 = arith.mulf %82, %87 : vector<16x128xf32>
    %c5_61 = arith.constant 5 : index
    %c0_62 = arith.constant 0 : index
    %c0_63 = arith.constant 0 : index
    %89 = vector.load %arg3[%c5_61, %c0_62, %c0_63] : memref<9x64x8xf32, #tpu.memory_space<vmem>>, vector<1x64x8xf32>
    %90 = vector.shape_cast %89 : vector<1x64x8xf32> to vector<64x8xf32>
    %cst_64 = arith.constant dense<0.000000e+00> : vector<64x128xf32>
    %91 = tpu.matmul %90, %86, %cst_64 {dimension_numbers = #tpu.dot_dimension_numbers<[1], [0], [0], [1], [0, 0, 1, 1], [], []>} : vector<64x8xf32>, vector<8x128xf32>, vector<64x128xf32> -> vector<64x128xf32>
    %92 = arith.addf %80, %91 : vector<64x128xf32>
    %c5_65 = arith.constant 5 : index
    %c0_66 = arith.constant 0 : index
    %c0_67 = arith.constant 0 : index
    %93 = vector.load %arg4[%c5_65, %c0_66, %c0_67] : memref<9x64x16xf32, #tpu.memory_space<vmem>>, vector<1x64x16xf32>
    %94 = vector.shape_cast %93 : vector<1x64x16xf32> to vector<64x16xf32>
    %cst_68 = arith.constant dense<0.000000e+00> : vector<64x128xf32>
    %95 = tpu.matmul %94, %88, %cst_68 {dimension_numbers = #tpu.dot_dimension_numbers<[1], [0], [0], [1], [0, 0, 1, 1], [], []>} : vector<64x16xf32>, vector<16x128xf32>, vector<64x128xf32> -> vector<64x128xf32>
    %96 = arith.addf %92, %95 : vector<64x128xf32>
    %c121_i32 = arith.constant 121 : i32
    %97 = tpu.dynamic_rotate %4 by %c121_i32 dim 1 : vector<8x128xf32>, i32 -> vector<8x128xf32>
    %c121_i32_69 = arith.constant 121 : i32
    %98 = tpu.dynamic_rotate %5 by %c121_i32_69 dim 1 : vector<16x128xf32>, i32 -> vector<16x128xf32>
    %c6 = arith.constant 6 : index
    %c0_70 = arith.constant 0 : index
    %c0_71 = arith.constant 0 : index
    %99 = vector.load %arg2[%c6, %c0_70, %c0_71] : memref<9x1x128xf32, #tpu.memory_space<vmem>>, vector<1x1x128xf32>
    %100 = vector.shape_cast %99 : vector<1x1x128xf32> to vector<1x128xf32>
    %101 = vector.broadcast %100 : vector<1x128xf32> to vector<8x128xf32>
    %102 = arith.mulf %97, %101 : vector<8x128xf32>
    %103 = vector.broadcast %100 : vector<1x128xf32> to vector<16x128xf32>
    %104 = arith.mulf %98, %103 : vector<16x128xf32>
    %c6_72 = arith.constant 6 : index
    %c0_73 = arith.constant 0 : index
    %c0_74 = arith.constant 0 : index
    %105 = vector.load %arg3[%c6_72, %c0_73, %c0_74] : memref<9x64x8xf32, #tpu.memory_space<vmem>>, vector<1x64x8xf32>
    %106 = vector.shape_cast %105 : vector<1x64x8xf32> to vector<64x8xf32>
    %cst_75 = arith.constant dense<0.000000e+00> : vector<64x128xf32>
    %107 = tpu.matmul %106, %102, %cst_75 {dimension_numbers = #tpu.dot_dimension_numbers<[1], [0], [0], [1], [0, 0, 1, 1], [], []>} : vector<64x8xf32>, vector<8x128xf32>, vector<64x128xf32> -> vector<64x128xf32>
    %108 = arith.addf %96, %107 : vector<64x128xf32>
    %c6_76 = arith.constant 6 : index
    %c0_77 = arith.constant 0 : index
    %c0_78 = arith.constant 0 : index
    %109 = vector.load %arg4[%c6_76, %c0_77, %c0_78] : memref<9x64x16xf32, #tpu.memory_space<vmem>>, vector<1x64x16xf32>
    %110 = vector.shape_cast %109 : vector<1x64x16xf32> to vector<64x16xf32>
    %cst_79 = arith.constant dense<0.000000e+00> : vector<64x128xf32>
    %111 = tpu.matmul %110, %104, %cst_79 {dimension_numbers = #tpu.dot_dimension_numbers<[1], [0], [0], [1], [0, 0, 1, 1], [], []>} : vector<64x16xf32>, vector<16x128xf32>, vector<64x128xf32> -> vector<64x128xf32>
    %112 = arith.addf %108, %111 : vector<64x128xf32>
    %c120_i32 = arith.constant 120 : i32
    %113 = tpu.dynamic_rotate %4 by %c120_i32 dim 1 : vector<8x128xf32>, i32 -> vector<8x128xf32>
    %c120_i32_80 = arith.constant 120 : i32
    %114 = tpu.dynamic_rotate %5 by %c120_i32_80 dim 1 : vector<16x128xf32>, i32 -> vector<16x128xf32>
    %c7 = arith.constant 7 : index
    %c0_81 = arith.constant 0 : index
    %c0_82 = arith.constant 0 : index
    %115 = vector.load %arg2[%c7, %c0_81, %c0_82] : memref<9x1x128xf32, #tpu.memory_space<vmem>>, vector<1x1x128xf32>
    %116 = vector.shape_cast %115 : vector<1x1x128xf32> to vector<1x128xf32>
    %117 = vector.broadcast %116 : vector<1x128xf32> to vector<8x128xf32>
    %118 = arith.mulf %113, %117 : vector<8x128xf32>
    %119 = vector.broadcast %116 : vector<1x128xf32> to vector<16x128xf32>
    %120 = arith.mulf %114, %119 : vector<16x128xf32>
    %c7_83 = arith.constant 7 : index
    %c0_84 = arith.constant 0 : index
    %c0_85 = arith.constant 0 : index
    %121 = vector.load %arg3[%c7_83, %c0_84, %c0_85] : memref<9x64x8xf32, #tpu.memory_space<vmem>>, vector<1x64x8xf32>
    %122 = vector.shape_cast %121 : vector<1x64x8xf32> to vector<64x8xf32>
    %cst_86 = arith.constant dense<0.000000e+00> : vector<64x128xf32>
    %123 = tpu.matmul %122, %118, %cst_86 {dimension_numbers = #tpu.dot_dimension_numbers<[1], [0], [0], [1], [0, 0, 1, 1], [], []>} : vector<64x8xf32>, vector<8x128xf32>, vector<64x128xf32> -> vector<64x128xf32>
    %124 = arith.addf %112, %123 : vector<64x128xf32>
    %c7_87 = arith.constant 7 : index
    %c0_88 = arith.constant 0 : index
    %c0_89 = arith.constant 0 : index
    %125 = vector.load %arg4[%c7_87, %c0_88, %c0_89] : memref<9x64x16xf32, #tpu.memory_space<vmem>>, vector<1x64x16xf32>
    %126 = vector.shape_cast %125 : vector<1x64x16xf32> to vector<64x16xf32>
    %cst_90 = arith.constant dense<0.000000e+00> : vector<64x128xf32>
    %127 = tpu.matmul %126, %120, %cst_90 {dimension_numbers = #tpu.dot_dimension_numbers<[1], [0], [0], [1], [0, 0, 1, 1], [], []>} : vector<64x16xf32>, vector<16x128xf32>, vector<64x128xf32> -> vector<64x128xf32>
    %128 = arith.addf %124, %127 : vector<64x128xf32>
    %c119_i32 = arith.constant 119 : i32
    %129 = tpu.dynamic_rotate %4 by %c119_i32 dim 1 : vector<8x128xf32>, i32 -> vector<8x128xf32>
    %c119_i32_91 = arith.constant 119 : i32
    %130 = tpu.dynamic_rotate %5 by %c119_i32_91 dim 1 : vector<16x128xf32>, i32 -> vector<16x128xf32>
    %c8 = arith.constant 8 : index
    %c0_92 = arith.constant 0 : index
    %c0_93 = arith.constant 0 : index
    %131 = vector.load %arg2[%c8, %c0_92, %c0_93] : memref<9x1x128xf32, #tpu.memory_space<vmem>>, vector<1x1x128xf32>
    %132 = vector.shape_cast %131 : vector<1x1x128xf32> to vector<1x128xf32>
    %133 = vector.broadcast %132 : vector<1x128xf32> to vector<8x128xf32>
    %134 = arith.mulf %129, %133 : vector<8x128xf32>
    %135 = vector.broadcast %132 : vector<1x128xf32> to vector<16x128xf32>
    %136 = arith.mulf %130, %135 : vector<16x128xf32>
    %c8_94 = arith.constant 8 : index
    %c0_95 = arith.constant 0 : index
    %c0_96 = arith.constant 0 : index
    %137 = vector.load %arg3[%c8_94, %c0_95, %c0_96] : memref<9x64x8xf32, #tpu.memory_space<vmem>>, vector<1x64x8xf32>
    %138 = vector.shape_cast %137 : vector<1x64x8xf32> to vector<64x8xf32>
    %cst_97 = arith.constant dense<0.000000e+00> : vector<64x128xf32>
    %139 = tpu.matmul %138, %134, %cst_97 {dimension_numbers = #tpu.dot_dimension_numbers<[1], [0], [0], [1], [0, 0, 1, 1], [], []>} : vector<64x8xf32>, vector<8x128xf32>, vector<64x128xf32> -> vector<64x128xf32>
    %140 = arith.addf %128, %139 : vector<64x128xf32>
    %c8_98 = arith.constant 8 : index
    %c0_99 = arith.constant 0 : index
    %c0_100 = arith.constant 0 : index
    %141 = vector.load %arg4[%c8_98, %c0_99, %c0_100] : memref<9x64x16xf32, #tpu.memory_space<vmem>>, vector<1x64x16xf32>
    %142 = vector.shape_cast %141 : vector<1x64x16xf32> to vector<64x16xf32>
    %cst_101 = arith.constant dense<0.000000e+00> : vector<64x128xf32>
    %143 = tpu.matmul %142, %136, %cst_101 {dimension_numbers = #tpu.dot_dimension_numbers<[1], [0], [0], [1], [0, 0, 1, 1], [], []>} : vector<64x16xf32>, vector<16x128xf32>, vector<64x128xf32> -> vector<64x128xf32>
    %144 = arith.addf %140, %143 : vector<64x128xf32>
    %145 = vector.extract_strided_slice %144 {offsets = [0, 0], sizes = [16, 128], strides = [1, 1]} : vector<64x128xf32> to vector<16x128xf32>
    %146 = vector.extract_strided_slice %144 {offsets = [16, 0], sizes = [16, 128], strides = [1, 1]} : vector<64x128xf32> to vector<16x128xf32>
    %147 = vector.extract_strided_slice %144 {offsets = [32, 0], sizes = [16, 128], strides = [1, 1]} : vector<64x128xf32> to vector<16x128xf32>
    %148 = vector.extract_strided_slice %144 {offsets = [48, 0], sizes = [16, 128], strides = [1, 1]} : vector<64x128xf32> to vector<16x128xf32>
    %149 = arith.negf %145 : vector<16x128xf32>
    %150 = math.exp %149 : vector<16x128xf32>
    %cst_102 = arith.constant 1.000000e+00 : f32
    %151 = vector.broadcast %cst_102 : f32 to vector<16x128xf32>
    %152 = arith.addf %151, %150 : vector<16x128xf32>
    %153 = arith.divf %151, %152 : vector<16x128xf32>
    %154 = arith.negf %146 : vector<16x128xf32>
    %155 = math.exp %154 : vector<16x128xf32>
    %cst_103 = arith.constant 1.000000e+00 : f32
    %156 = vector.broadcast %cst_103 : f32 to vector<16x128xf32>
    %157 = arith.addf %156, %155 : vector<16x128xf32>
    %158 = arith.divf %156, %157 : vector<16x128xf32>
    %159 = arith.negf %147 : vector<16x128xf32>
    %160 = math.exp %159 : vector<16x128xf32>
    %cst_104 = arith.constant 1.000000e+00 : f32
    %161 = vector.broadcast %cst_104 : f32 to vector<16x128xf32>
    %162 = arith.addf %161, %160 : vector<16x128xf32>
    %163 = arith.divf %161, %162 : vector<16x128xf32>
    %164 = math.tanh %148 : vector<16x128xf32>
    %c0_105 = arith.constant 0 : index
    %c0_106 = arith.constant 0 : index
    %165 = vector.load %arg15[%c0_105, %c0_106] : memref<16x128xf32, #tpu.memory_space<vmem>>, vector<16x128xf32>
    %166 = arith.mulf %158, %165 : vector<16x128xf32>
    %167 = arith.mulf %153, %164 : vector<16x128xf32>
    %168 = arith.addf %166, %167 : vector<16x128xf32>
    %169 = math.tanh %168 : vector<16x128xf32>
    %170 = arith.mulf %163, %169 : vector<16x128xf32>
    %c0_107 = arith.constant 0 : index
    %c0_108 = arith.constant 0 : index
    %171 = vector.load %arg15[%c0_107, %c0_108] : memref<16x128xf32, #tpu.memory_space<vmem>>, vector<16x128xf32>
    tpu.vector_store %arg15[%c0_107, %c0_108], %168 {strides = array<i32>} : memref<16x128xf32, #tpu.memory_space<vmem>>, vector<16x128xf32>,
    %c0_109 = arith.constant 0 : index
    %c0_110 = arith.constant 0 : index
    %172 = vector.load %arg14[%c0_109, %c0_110] : memref<16x128xf32, #tpu.memory_space<vmem>>, vector<16x128xf32>
    tpu.vector_store %arg14[%c0_109, %c0_110], %170 {strides = array<i32>} : memref<16x128xf32, #tpu.memory_space<vmem>>, vector<16x128xf32>,
    %c7_i32_111 = arith.constant 7 : i32
    %173 = arith.cmpi eq, %arg0, %c7_i32_111 : i32
    %174 = arith.extui %173 : i1 to i32
    %c0_i32_112 = arith.constant 0 : i32
    %175 = arith.cmpi ne, %174, %c0_i32_112 : i32
    scf.if %175 {
      %c0_113 = arith.constant 0 : index
      %c0_114 = arith.constant 0 : index
      %176 = vector.load %arg6[%c0_113, %c0_114] : memref<128x8xf32, #tpu.memory_space<vmem>>, vector<128x8xf32>
      %cst_115 = arith.constant dense<0.000000e+00> : vector<16x8xf32>
      %177 = tpu.matmul %170, %176, %cst_115 {dimension_numbers = #tpu.dot_dimension_numbers<[1], [0], [0], [1], [0, 0, 1, 1], [], []>} : vector<16x128xf32>, vector<128x8xf32>, vector<16x8xf32> -> vector<16x8xf32>
      %c0_116 = arith.constant 0 : index
      %c0_117 = arith.constant 0 : index
      %178 = vector.load %arg8[%c0_116, %c0_117] : memref<64x16xf32, #tpu.memory_space<vmem>>, vector<64x16xf32>
      %cst_118 = arith.constant dense<0.000000e+00> : vector<64x8xf32>
      %179 = tpu.matmul %178, %177, %cst_118 {dimension_numbers = #tpu.dot_dimension_numbers<[1], [0], [0], [1], [0, 0, 1, 1], [], []>} : vector<64x16xf32>, vector<16x8xf32>, vector<64x8xf32> -> vector<64x8xf32>
      %c0_119 = arith.constant 0 : index
      %c0_120 = arith.constant 0 : index
      %180 = vector.load %arg9[%c0_119, %c0_120] : memref<64x8xf32, #tpu.memory_space<vmem>>, vector<64x8xf32>
      %c0_121 = arith.constant 0 : index
      %c0_122 = arith.constant 0 : index
      %181 = vector.load %arg7[%c0_121, %c0_122] : memref<8x8xf32, #tpu.memory_space<vmem>>, vector<8x8xf32>
      %cst_123 = arith.constant dense<0.000000e+00> : vector<64x8xf32>
      %182 = tpu.matmul %180, %181, %cst_123 {dimension_numbers = #tpu.dot_dimension_numbers<[1], [0], [0], [1], [0, 0, 1, 1], [], []>} : vector<64x8xf32>, vector<8x8xf32>, vector<64x8xf32> -> vector<64x8xf32>
      %183 = arith.addf %179, %182 : vector<64x8xf32>
      %c0_124 = arith.constant 0 : index
      %c0_125 = arith.constant 0 : index
      %184 = vector.load %arg10[%c0_124, %c0_125] : memref<64x1xf32, #tpu.memory_space<vmem>>, vector<64x1xf32>
      %185 = vector.broadcast %184 : vector<64x1xf32> to vector<64x8xf32>
      %186 = arith.addf %183, %185 : vector<64x8xf32>
      %cst_126 = arith.constant 0.000000e+00 : f32
      %187 = vector.broadcast %cst_126 : f32 to vector<64x8xf32>
      %188 = arith.maximumf %186, %187 : vector<64x8xf32>
      %c0_127 = arith.constant 0 : index
      %c0_128 = arith.constant 0 : index
      %189 = vector.load %arg11[%c0_127, %c0_128] : memref<8x64xf32, #tpu.memory_space<vmem>>, vector<8x64xf32>
      %cst_129 = arith.constant dense<0.000000e+00> : vector<8x8xf32>
      %190 = tpu.matmul %189, %188, %cst_129 {dimension_numbers = #tpu.dot_dimension_numbers<[1], [0], [0], [1], [0, 0, 1, 1], [], []>} : vector<8x64xf32>, vector<64x8xf32>, vector<8x8xf32> -> vector<8x8xf32>
      %c0_130 = arith.constant 0 : index
      %c0_131 = arith.constant 0 : index
      %191 = vector.load %arg12[%c0_130, %c0_131] : memref<8x1xf32, #tpu.memory_space<vmem>>, vector<8x1xf32>
      %192 = vector.broadcast %191 : vector<8x1xf32> to vector<8x8xf32>
      %193 = arith.addf %190, %192 : vector<8x8xf32>
      %c0_132 = arith.constant 0 : index
      %c0_133 = arith.constant 0 : index
      %194 = vector.load %arg13[%c0_132, %c0_133] : memref<8x8xf32, #tpu.memory_space<vmem>>, vector<8x8xf32>
      tpu.vector_store %arg13[%c0_132, %c0_133], %193 {strides = array<i32>} : memref<8x8xf32, #tpu.memory_space<vmem>>, vector<8x8xf32>,
    } else {
    }
    return
  }
  func.func @transform_0(%arg0: i32) -> (i32, i32, i32) {
    %c0_i32 = arith.constant 0 : i32
    %c0_i32_0 = arith.constant 0 : i32
    %c0_i32_1 = arith.constant 0 : i32
    return %arg0, %c0_i32, %c0_i32_0 : i32, i32, i32
  }
  func.func @transform_1(%arg0: i32) -> (i32, i32, i32) {
    %c0_i32 = arith.constant 0 : i32
    %c0_i32_0 = arith.constant 0 : i32
    %c0_i32_1 = arith.constant 0 : i32
    %c0_i32_2 = arith.constant 0 : i32
    return %c0_i32, %c0_i32_0, %c0_i32_1 : i32, i32, i32
  }
  func.func @transform_2(%arg0: i32) -> (i32, i32, i32) {
    %c0_i32 = arith.constant 0 : i32
    %c0_i32_0 = arith.constant 0 : i32
    %c0_i32_1 = arith.constant 0 : i32
    %c0_i32_2 = arith.constant 0 : i32
    return %c0_i32, %c0_i32_0, %c0_i32_1 : i32, i32, i32
  }
  func.func @transform_3(%arg0: i32) -> (i32, i32, i32) {
    %c0_i32 = arith.constant 0 : i32
    %c0_i32_0 = arith.constant 0 : i32
    %c0_i32_1 = arith.constant 0 : i32
    %c0_i32_2 = arith.constant 0 : i32
    return %c0_i32, %c0_i32_0, %c0_i32_1 : i32, i32, i32
  }
  func.func @transform_4(%arg0: i32) -> (i32, i32) {
    %c0_i32 = arith.constant 0 : i32
    %c0_i32_0 = arith.constant 0 : i32
    %c0_i32_1 = arith.constant 0 : i32
    return %c0_i32, %c0_i32_0 : i32, i32
  }
  func.func @transform_5(%arg0: i32) -> (i32, i32) {
    %c0_i32 = arith.constant 0 : i32
    %c0_i32_0 = arith.constant 0 : i32
    %c0_i32_1 = arith.constant 0 : i32
    return %c0_i32, %c0_i32_0 : i32, i32
  }
  func.func @transform_6(%arg0: i32) -> (i32, i32) {
    %c0_i32 = arith.constant 0 : i32
    %c0_i32_0 = arith.constant 0 : i32
    %c0_i32_1 = arith.constant 0 : i32
    return %c0_i32, %c0_i32_0 : i32, i32
  }
  func.func @transform_7(%arg0: i32) -> (i32, i32) {
    %c0_i32 = arith.constant 0 : i32
    %c0_i32_0 = arith.constant 0 : i32
    %c0_i32_1 = arith.constant 0 : i32
    return %c0_i32, %c0_i32_0 : i32, i32
  }
  func.func @transform_8(%arg0: i32) -> (i32, i32) {
    %c0_i32 = arith.constant 0 : i32
    %c0_i32_0 = arith.constant 0 : i32
    %c0_i32_1 = arith.constant 0 : i32
    return %c0_i32, %c0_i32_0 : i32, i32
  }
  func.func @transform_9(%arg0: i32) -> (i32, i32) {
    %c0_i32 = arith.constant 0 : i32
    %c0_i32_0 = arith.constant 0 : i32
    %c0_i32_1 = arith.constant 0 : i32
    return %c0_i32, %c0_i32_0 : i32, i32
  }
  func.func @transform_10(%arg0: i32) -> (i32, i32) {
    %c0_i32 = arith.constant 0 : i32
    %c0_i32_0 = arith.constant 0 : i32
    %c0_i32_1 = arith.constant 0 : i32
    return %c0_i32, %c0_i32_0 : i32, i32
  }
  func.func @transform_11(%arg0: i32) -> (i32, i32) {
    %c0_i32 = arith.constant 0 : i32
    %c0_i32_0 = arith.constant 0 : i32
    %c0_i32_1 = arith.constant 0 : i32
    return %c0_i32, %c0_i32_0 : i32, i32
  }
  func.func @transform_12(%arg0: i32) -> (i32, i32) {
    %c0_i32 = arith.constant 0 : i32
    %c0_i32_0 = arith.constant 0 : i32
    %c0_i32_1 = arith.constant 0 : i32
    return %c0_i32, %c0_i32_0 : i32, i32
  }
}

</mosaic_0001>

<llo_original>
// kernel: flood_predictor_forward.1
$region0: #{flood_predictor_forward.1}
  #allocation0 [shape = 'u32[]', space=smem, size = 0x4, offset = 0x4, fixed_abs, tag = 'smem constant byte address 0x4 - core index']
  #allocation1 [shape = 'u32[144,128]{1,0:T(1,128)}', space=vmem, size = 0x12000, scoped, tag = 'internal scratch']
  #allocation2 [shape = 'f32[16,128]{1,0:T(8,128)}', space=vmem, size = 0x2000, scoped, tag = 'scratch operand']
  #allocation3 [shape = 'f32[16,128]{1,0:T(8,128)}', space=vmem, size = 0x2000, scoped, tag = 'scratch operand']
  %s0 = inlined_call_operand.vmem [shape: f32[8,8,128], index: 0, kind: input, shape index: {}]
  %s1 = inlined_call_operand.vmem [shape: f32[9,1,128], index: 1, kind: input, shape index: {}]
  %s2 = inlined_call_operand.vmem [shape: f32[9,64,8], index: 2, kind: input, shape index: {}]
  %s3 = inlined_call_operand.vmem [shape: f32[9,64,16], index: 3, kind: input, shape index: {}]
  %s4 = inlined_call_operand.vmem [shape: f32[64,1], index: 4, kind: input, shape index: {}]
  %s5 = inlined_call_operand.vmem [shape: f32[128,8], index: 5, kind: input, shape index: {}]
  %s6 = inlined_call_operand.vmem [shape: f32[8,8], index: 6, kind: input, shape index: {}]
  %s7 = inlined_call_operand.vmem [shape: f32[64,16], index: 7, kind: input, shape index: {}]
  %s8 = inlined_call_operand.vmem [shape: f32[64,8], index: 8, kind: input, shape index: {}]
  %s9 = inlined_call_operand.vmem [shape: f32[64,1], index: 9, kind: input, shape index: {}]
  %s10 = inlined_call_operand.vmem [shape: f32[8,64], index: 10, kind: input, shape index: {}]
  %s11 = inlined_call_operand.vmem [shape: f32[8,1], index: 11, kind: input, shape index: {}]
  %s12 = inlined_call_operand.vmem [shape: f32[8,8], index: 12, kind: output, shape index: {}]
  %s13 = sld [smem:[#allocation0]]
  $region89: #{flood_predictor_forward.1} parent=0
    _
  %s15 = ssub.s32 1, %s13
  %s16 = scalar_select 0, %s15, %s13
  loop: start=0, step=1, limit=10
  $region2: #{flood_predictor_forward.1} parent=0 // loop_pre_header
    _
  $region3: #{flood_predictor_forward.1} parent=0 // loop_header
    %s18 = sphi 0, %s22
    %p19 = scmp.ge.s32.totalorder %s18, 10
    %s28 = sphi 0, %s30
    %s31 = sphi 0, %s28
    %s32 = sphi 0, %s31
    %s48 = sphi 0, %s32
    %s52 = sphi 0, %s52
    %s54 = sphi 0, %s52
    %s55 = sphi 0, %s54
    %s69 = sphi 0, %s55
    %s73 = sphi 0, %s73
    %s75 = sphi 0, %s73
    %s76 = sphi 0, %s75
    %s90 = sphi 0, %s76
    %s94 = sphi 0, %s94
    %s96 = sphi 0, %s94
    %s97 = sphi 0, %s96
    %s111 = sphi 0, %s97
    %s115 = sphi 0, %s115
    %s117 = sphi 0, %s115
    %s118 = sphi 0, %s117
    %s132 = sphi 0, %s118
    %s136 = sphi 0, %s136
    %s138 = sphi 0, %s136
    %s139 = sphi 0, %s138
    %s153 = sphi 0, %s139
    %s157 = sphi 0, %s157
    %s159 = sphi 0, %s157
    %s160 = sphi 0, %s159
    %s174 = sphi 0, %s160
    %s178 = sphi 0, %s178
    %s180 = sphi 0, %s178
    %s181 = sphi 0, %s180
    %s195 = sphi 0, %s181
    %s199 = sphi 0, %s199
    %s201 = sphi 0, %s199
    %s202 = sphi 0, %s201
    %s216 = sphi 0, %s202
    %s220 = sphi 0, %s220
    %s222 = sphi 0, %s220
    %s223 = sphi 0, %s222
    %s237 = sphi 0, %s223
    %s241 = sphi 0, %s241
    %s243 = sphi 0, %s241
    %s244 = sphi 0, %s243
    %s258 = sphi 0, %s244
    %s262 = sphi 0, %s262
    %s264 = sphi 0, %s262
    %s265 = sphi 0, %s264
    %s279 = sphi 0, %s265
    %s283 = sphi 0, %s283
    %s285 = sphi 0, %s283
    %s286 = sphi 0, %s285
    %s300 = sphi 0, %s286
  $region4: #{flood_predictor_forward.1} parent=0 // loop_header_branch
    %21 = sbr.rel (%p19) target = $region8
  $region5: #{flood_predictor_forward.1} parent=0 // loop_body
    %s23 = ssub.s32 %s18, 1
    %s24 = ssub.s32 %s18, 2
    %s25 = sadd.s32 %s18, 1
    %s26 = ssub.s32 %s18, %s25
    %p27 = scmp.eq.s32.totalorder %s26, 0
    %s29 = sadd.s32 %s28, 1
    %s30 = scalar_select %p27, %s28, %s29
    %p33 = pneg %p27
    %p34 = scmp.eq.s32.totalorder %s18, 7
    %p35 = por %p33, %p34
    %p36 = scmp.ne.s32.totalorder %s28, %s31
    %p37 = scmp.eq.s32.totalorder %s18, 0
    %p38 = por %p36, %p37
    %p39 = scmp.ne.s32.totalorder %s28, %s31
    %p40 = scmp.eq.s32.totalorder %s23, 7
    %p41 = por %p39, %p40
    %p42 = scmp.ne.s32.totalorder %s31, %s32
    %p43 = scmp.eq.s32.totalorder %s23, 0
    %p44 = por %p42, %p43
    %p45 = scmp.ne.s32.totalorder %s31, %s32
    %p46 = scmp.eq.s32.totalorder %s24, 7
    %p47 = por %p45, %p46
    %p49 = scmp.ne.s32.totalorder %s32, %s48
    %p50 = scmp.eq.s32.totalorder %s24, 0
    %p51 = por %p49, %p50
    %s53 = sadd.s32 %s52, 1
    %p56 = scmp.eq.s32.totalorder %s18, 7
    %p57 = scmp.ne.s32.totalorder %s52, %s54
    %p58 = scmp.eq.s32.totalorder %s18, 0
    %p59 = por %p57, %p58
    %p60 = scmp.ne.s32.totalorder %s52, %s54
    %p61 = scmp.eq.s32.totalorder %s23, 7
    %p62 = por %p60, %p61
    %p63 = scmp.ne.s32.totalorder %s54, %s55
    %p64 = scmp.eq.s32.totalorder %s23, 0
    %p65 = por %p63, %p64
    %p66 = scmp.ne.s32.totalorder %s54, %s55
    %p67 = scmp.eq.s32.totalorder %s24, 7
    %p68 = por %p66, %p67
    %p70 = scmp.ne.s32.totalorder %s55, %s69
    %p71 = scmp.eq.s32.totalorder %s24, 0
    %p72 = por %p70, %p71
    %s74 = sadd.s32 %s73, 1
    %p77 = scmp.eq.s32.totalorder %s18, 7
    %p78 = scmp.ne.s32.totalorder %s73, %s75
    %p79 = scmp.eq.s32.totalorder %s18, 0
    %p80 = por %p78, %p79
    %p81 = scmp.ne.s32.totalorder %s73, %s75
    %p82 = scmp.eq.s32.totalorder %s23, 7
    %p83 = por %p81, %p82
    %p84 = scmp.ne.s32.totalorder %s75, %s76
    %p85 = scmp.eq.s32.totalorder %s23, 0
    %p86 = por %p84, %p85
    %p87 = scmp.ne.s32.totalorder %s75, %s76
    %p88 = scmp.eq.s32.totalorder %s24, 7
    %p89 = por %p87, %p88
    %p91 = scmp.ne.s32.totalorder %s76, %s90
    %p92 = scmp.eq.s32.totalorder %s24, 0
    %p93 = por %p91, %p92
    %s95 = sadd.s32 %s94, 1
    %p98 = scmp.eq.s32.totalorder %s18, 7
    %p99 = scmp.ne.s32.totalorder %s94, %s96
    %p100 = scmp.eq.s32.totalorder %s18, 0
    %p101 = por %p99, %p100
    %p102 = scmp.ne.s32.totalorder %s94, %s96
    %p103 = scmp.eq.s32.totalorder %s23, 7
    %p104 = por %p102, %p103
    %p105 = scmp.ne.s32.totalorder %s96, %s97
    %p106 = scmp.eq.s32.totalorder %s23, 0
    %p107 = por %p105, %p106
    %p108 = scmp.ne.s32.totalorder %s96, %s97
    %p109 = scmp.eq.s32.totalorder %s24, 7
    %p110 = por %p108, %p109
    %p112 = scmp.ne.s32.totalorder %s97, %s111
    %p113 = scmp.eq.s32.totalorder %s24, 0
    %p114 = por %p112, %p113
    %s116 = sadd.s32 %s115, 1
    %p119 = scmp.eq.s32.totalorder %s18, 7
    %p120 = scmp.ne.s32.totalorder %s115, %s117
    %p121 = scmp.eq.s32.totalorder %s18, 0
    %p122 = por %p120, %p121
    %p123 = scmp.ne.s32.totalorder %s115, %s117
    %p124 = scmp.eq.s32.totalorder %s23, 7
    %p125 = por %p123, %p124
    %p126 = scmp.ne.s32.totalorder %s117, %s118
    %p127 = scmp.eq.s32.totalorder %s23, 0
    %p128 = por %p126, %p127
    %p129 = scmp.ne.s32.totalorder %s117, %s118
    %p130 = scmp.eq.s32.totalorder %s24, 7
    %p131 = por %p129, %p130
    %p133 = scmp.ne.s32.totalorder %s118, %s132
    %p134 = scmp.eq.s32.totalorder %s24, 0
    %p135 = por %p133, %p134
    %s137 = sadd.s32 %s136, 1
    %p140 = scmp.eq.s32.totalorder %s18, 7
    %p141 = scmp.ne.s32.totalorder %s136, %s138
    %p142 = scmp.eq.s32.totalorder %s18, 0
    %p143 = por %p141, %p142
    %p144 = scmp.ne.s32.totalorder %s136, %s138
    %p145 = scmp.eq.s32.totalorder %s23, 7
    %p146 = por %p144, %p145
    %p147 = scmp.ne.s32.totalorder %s138, %s139
    %p148 = scmp.eq.s32.totalorder %s23, 0
    %p149 = por %p147, %p148
    %p150 = scmp.ne.s32.totalorder %s138, %s139
    %p151 = scmp.eq.s32.totalorder %s24, 7
    %p152 = por %p150, %p151
    %p154 = scmp.ne.s32.totalorder %s139, %s153
    %p155 = scmp.eq.s32.totalorder %s24, 0
    %p156 = por %p154, %p155
    %s158 = sadd.s32 %s157, 1
    %p161 = scmp.eq.s32.totalorder %s18, 7
    %p162 = scmp.ne.s32.totalorder %s157, %s159
    %p163 = scmp.eq.s32.totalorder %s18, 0
    %p164 = por %p162, %p163
    %p165 = scmp.ne.s32.totalorder %s157, %s159
    %p166 = scmp.eq.s32.totalorder %s23, 7
    %p167 = por %p165, %p166
    %p168 = scmp.ne.s32.totalorder %s159, %s160
    %p169 = scmp.eq.s32.totalorder %s23, 0
    %p170 = por %p168, %p169
    %p171 = scmp.ne.s32.totalorder %s159, %s160
    %p172 = scmp.eq.s32.totalorder %s24, 7
    %p173 = por %p171, %p172
    %p175 = scmp.ne.s32.totalorder %s160, %s174
    %p176 = scmp.eq.s32.totalorder %s24, 0
    %p177 = por %p175, %p176
    %s179 = sadd.s32 %s178, 1
    %p182 = scmp.eq.s32.totalorder %s18, 7
    %p183 = scmp.ne.s32.totalorder %s178, %s180
    %p184 = scmp.eq.s32.totalorder %s18, 0
    %p185 = por %p183, %p184
    %p186 = scmp.ne.s32.totalorder %s178, %s180
    %p187 = scmp.eq.s32.totalorder %s23, 7
    %p188 = por %p186, %p187
    %p189 = scmp.ne.s32.totalorder %s180, %s181
    %p190 = scmp.eq.s32.totalorder %s23, 0
    %p191 = por %p189, %p190
    %p192 = scmp.ne.s32.totalorder %s180, %s181
    %p193 = scmp.eq.s32.totalorder %s24, 7
    %p194 = por %p192, %p193
    %p196 = scmp.ne.s32.totalorder %s181, %s195
    %p197 = scmp.eq.s32.totalorder %s24, 0
    %p198 = por %p196, %p197
    %s200 = sadd.s32 %s199, 1
    %p203 = scmp.eq.s32.totalorder %s18, 7
    %p204 = scmp.ne.s32.totalorder %s199, %s201
    %p205 = scmp.eq.s32.totalorder %s18, 0
    %p206 = por %p204, %p205
    %p207 = scmp.ne.s32.totalorder %s199, %s201
    %p208 = scmp.eq.s32.totalorder %s23, 7
    %p209 = por %p207, %p208
    %p210 = scmp.ne.s32.totalorder %s201, %s202
    %p211 = scmp.eq.s32.totalorder %s23, 0
    %p212 = por %p210, %p211
    %p213 = scmp.ne.s32.totalorder %s201, %s202
    %p214 = scmp.eq.s32.totalorder %s24, 7
    %p215 = por %p213, %p214
    %p217 = scmp.ne.s32.totalorder %s202, %s216
    %p218 = scmp.eq.s32.totalorder %s24, 0
    %p219 = por %p217, %p218
    %s221 = sadd.s32 %s220, 1
    %p224 = scmp.eq.s32.totalorder %s18, 7
    %p225 = scmp.ne.s32.totalorder %s220, %s222
    %p226 = scmp.eq.s32.totalorder %s18, 0
    %p227 = por %p225, %p226
    %p228 = scmp.ne.s32.totalorder %s220, %s222
    %p229 = scmp.eq.s32.totalorder %s23, 7
    %p230 = por %p228, %p229
    %p231 = scmp.ne.s32.totalorder %s222, %s223
    %p232 = scmp.eq.s32.totalorder %s23, 0
    %p233 = por %p231, %p232
    %p234 = scmp.ne.s32.totalorder %s222, %s223
    %p235 = scmp.eq.s32.totalorder %s24, 7
    %p236 = por %p234, %p235
    %p238 = scmp.ne.s32.totalorder %s223, %s237
    %p239 = scmp.eq.s32.totalorder %s24, 0
    %p240 = por %p238, %p239
    %s242 = sadd.s32 %s241, 1
    %p245 = scmp.eq.s32.totalorder %s18, 7
    %p246 = scmp.ne.s32.totalorder %s241, %s243
    %p247 = scmp.eq.s32.totalorder %s18, 0
    %p248 = por %p246, %p247
    %p249 = scmp.ne.s32.totalorder %s241, %s243
    %p250 = scmp.eq.s32.totalorder %s23, 7
    %p251 = por %p249, %p250
    %p252 = scmp.ne.s32.totalorder %s243, %s244
    %p253 = scmp.eq.s32.totalorder %s23, 0
    %p254 = por %p252, %p253
    %p255 = scmp.ne.s32.totalorder %s243, %s244
    %p256 = scmp.eq.s32.totalorder %s24, 7
    %p257 = por %p255, %p256
    %p259 = scmp.ne.s32.totalorder %s244, %s258
    %p260 = scmp.eq.s32.totalorder %s24, 0
    %p261 = por %p259, %p260
    %s263 = sadd.s32 %s262, 1
    %p266 = scmp.eq.s32.totalorder %s18, 7
    %p267 = scmp.ne.s32.totalorder %s262, %s264
    %p268 = scmp.eq.s32.totalorder %s18, 0
    %p269 = por %p267, %p268
    %p270 = scmp.ne.s32.totalorder %s262, %s264
    %p271 = scmp.eq.s32.totalorder %s23, 7
    %p272 = por %p270, %p271
    %p273 = scmp.ne.s32.totalorder %s264, %s265
    %p274 = scmp.eq.s32.totalorder %s23, 0
    %p275 = por %p273, %p274
    %p276 = scmp.ne.s32.totalorder %s264, %s265
    %p277 = scmp.eq.s32.totalorder %s24, 7
    %p278 = por %p276, %p277
    %p280 = scmp.ne.s32.totalorder %s265, %s279
    %p281 = scmp.eq.s32.totalorder %s24, 0
    %p282 = por %p280, %p281
    %s284 = sadd.s32 %s283, 1
    %p287 = scmp.eq.s32.totalorder %s18, 7
    %p288 = scmp.ne.s32.totalorder %s283, %s285
    %p289 = scmp.eq.s32.totalorder %s18, 0
    %p290 = por %p288, %p289
    %p291 = scmp.ne.s32.totalorder %s283, %s285
    %p292 = scmp.eq.s32.totalorder %s23, 7
    %p293 = por %p291, %p292
    %p294 = scmp.ne.s32.totalorder %s285, %s286
    %p295 = scmp.eq.s32.totalorder %s23, 0
    %p296 = por %p294, %p295
    %p297 = scmp.ne.s32.totalorder %s285, %s286
    %p298 = scmp.eq.s32.totalorder %s24, 7
    %p299 = por %p297, %p298
    %p301 = scmp.ne.s32.totalorder %s286, %s300
    %p302 = scmp.eq.s32.totalorder %s24, 0
    %p303 = por %p301, %p302
    %p304 = scmp.le.s32.totalorder 1, %s18
    %p305 = scmp.lt.s32.totalorder %s18, 9
    %p306 = pnand %p304, %p305
    %p307 = pneg %p306
    // Predicated region
    $region9: #{flood_predictor_forward.1} parent=5 // pred_check
      _
    $region10: #{flood_predictor_forward.1} parent=5 // pred_check_branch
      %309 = sbr.rel (%p306) target = $region12
    $region11: #{flood_predictor_forward.1} parent=5 // pred_region
      %s310 = ssub.s32 %s18, 1
      // Predicated region
      $region13: #{flood_predictor_forward.1} parent=11 // pred_check
        %p311 = pneg %p65
      $region14: #{flood_predictor_forward.1} parent=11 // pred_check_branch
        %313 = sbr.rel (%p311) target = $region16
      $region15: #{flood_predictor_forward.1} parent=11 // pred_region
        _
      $region16: #{flood_predictor_forward.1} parent=11 // pred_fallthru
        _
      // Predicated region
      $region17: #{flood_predictor_forward.1} parent=11 // pred_check
        %p314 = pneg %p86
      $region18: #{flood_predictor_forward.1} parent=11 // pred_check_branch
        %316 = sbr.rel (%p314) target = $region20
      $region19: #{flood_predictor_forward.1} parent=11 // pred_region
        _
      $region20: #{flood_predictor_forward.1} parent=11 // pred_fallthru
        _
      // Predicated region
      $region21: #{flood_predictor_forward.1} parent=11 // pred_check
        %p317 = pneg %p107
      $region22: #{flood_predictor_forward.1} parent=11 // pred_check_branch
        %319 = sbr.rel (%p317) target = $region24
      $region23: #{flood_predictor_forward.1} parent=11 // pred_region
        _
      $region24: #{flood_predictor_forward.1} parent=11 // pred_fallthru
        _
      // Predicated region
      $region25: #{flood_predictor_forward.1} parent=11 // pred_check
        %p320 = pneg %p128
      $region26: #{flood_predictor_forward.1} parent=11 // pred_check_branch
        %322 = sbr.rel (%p320) target = $region28
      $region27: #{flood_predictor_forward.1} parent=11 // pred_region
        _
      $region28: #{flood_predictor_forward.1} parent=11 // pred_fallthru
        _
      // Predicated region
      $region29: #{flood_predictor_forward.1} parent=11 // pred_check
        %p323 = pneg %p149
      $region30: #{flood_predictor_forward.1} parent=11 // pred_check_branch
        %325 = sbr.rel (%p323) target = $region32
      $region31: #{flood_predictor_forward.1} parent=11 // pred_region
        _
      $region32: #{flood_predictor_forward.1} parent=11 // pred_fallthru
        _
      // Predicated region
      $region33: #{flood_predictor_forward.1} parent=11 // pred_check
        %p326 = pneg %p170
      $region34: #{flood_predictor_forward.1} parent=11 // pred_check_branch
        %328 = sbr.rel (%p326) target = $region36
      $region35: #{flood_predictor_forward.1} parent=11 // pred_region
        _
      $region36: #{flood_predictor_forward.1} parent=11 // pred_fallthru
        _
      // Predicated region
      $region37: #{flood_predictor_forward.1} parent=11 // pred_check
        %p329 = pneg %p191
      $region38: #{flood_predictor_forward.1} parent=11 // pred_check_branch
        %331 = sbr.rel (%p329) target = $region40
      $region39: #{flood_predictor_forward.1} parent=11 // pred_region
        _
      $region40: #{flood_predictor_forward.1} parent=11 // pred_fallthru
        _
      // Predicated region
      $region41: #{flood_predictor_forward.1} parent=11 // pred_check
        %p332 = pneg %p212
      $region42: #{flood_predictor_forward.1} parent=11 // pred_check_branch
        %334 = sbr.rel (%p332) target = $region44
      $region43: #{flood_predictor_forward.1} parent=11 // pred_region
        _
      $region44: #{flood_predictor_forward.1} parent=11 // pred_fallthru
        _
      // Predicated region
      $region45: #{flood_predictor_forward.1} parent=11 // pred_check
        %p335 = pneg %p233
      $region46: #{flood_predictor_forward.1} parent=11 // pred_check_branch
        %337 = sbr.rel (%p335) target = $region48
      $region47: #{flood_predictor_forward.1} parent=11 // pred_region
        _
      $region48: #{flood_predictor_forward.1} parent=11 // pred_fallthru
        _
      // Predicated region
      $region49: #{flood_predictor_forward.1} parent=11 // pred_check
        %p338 = pneg %p254
      $region50: #{flood_predictor_forward.1} parent=11 // pred_check_branch
        %340 = sbr.rel (%p338) target = $region52
      $region51: #{flood_predictor_forward.1} parent=11 // pred_region
        _
      $region52: #{flood_predictor_forward.1} parent=11 // pred_fallthru
        _
      // Predicated region
      $region53: #{flood_predictor_forward.1} parent=11 // pred_check
        %p341 = pneg %p275
      $region54: #{flood_predictor_forward.1} parent=11 // pred_check_branch
        %343 = sbr.rel (%p341) target = $region56
      $region55: #{flood_predictor_forward.1} parent=11 // pred_region
        _
      $region56: #{flood_predictor_forward.1} parent=11 // pred_fallthru
        _
    $region12: #{flood_predictor_forward.1} parent=5 // pred_fallthru
      _
    %p344 = scmp.lt.s32.totalorder %s18, 8
    // Predicated region
    $region57: #{flood_predictor_forward.1} parent=5 // pred_check
      %p345 = pneg %p344
    $region58: #{flood_predictor_forward.1} parent=5 // pred_check_branch
      %347 = sbr.rel (%p345) target = $region60
    $region59: #{flood_predictor_forward.1} parent=5 // pred_region
      // Predicated region
      $region61: #{flood_predictor_forward.1} parent=59 // pred_check
        %p348 = pneg %p38
      $region62: #{flood_predictor_forward.1} parent=59 // pred_check_branch
        %350 = sbr.rel (%p348) target = $region64
      $region63: #{flood_predictor_forward.1} parent=59 // pred_region
        %p351 = scmp.lt.s32.totalorder %s18, 7
        %s352 = scalar_select %p351, %s18, 7
        %s353 = smul.addr %s352, 8
        %s354 = scalar_lea.vmem %s0, %s353
      $region64: #{flood_predictor_forward.1} parent=59 // pred_fallthru
        _
    $region60: #{flood_predictor_forward.1} parent=5 // pred_fallthru
      _
    %p355 = scmp.le.s32.totalorder 1, %s18
    %p356 = scmp.lt.s32.totalorder %s18, 9
    %p357 = pnand %p355, %p356
    %p358 = pneg %p357
    // Predicated region
    $region65: #{flood_predictor_forward.1} parent=5 // pred_check
      _
    $region66: #{flood_predictor_forward.1} parent=5 // pred_check_branch
      %360 = sbr.rel (%p357) target = $region68
    $region67: #{flood_predictor_forward.1} parent=5 // pred_region
      %s361 = ssub.s32 %s18, 1
      %p362 = scmp.lt.s32.totalorder %s23, 7
      %s363 = scalar_select %p362, %s23, 7
      %s364 = smul.addr %s363, 8
      %s365 = scalar_lea.vmem %s0, %s364
      %p366 = pneg %p44
      %p367 = pneg %p41
      %p368 = pneg %p65
      %p369 = pneg %p62
      %p370 = pneg %p86
      %p371 = pneg %p83
      %p372 = pneg %p107
      %p373 = pneg %p104
      %p374 = pneg %p128
      %p375 = pneg %p125
      %p376 = pneg %p149
      %p377 = pneg %p146
      %p378 = pneg %p170
      %p379 = pneg %p167
      %p380 = pneg %p191
      %p381 = pneg %p188
      %p382 = pneg %p212
      %p383 = pneg %p209
      %p384 = pneg %p233
      %p385 = pneg %p230
      %p386 = pneg %p254
      %p387 = pneg %p251
      %p388 = pneg %p275
      %p389 = pneg %p272
      %p390 = pneg %p296
      %p391 = pneg %p293
      %p392 = scmp.lt.s32.totalorder %s23, 7
      %s393 = scalar_select %p392, %s23, 7
      %s394 = smul.addr %s393, 8
      %s395 = scalar_lea.vmem %s0, %s394
      %p396 = scmp.eq.s32.totalorder %s23, 0
      // Predicated region
      $region69: #{flood_predictor_forward.1} parent=67 // pred_check
        %p397 = pneg %p396
      $region70: #{flood_predictor_forward.1} parent=67 // pred_check_branch
        %399 = sbr.rel (%p397) target = $region72
      $region71: #{flood_predictor_forward.1} parent=67 // pred_region
        %400 = vst [vmem:[#allocation2] sm:$0xff] 0.0
        %401 = vst [vmem:[#allocation2 + $0x8] sm:$0xff] 0.0
        %402 = vst [vmem:[#allocation3] sm:$0xff] 0.0
        %403 = vst [vmem:[#allocation3 + $0x8] sm:$0xff] 0.0
      $region72: #{flood_predictor_forward.1} parent=67 // pred_fallthru
        _
      %v404 = vld [vmem:[%s395] sm:$0xff]
      %v405 = vld [vmem:[#allocation2] sm:$0xff]
      %v406 = vld [vmem:[#allocation2 + $0x8] sm:$0xff]
      %v407 = vld [vmem:[%s4] sm:$0xff]
      %v408 = vld [vmem:[%s4 + $0x8] sm:$0xff]
      %v409 = vld [vmem:[%s4 + $0x10] sm:$0xff]
      %v410 = vld [vmem:[%s4 + $0x18] sm:$0xff]
      %v411 = vld [vmem:[%s4 + $0x20] sm:$0xff]
      %v412 = vld [vmem:[%s4 + $0x28] sm:$0xff]
      %v413 = vld [vmem:[%s4 + $0x30] sm:$0xff]
      %v414 = vld [vmem:[%s4 + $0x38] sm:$0xff]
      %416 = vset.pattern.permute.xlu0 0
      %417 = vperm.xlu0 %416, %v407
      %v418 = vpop.permute.xlu0 %417
      %421 = vset.pattern.permute.xlu0 0
      %422 = vperm.xlu0 %421, %v408
      %v423 = vpop.permute.xlu0 %422
      %426 = vset.pattern.permute.xlu0 0
      %427 = vperm.xlu0 %426, %v409
      %v428 = vpop.permute.xlu0 %427
      %431 = vset.pattern.permute.xlu0 0
      %432 = vperm.xlu0 %431, %v410
      %v433 = vpop.permute.xlu0 %432
      %436 = vset.pattern.permute.xlu0 0
      %437 = vperm.xlu0 %436, %v411
      %v438 = vpop.permute.xlu0 %437
      %441 = vset.pattern.permute.xlu0 0
      %442 = vperm.xlu0 %441, %v412
      %v443 = vpop.permute.xlu0 %442
      %446 = vset.pattern.permute.xlu0 0
      %447 = vperm.xlu0 %446, %v413
      %v448 = vpop.permute.xlu0 %447
      %451 = vset.pattern.permute.xlu0 0
      %452 = vperm.xlu0 %451, %v414
      %v453 = vpop.permute.xlu0 %452
      %455 = vrot.lane.b32.xlu0 %v404, 9
      %v456 = vpop.permute.xlu0 %455
      %457 = vrot.lane.b32.xlu0 %v405, 9
      %v458 = vpop.permute.xlu0 %457
      %459 = vrot.lane.b32.xlu0 %v406, 9
      %v460 = vpop.permute.xlu0 %459
      %v461 = vld [vmem:[%s1] sm:$0x1]
      %v463 = vlaneseq
      %v464 = vshrl.u32 %v463, 7
      %v465 = vsub.s32 0, %v464
      %v466 = vrot.slane %v461, %v465
      %v468 = vmul.f32 %v456, %v466
      %v469 = vmul.f32 %v458, %v466
      %v470 = vmul.f32 %v460, %v466
      %v471 = vld [vmem:[%s2] sm:$0xff]
      %v472 = vld [vmem:[%s2 + $0x8] sm:$0xff]
      %v473 = vld [vmem:[%s2 + $0x10] sm:$0xff]
      %v474 = vld [vmem:[%s2 + $0x18] sm:$0xff]
      %v475 = vld [vmem:[%s2 + $0x20] sm:$0xff]
      %v476 = vld [vmem:[%s2 + $0x28] sm:$0xff]
      %v477 = vld [vmem:[%s2 + $0x30] sm:$0xff]
      %v478 = vld [vmem:[%s2 + $0x38] sm:$0xff]
      %vm479 = vcmask 64512
      %v481 = vsel %vm479, %v471, 0
      %v484 = vsel %vm479, %v472, 0
      %v487 = vsel %vm479, %v473, 0
      %v490 = vsel %vm479, %v474, 0
      %v493 = vsel %vm479, %v475, 0
      %v496 = vsel %vm479, %v476, 0
      %v499 = vsel %vm479, %v477, 0
      %v502 = vsel %vm479, %v478, 0
      %504 = vmatprep.subr.mxu0 0.0
      %505 = vmatpush1.msra.mxu0 %v468
      %506 = vmatprep.subr.mxu0 0.0
      %507 = vmatpush1.msra.mxu0 0.0
      %508 = vmatprep.subr.mxu0 0.0
      %509 = vmatpush1.msra.mxu0 0.0
      %510 = vmatprep.subr.mxu0 0.0
      %511 = vmatpush1.msra.mxu0 0.0
      %512 = vmatprep.subr.mxu0 0.0
      %513 = vmatpush1.msra.mxu0 0.0
      %514 = vmatprep.subr.mxu0 0.0
      %515 = vmatpush1.msra.mxu0 0.0
      %516 = vmatprep.subr.mxu0 0.0
      %517 = vmatpush1.msra.mxu0 0.0
      %518 = vmatprep.subr.mxu0 0.0
      %519 = vmatpush1.msra.mxu0 0.0
      %520 = vmatprep.subr.mxu0 0.0
      %521 = vmatpush1.msra.mxu0 0.0
      %522 = vmatprep.subr.mxu0 0.0
      %523 = vmatpush1.msra.mxu0 0.0
      %524 = vmatprep.subr.mxu0 0.0
      %525 = vmatpush1.msra.mxu0 0.0
      %526 = vmatprep.subr.mxu0 0.0
      %527 = vmatpush1.msra.mxu0 0.0
      %528 = vmatprep.subr.mxu0 0.0
      %529 = vmatpush1.msra.mxu0 0.0
      %530 = vmatprep.subr.mxu0 0.0
      %531 = vmatpush1.msra.mxu0 0.0
      %532 = vmatprep.subr.mxu0 0.0
      %533 = vmatpush1.msra.mxu0 0.0
      %534 = vmatprep.subr.mxu0 0.0
      %535 = vmatpush1.msra.mxu0 0.0
      %536 = vmatprep.subr.mxu0 0.0
      %537 = vmatpush1.msra.mxu0 0.0
      %538 = vmatprep.subr.mxu0 0.0
      %539 = vmatpush1.msra.mxu0 0.0
      %540 = vmatprep.subr.mxu0 0.0
      %541 = vmatpush1.msra.mxu0 0.0
      %542 = vmatprep.subr.mxu0 0.0
      %543 = vmatpush1.msra.mxu0 0.0
      %544 = vmatprep.subr.mxu0 0.0
      %545 = vmatpush1.msra.mxu0 0.0
      %546 = vmatprep.subr.mxu0 0.0
      %547 = vmatpush1.msra.mxu0 0.0
      %548 = vmatprep.subr.mxu0 0.0
      %549 = vmatpush1.msra.mxu0 0.0
      %550 = vmatprep.subr.mxu0 0.0
      %551 = vmatpush1.msra.mxu0 0.0
      %552 = vmatprep.subr.mxu0 0.0
      %553 = vmatpush1.msra.mxu0 0.0
      %554 = vmatprep.subr.mxu0 0.0
      %555 = vmatpush1.msra.mxu0 0.0
      %556 = vmatprep.subr.mxu0 0.0
      %557 = vmatpush1.msra.mxu0 0.0
      %558 = vmatprep.subr.mxu0 0.0
      %559 = vmatpush1.msra.mxu0 0.0
      %560 = vmatprep.subr.mxu0 0.0
      %561 = vmatpush1.msra.mxu0 0.0
      %562 = vmatprep.subr.mxu0 0.0
      %563 = vmatpush1.msra.mxu0 0.0
      %564 = vmatprep.subr.mxu0 0.0
      %565 = vmatpush1.msra.mxu0 0.0
      %566 = vmatprep.subr.mxu0 0.0
      %567 = vmatpush1.msra.mxu0 0.0
      %568 = vmatprep.mubr.f32.mxu0 0.0
      %569 = vmatmul.mubr.f32.gmra.mrb[0].mxu0 %v481
      %v570 = vpop.f32.mrb[0].mxu0
      %v571 = vadd.f32 0.0, %v570
      %v572 = vpop.f32.mrb[0].mxu0
      %573 = vmatprep.mubr.f32.mxu0 0.0
      %574 = vmatmul.mubr.f32.gmra.mrb[0].mxu0 %v484
      %v575 = vpop.f32.mrb[0].mxu0
      %v576 = vadd.f32 0.0, %v575
      %v577 = vpop.f32.mrb[0].mxu0
      %578 = vmatprep.mubr.f32.mxu0 0.0
      %579 = vmatmul.mubr.f32.gmra.mrb[0].mxu0 %v487
      %v580 = vpop.f32.mrb[0].mxu0
      %v581 = vadd.f32 0.0, %v580
      %v582 = vpop.f32.mrb[0].mxu0
      %583 = vmatprep.mubr.f32.mxu0 0.0
      %584 = vmatmul.mubr.f32.gmra.mrb[0].mxu0 %v490
      %v585 = vpop.f32.mrb[0].mxu0
      %v586 = vadd.f32 0.0, %v585
      %v587 = vpop.f32.mrb[0].mxu0
      %588 = vmatprep.mubr.f32.mxu0 0.0
      %589 = vmatmul.mubr.f32.gmra.mrb[0].mxu0 %v493
      %v590 = vpop.f32.mrb[0].mxu0
      %v591 = vadd.f32 0.0, %v590
      %v592 = vpop.f32.mrb[0].mxu0
      %593 = vmatprep.mubr.f32.mxu0 0.0
      %594 = vmatmul.mubr.f32.gmra.mrb[0].mxu0 %v496
      %v595 = vpop.f32.mrb[0].mxu0
      %v596 = vadd.f32 0.0, %v595
      %v597 = vpop.f32.mrb[0].mxu0
      %598 = vmatprep.mubr.f32.mxu0 0.0
      %599 = vmatmul.mubr.f32.gmra.mrb[0].mxu0 %v499
      %v600 = vpop.f32.mrb[0].mxu0
      %v601 = vadd.f32 0.0, %v600
      %v602 = vpop.f32.mrb[0].mxu0
      %603 = vmatprep.mubr.f32.mxu0 0.0
      %604 = vmatmul.mubr.f32.gmra.mrb[0].mxu0 %v502
      %v605 = vpop.f32.mrb[0].mxu0
      %v606 = vadd.f32 0.0, %v605
      %v607 = vpop.f32.mrb[0].mxu0
      %608 = vdwg.mxu0
      %v609 = vadd.f32 %v418, %v571
      %v610 = vadd.f32 %v423, %v576
      %v611 = vadd.f32 %v428, %v581
      %v612 = vadd.f32 %v433, %v586
      %v613 = vadd.f32 %v438, %v591
      %v614 = vadd.f32 %v443, %v596
      %v615 = vadd.f32 %v448, %v601
      %v616 = vadd.f32 %v453, %v606
      %v617 = vld [vmem:[%s3] sm:$0xff]
      %v618 = vld [vmem:[%s3 + $0x8] sm:$0xff]
      %v619 = vld [vmem:[%s3 + $0x10] sm:$0xff]
      %v620 = vld [vmem:[%s3 + $0x18] sm:$0xff]
      %v621 = vld [vmem:[%s3 + $0x20] sm:$0xff]
      %v622 = vld [vmem:[%s3 + $0x28] sm:$0xff]
      %v623 = vld [vmem:[%s3 + $0x30] sm:$0xff]
      %v624 = vld [vmem:[%s3 + $0x38] sm:$0xff]
      %vm625 = vcmask 130048
      %v627 = vsel %vm625, %v617, 0
      %v630 = vsel %vm625, %v618, 0
      %v633 = vsel %vm625, %v619, 0
      %v636 = vsel %vm625, %v620, 0
      %v639 = vsel %vm625, %v621, 0
      %v642 = vsel %vm625, %v622, 0
      %v645 = vsel %vm625, %v623, 0
      %v648 = vsel %vm625, %v624, 0
      %650 = vmatprep.subr.mxu0 0.0
      %651 = vmatpush1.msra.mxu0 %v469
      %652 = vmatprep.subr.mxu0 0.0
      %653 = vmatpush1.msra.mxu0 %v470
      %654 = vmatprep.subr.mxu0 0.0
      %655 = vmatpush1.msra.mxu0 0.0
      %656 = vmatprep.subr.mxu0 0.0
      %657 = vmatpush1.msra.mxu0 0.0
      %658 = vmatprep.subr.mxu0 0.0
      %659 = vmatpush1.msra.mxu0 0.0
      %660 = vmatprep.subr.mxu0 0.0
      %661 = vmatpush1.msra.mxu0 0.0
      %662 = vmatprep.subr.mxu0 0.0
      %663 = vmatpush1.msra.mxu0 0.0
      %664 = vmatprep.subr.mxu0 0.0
      %665 = vmatpush1.msra.mxu0 0.0
      %666 = vmatprep.subr.mxu0 0.0
      %667 = vmatpush1.msra.mxu0 0.0
      %668 = vmatprep.subr.mxu0 0.0
      %669 = vmatpush1.msra.mxu0 0.0
      %670 = vmatprep.subr.mxu0 0.0
      %671 = vmatpush1.msra.mxu0 0.0
      %672 = vmatprep.subr.mxu0 0.0
      %673 = vmatpush1.msra.mxu0 0.0
      %674 = vmatprep.subr.mxu0 0.0
      %675 = vmatpush1.msra.mxu0 0.0
      %676 = vmatprep.subr.mxu0 0.0
      %677 = vmatpush1.msra.mxu0 0.0
      %678 = vmatprep.subr.mxu0 0.0
      %679 = vmatpush1.msra.mxu0 0.0
      %680 = vmatprep.subr.mxu0 0.0
      %681 = vmatpush1.msra.mxu0 0.0
      %682 = vmatprep.subr.mxu0 0.0
      %683 = vmatpush1.msra.mxu0 0.0
      %684 = vmatprep.subr.mxu0 0.0
      %685 = vmatpush1.msra.mxu0 0.0
      %686 = vmatprep.subr.mxu0 0.0
      %687 = vmatpush1.msra.mxu0 0.0
      %688 = vmatprep.subr.mxu0 0.0
      %689 = vmatpush1.msra.mxu0 0.0
      %690 = vmatprep.subr.mxu0 0.0
      %691 = vmatpush1.msra.mxu0 0.0
      %692 = vmatprep.subr.mxu0 0.0
      %693 = vmatpush1.msra.mxu0 0.0
      %694 = vmatprep.subr.mxu0 0.0
      %695 = vmatpush1.msra.mxu0 0.0
      %696 = vmatprep.subr.mxu0 0.0
      %697 = vmatpush1.msra.mxu0 0.0
      %698 = vmatprep.subr.mxu0 0.0
      %699 = vmatpush1.msra.mxu0 0.0
      %700 = vmatprep.subr.mxu0 0.0
      %701 = vmatpush1.msra.mxu0 0.0
      %702 = vmatprep.subr.mxu0 0.0
      %703 = vmatpush1.msra.mxu0 0.0
      %704 = vmatprep.subr.mxu0 0.0
      %705 = vmatpush1.msra.mxu0 0.0
      %706 = vmatprep.subr.mxu0 0.0
      %707 = vmatpush1.msra.mxu0 0.0
      %708 = vmatprep.subr.mxu0 0.0
      %709 = vmatpush1.msra.mxu0 0.0
      %710 = vmatprep.subr.mxu0 0.0
      %711 = vmatpush1.msra.mxu0 0.0
      %712 = vmatprep.subr.mxu0 0.0
      %713 = vmatpush1.msra.mxu0 0.0
      %714 = vmatprep.mubr.f32.mxu0 0.0
      %715 = vmatmul.mubr.f32.gmra.mrb[0].mxu0 %v627
      %v716 = vpop.f32.mrb[0].mxu0
      %v717 = vadd.f32 0.0, %v716
      %v718 = vpop.f32.mrb[0].mxu0
      %719 = vmatprep.mubr.f32.mxu0 0.0
      %720 = vmatmul.mubr.f32.gmra.mrb[0].mxu0 %v630
      %v721 = vpop.f32.mrb[0].mxu0
      %v722 = vadd.f32 0.0, %v721
      %v723 = vpop.f32.mrb[0].mxu0
      %724 = vmatprep.mubr.f32.mxu0 0.0
      %725 = vmatmul.mubr.f32.gmra.mrb[0].mxu0 %v633
      %v726 = vpop.f32.mrb[0].mxu0
      %v727 = vadd.f32 0.0, %v726
      %v728 = vpop.f32.mrb[0].mxu0
      %729 = vmatprep.mubr.f32.mxu0 0.0
      %730 = vmatmul.mubr.f32.gmra.mrb[0].mxu0 %v636
      %v731 = vpop.f32.mrb[0].mxu0
      %v732 = vadd.f32 0.0, %v731
      %v733 = vpop.f32.mrb[0].mxu0
      %734 = vmatprep.mubr.f32.mxu0 0.0
      %735 = vmatmul.mubr.f32.gmra.mrb[0].mxu0 %v639
      %v736 = vpop.f32.mrb[0].mxu0
      %v737 = vadd.f32 0.0, %v736
      %v738 = vpop.f32.mrb[0].mxu0
      %739 = vmatprep.mubr.f32.mxu0 0.0
      %740 = vmatmul.mubr.f32.gmra.mrb[0].mxu0 %v642
      %v741 = vpop.f32.mrb[0].mxu0
      %v742 = vadd.f32 0.0, %v741
      %v743 = vpop.f32.mrb[0].mxu0
      %744 = vmatprep.mubr.f32.mxu0 0.0
      %745 = vmatmul.mubr.f32.gmra.mrb[0].mxu0 %v645
      %v746 = vpop.f32.mrb[0].mxu0
      %v747 = vadd.f32 0.0, %v746
      %v748 = vpop.f32.mrb[0].mxu0
      %749 = vmatprep.mubr.f32.mxu0 0.0
      %750 = vmatmul.mubr.f32.gmra.mrb[0].mxu0 %v648
      %v751 = vpop.f32.mrb[0].mxu0
      %v752 = vadd.f32 0.0, %v751
      %v753 = vpop.f32.mrb[0].mxu0
      %754 = vdwg.mxu0
      %v755 = vadd.f32 %v609, %v717
      %v756 = vadd.f32 %v610, %v722
      %v757 = vadd.f32 %v611, %v727
      %v758 = vadd.f32 %v612, %v732
      %v759 = vadd.f32 %v613, %v737
      %v760 = vadd.f32 %v614, %v742
      %v761 = vadd.f32 %v615, %v747
      %v762 = vadd.f32 %v616, %v752
      %763 = vrot.lane.b32.xlu0 %v404, 8
      %v764 = vpop.permute.xlu0 %763
      %765 = vrot.lane.b32.xlu0 %v405, 8
      %v766 = vpop.permute.xlu0 %765
      %767 = vrot.lane.b32.xlu0 %v406, 8
      %v768 = vpop.permute.xlu0 %767
      %s769 = scalar_lea.vmem %s1, 1
      %v770 = vld [vmem:[%s769] sm:$0x1]
      %v772 = vlaneseq
      %v773 = vshrl.u32 %v772, 7
      %v774 = vsub.s32 0, %v773
      %v775 = vrot.slane %v770, %v774
      %v777 = vmul.f32 %v764, %v775
      %v778 = vmul.f32 %v766, %v775
      %v779 = vmul.f32 %v768, %v775
      %s780 = scalar_lea.vmem %s2, 64
      %v781 = vld [vmem:[%s780] sm:$0xff]
      %v782 = vld [vmem:[%s780 + $0x8] sm:$0xff]
      %v783 = vld [vmem:[%s780 + $0x10] sm:$0xff]
      %v784 = vld [vmem:[%s780 + $0x18] sm:$0xff]
      %v785 = vld [vmem:[%s780 + $0x20] sm:$0xff]
      %v786 = vld [vmem:[%s780 + $0x28] sm:$0xff]
      %v787 = vld [vmem:[%s780 + $0x30] sm:$0xff]
      %v788 = vld [vmem:[%s780 + $0x38] sm:$0xff]
      %v790 = vsel %vm479, %v781, 0
      %v793 = vsel %vm479, %v782, 0
      %v796 = vsel %vm479, %v783, 0
      %v799 = vsel %vm479, %v784, 0
      %v802 = vsel %vm479, %v785, 0
      %v805 = vsel %vm479, %v786, 0
      %v808 = vsel %vm479, %v787, 0
      %v811 = vsel %vm479, %v788, 0
      %813 = vmatprep.subr.mxu0 0.0
      %814 = vmatpush1.msra.mxu0 %v777
      %815 = vmatprep.subr.mxu0 0.0
      %816 = vmatpush1.msra.mxu0 0.0
      %817 = vmatprep.subr.mxu0 0.0
      %818 = vmatpush1.msra.mxu0 0.0
      %819 = vmatprep.subr.mxu0 0.0
      %820 = vmatpush1.msra.mxu0 0.0
      %821 = vmatprep.subr.mxu0 0.0
      %822 = vmatpush1.msra.mxu0 0.0
      %823 = vmatprep.subr.mxu0 0.0
      %824 = vmatpush1.msra.mxu0 0.0
      %825 = vmatprep.subr.mxu0 0.0
      %826 = vmatpush1.msra.mxu0 0.0
      %827 = vmatprep.subr.mxu0 0.0
      %828 = vmatpush1.msra.mxu0 0.0
      %829 = vmatprep.subr.mxu0 0.0
      %830 = vmatpush1.msra.mxu0 0.0
      %831 = vmatprep.subr.mxu0 0.0
      %832 = vmatpush1.msra.mxu0 0.0
      %833 = vmatprep.subr.mxu0 0.0
      %834 = vmatpush1.msra.mxu0 0.0
      %835 = vmatprep.subr.mxu0 0.0
      %836 = vmatpush1.msra.mxu0 0.0
      %837 = vmatprep.subr.mxu0 0.0
      %838 = vmatpush1.msra.mxu0 0.0
      %839 = vmatprep.subr.mxu0 0.0
      %840 = vmatpush1.msra.mxu0 0.0
      %841 = vmatprep.subr.mxu0 0.0
      %842 = vmatpush1.msra.mxu0 0.0
      %843 = vmatprep.subr.mxu0 0.0
      %844 = vmatpush1.msra.mxu0 0.0
      %845 = vmatprep.subr.mxu0 0.0
      %846 = vmatpush1.msra.mxu0 0.0
      %847 = vmatprep.subr.mxu0 0.0
      %848 = vmatpush1.msra.mxu0 0.0
      %849 = vmatprep.subr.mxu0 0.0
      %850 = vmatpush1.msra.mxu0 0.0
      %851 = vmatprep.subr.mxu0 0.0
      %852 = vmatpush1.msra.mxu0 0.0
      %853 = vmatprep.subr.mxu0 0.0
      %854 = vmatpush1.msra.mxu0 0.0
      %855 = vmatprep.subr.mxu0 0.0
      %856 = vmatpush1.msra.mxu0 0.0
      %857 = vmatprep.subr.mxu0 0.0
      %858 = vmatpush1.msra.mxu0 0.0
      %859 = vmatprep.subr.mxu0 0.0
      %860 = vmatpush1.msra.mxu0 0.0
      %861 = vmatprep.subr.mxu0 0.0
      %862 = vmatpush1.msra.mxu0 0.0
      %863 = vmatprep.subr.mxu0 0.0
      %864 = vmatpush1.msra.mxu0 0.0
      %865 = vmatprep.subr.mxu0 0.0
      %866 = vmatpush1.msra.mxu0 0.0
      %867 = vmatprep.subr.mxu0 0.0
      %868 = vmatpush1.msra.mxu0 0.0
      %869 = vmatprep.subr.mxu0 0.0
      %870 = vmatpush1.msra.mxu0 0.0
      %871 = vmatprep.subr.mxu0 0.0
      %872 = vmatpush1.msra.mxu0 0.0
      %873 = vmatprep.subr.mxu0 0.0
      %874 = vmatpush1.msra.mxu0 0.0
      %875 = vmatprep.subr.mxu0 0.0
      %876 = vmatpush1.msra.mxu0 0.0
      %877 = vmatprep.mubr.f32.mxu0 0.0
      %878 = vmatmul.mubr.f32.gmra.mrb[0].mxu0 %v790
      %v879 = vpop.f32.mrb[0].mxu0
      %v880 = vadd.f32 0.0, %v879
      %v881 = vpop.f32.mrb[0].mxu0
      %882 = vmatprep.mubr.f32.mxu0 0.0
      %883 = vmatmul.mubr.f32.gmra.mrb[0].mxu0 %v793
      %v884 = vpop.f32.mrb[0].mxu0
      %v885 = vadd.f32 0.0, %v884
      %v886 = vpop.f32.mrb[0].mxu0
      %887 = vmatprep.mubr.f32.mxu0 0.0
      %888 = vmatmul.mubr.f32.gmra.mrb[0].mxu0 %v796
      %v889 = vpop.f32.mrb[0].mxu0
      %v890 = vadd.f32 0.0, %v889
      %v891 = vpop.f32.mrb[0].mxu0
      %892 = vmatprep.mubr.f32.mxu0 0.0
      %893 = vmatmul.mubr.f32.gmra.mrb[0].mxu0 %v799
      %v894 = vpop.f32.mrb[0].mxu0
      %v895 = vadd.f32 0.0, %v894
      %v896 = vpop.f32.mrb[0].mxu0
      %897 = vmatprep.mubr.f32.mxu0 0.0
      %898 = vmatmul.mubr.f32.gmra.mrb[0].mxu0 %v802
      %v899 = vpop.f32.mrb[0].mxu0
      %v900 = vadd.f32 0.0, %v899
      %v901 = vpop.f32.mrb[0].mxu0
      %902 = vmatprep.mubr.f32.mxu0 0.0
      %903 = vmatmul.mubr.f32.gmra.mrb[0].mxu0 %v805
      %v904 = vpop.f32.mrb[0].mxu0
      %v905 = vadd.f32 0.0, %v904
      %v906 = vpop.f32.mrb[0].mxu0
      %907 = vmatprep.mubr.f32.mxu0 0.0
      %908 = vmatmul.mubr.f32.gmra.mrb[0].mxu0 %v808
      %v909 = vpop.f32.mrb[0].mxu0
      %v910 = vadd.f32 0.0, %v909
      %v911 = vpop.f32.mrb[0].mxu0
      %912 = vmatprep.mubr.f32.mxu0 0.0
      %913 = vmatmul.mubr.f32.gmra.mrb[0].mxu0 %v811
      %v914 = vpop.f32.mrb[0].mxu0
      %v915 = vadd.f32 0.0, %v914
      %v916 = vpop.f32.mrb[0].mxu0
      %917 = vdwg.mxu0
      %v918 = vadd.f32 %v755, %v880
      %v919 = vadd.f32 %v756, %v885
      %v920 = vadd.f32 %v757, %v890
      %v921 = vadd.f32 %v758, %v895
      %v922 = vadd.f32 %v759, %v900
      %v923 = vadd.f32 %v760, %v905
      %v924 = vadd.f32 %v761, %v910
      %v925 = vadd.f32 %v762, %v915
      %s926 = scalar_lea.vmem %s3, 64
      %v927 = vld [vmem:[%s926] sm:$0xff]
      %v928 = vld [vmem:[%s926 + $0x8] sm:$0xff]
      %v929 = vld [vmem:[%s926 + $0x10] sm:$0xff]
      %v930 = vld [vmem:[%s926 + $0x18] sm:$0xff]
      %v931 = vld [vmem:[%s926 + $0x20] sm:$0xff]
      %v932 = vld [vmem:[%s926 + $0x28] sm:$0xff]
      %v933 = vld [vmem:[%s926 + $0x30] sm:$0xff]
      %v934 = vld [vmem:[%s926 + $0x38] sm:$0xff]
      %v936 = vsel %vm625, %v927, 0
      %v939 = vsel %vm625, %v928, 0
      %v942 = vsel %vm625, %v929, 0
      %v945 = vsel %vm625, %v930, 0
      %v948 = vsel %vm625, %v931, 0
      %v951 = vsel %vm625, %v932, 0
      %v954 = vsel %vm625, %v933, 0
      %v957 = vsel %vm625, %v934, 0
      %959 = vmatprep.subr.mxu0 0.0
      %960 = vmatpush1.msra.mxu0 %v778
      %961 = vmatprep.subr.mxu0 0.0
      %962 = vmatpush1.msra.mxu0 %v779
      %963 = vmatprep.subr.mxu0 0.0
      %964 = vmatpush1.msra.mxu0 0.0
      %965 = vmatprep.subr.mxu0 0.0
      %966 = vmatpush1.msra.mxu0 0.0
      %967 = vmatprep.subr.mxu0 0.0
      %968 = vmatpush1.msra.mxu0 0.0
      %969 = vmatprep.subr.mxu0 0.0
      %970 = vmatpush1.msra.mxu0 0.0
      %971 = vmatprep.subr.mxu0 0.0
      %972 = vmatpush1.msra.mxu0 0.0
      %973 = vmatprep.subr.mxu0 0.0
      %974 = vmatpush1.msra.mxu0 0.0
      %975 = vmatprep.subr.mxu0 0.0
      %976 = vmatpush1.msra.mxu0 0.0
      %977 = vmatprep.subr.mxu0 0.0
      %978 = vmatpush1.msra.mxu0 0.0
      %979 = vmatprep.subr.mxu0 0.0
      %980 = vmatpush1.msra.mxu0 0.0
      %981 = vmatprep.subr.mxu0 0.0
      %982 = vmatpush1.msra.mxu0 0.0
      %983 = vmatprep.subr.mxu0 0.0
      %984 = vmatpush1.msra.mxu0 0.0
      %985 = vmatprep.subr.mxu0 0.0
      %986 = vmatpush1.msra.mxu0 0.0
      %987 = vmatprep.subr.mxu0 0.0
      %988 = vmatpush1.msra.mxu0 0.0
      %989 = vmatprep.subr.mxu0 0.0
      %990 = vmatpush1.msra.mxu0 0.0
      %991 = vmatprep.subr.mxu0 0.0
      %992 = vmatpush1.msra.mxu0 0.0
      %993 = vmatprep.subr.mxu0 0.0
      %994 = vmatpush1.msra.mxu0 0.0
      %995 = vmatprep.subr.mxu0 0.0
      %996 = vmatpush1.msra.mxu0 0.0
      %997 = vmatprep.subr.mxu0 0.0
      %998 = vmatpush1.msra.mxu0 0.0
      %999 = vmatprep.subr.mxu0 0.0
      %1000 = vmatpush1.msra.mxu0 0.0
      %1001 = vmatprep.subr.mxu0 0.0
      %1002 = vmatpush1.msra.mxu0 0.0
      %1003 = vmatprep.subr.mxu0 0.0
      %1004 = vmatpush1.msra.mxu0 0.0
      %1005 = vmatprep.subr.mxu0 0.0
      %1006 = vmatpush1.msra.mxu0 0.0
      %1007 = vmatprep.subr.mxu0 0.0
      %1008 = vmatpush1.msra.mxu0 0.0
      %1009 = vmatprep.subr.mxu0 0.0
      %1010 = vmatpush1.msra.mxu0 0.0
      %1011 = vmatprep.subr.mxu0 0.0
      %1012 = vmatpush1.msra.mxu0 0.0
      %1013 = vmatprep.subr.mxu0 0.0
      %1014 = vmatpush1.msra.mxu0 0.0
      %1015 = vmatprep.subr.mxu0 0.0
      %1016 = vmatpush1.msra.mxu0 0.0
      %1017 = vmatprep.subr.mxu0 0.0
      %1018 = vmatpush1.msra.mxu0 0.0
      %1019 = vmatprep.subr.mxu0 0.0
      %1020 = vmatpush1.msra.mxu0 0.0
      %1021 = vmatprep.subr.mxu0 0.0
      %1022 = vmatpush1.msra.mxu0 0.0
      %1023 = vmatprep.mubr.f32.mxu0 0.0
      %1024 = vmatmul.mubr.f32.gmra.mrb[0].mxu0 %v936
      %v1025 = vpop.f32.mrb[0].mxu0
      %v1026 = vadd.f32 0.0, %v1025
      %v1027 = vpop.f32.mrb[0].mxu0
      %1028 = vmatprep.mubr.f32.mxu0 0.0
      %1029 = vmatmul.mubr.f32.gmra.mrb[0].mxu0 %v939
      %v1030 = vpop.f32.mrb[0].mxu0
      %v1031 = vadd.f32 0.0, %v1030
      %v1032 = vpop.f32.mrb[0].mxu0
      %1033 = vmatprep.mubr.f32.mxu0 0.0
      %1034 = vmatmul.mubr.f32.gmra.mrb[0].mxu0 %v942
      %v1035 = vpop.f32.mrb[0].mxu0
      %v1036 = vadd.f32 0.0, %v1035
      %v1037 = vpop.f32.mrb[0].mxu0
      %1038 = vmatprep.mubr.f32.mxu0 0.0
      %1039 = vmatmul.mubr.f32.gmra.mrb[0].mxu0 %v945
      %v1040 = vpop.f32.mrb[0].mxu0
      %v1041 = vadd.f32 0.0, %v1040
      %v1042 = vpop.f32.mrb[0].mxu0
      %1043 = vmatprep.mubr.f32.mxu0 0.0
      %1044 = vmatmul.mubr.f32.gmra.mrb[0].mxu0 %v948
      %v1045 = vpop.f32.mrb[0].mxu0
      %v1046 = vadd.f32 0.0, %v1045
      %v1047 = vpop.f32.mrb[0].mxu0
      %1048 = vmatprep.mubr.f32.mxu0 0.0
      %1049 = vmatmul.mubr.f32.gmra.mrb[0].mxu0 %v951
      %v1050 = vpop.f32.mrb[0].mxu0
      %v1051 = vadd.f32 0.0, %v1050
      %v1052 = vpop.f32.mrb[0].mxu0
      %1053 = vmatprep.mubr.f32.mxu0 0.0
      %1054 = vmatmul.mubr.f32.gmra.mrb[0].mxu0 %v954
      %v1055 = vpop.f32.mrb[0].mxu0
      %v1056 = vadd.f32 0.0, %v1055
      %v1057 = vpop.f32.mrb[0].mxu0
      %1058 = vmatprep.mubr.f32.mxu0 0.0
      %1059 = vmatmul.mubr.f32.gmra.mrb[0].mxu0 %v957
      %v1060 = vpop.f32.mrb[0].mxu0
      %v1061 = vadd.f32 0.0, %v1060
      %v1062 = vpop.f32.mrb[0].mxu0
      %1063 = vdwg.mxu0
      %v1064 = vadd.f32 %v918, %v1026
      %v1065 = vadd.f32 %v919, %v1031
      %v1066 = vadd.f32 %v920, %v1036
      %v1067 = vadd.f32 %v921, %v1041
      %v1068 = vadd.f32 %v922, %v1046
      %v1069 = vadd.f32 %v923, %v1051
      %v1070 = vadd.f32 %v924, %v1056
      %v1071 = vadd.f32 %v925, %v1061
      %1072 = vrot.lane.b32.xlu0 %v404, 7
      %v1073 = vpop.permute.xlu0 %1072
      %1074 = vrot.lane.b32.xlu0 %v405, 7
      %v1075 = vpop.permute.xlu0 %1074
      %1076 = vrot.lane.b32.xlu0 %v406, 7
      %v1077 = vpop.permute.xlu0 %1076
      %s1078 = scalar_lea.vmem %s1, 2
      %v1079 = vld [vmem:[%s1078] sm:$0x1]
      %v1081 = vlaneseq
      %v1082 = vshrl.u32 %v1081, 7
      %v1083 = vsub.s32 0, %v1082
      %v1084 = vrot.slane %v1079, %v1083
      %v1086 = vmul.f32 %v1073, %v1084
      %v1087 = vmul.f32 %v1075, %v1084
      %v1088 = vmul.f32 %v1077, %v1084
      %s1089 = scalar_lea.vmem %s2, 128
      %v1090 = vld [vmem:[%s1089] sm:$0xff]
      %v1091 = vld [vmem:[%s1089 + $0x8] sm:$0xff]
      %v1092 = vld [vmem:[%s1089 + $0x10] sm:$0xff]
      %v1093 = vld [vmem:[%s1089 + $0x18] sm:$0xff]
      %v1094 = vld [vmem:[%s1089 + $0x20] sm:$0xff]
      %v1095 = vld [vmem:[%s1089 + $0x28] sm:$0xff]
      %v1096 = vld [vmem:[%s1089 + $0x30] sm:$0xff]
      %v1097 = vld [vmem:[%s1089 + $0x38] sm:$0xff]
      %v1099 = vsel %vm479, %v1090, 0
      %v1102 = vsel %vm479, %v1091, 0
      %v1105 = vsel %vm479, %v1092, 0
      %v1108 = vsel %vm479, %v1093, 0
      %v1111 = vsel %vm479, %v1094, 0
      %v1114 = vsel %vm479, %v1095, 0
      %v1117 = vsel %vm479, %v1096, 0
      %v1120 = vsel %vm479, %v1097, 0
      %1122 = vmatprep.subr.mxu0 0.0
      %1123 = vmatpush1.msra.mxu0 %v1086
      %1124 = vmatprep.subr.mxu0 0.0
      %1125 = vmatpush1.msra.mxu0 0.0
      %1126 = vmatprep.subr.mxu0 0.0
      %1127 = vmatpush1.msra.mxu0 0.0
      %1128 = vmatprep.subr.mxu0 0.0
      %1129 = vmatpush1.msra.mxu0 0.0
      %1130 = vmatprep.subr.mxu0 0.0
      %1131 = vmatpush1.msra.mxu0 0.0
      %1132 = vmatprep.subr.mxu0 0.0
      %1133 = vmatpush1.msra.mxu0 0.0
      %1134 = vmatprep.subr.mxu0 0.0
      %1135 = vmatpush1.msra.mxu0 0.0
      %1136 = vmatprep.subr.mxu0 0.0
      %1137 = vmatpush1.msra.mxu0 0.0
      %1138 = vmatprep.subr.mxu0 0.0
      %1139 = vmatpush1.msra.mxu0 0.0
      %1140 = vmatprep.subr.mxu0 0.0
      %1141 = vmatpush1.msra.mxu0 0.0
      %1142 = vmatprep.subr.mxu0 0.0
      %1143 = vmatpush1.msra.mxu0 0.0
      %1144 = vmatprep.subr.mxu0 0.0
      %1145 = vmatpush1.msra.mxu0 0.0
      %1146 = vmatprep.subr.mxu0 0.0
      %1147 = vmatpush1.msra.mxu0 0.0
      %1148 = vmatprep.subr.mxu0 0.0
      %1149 = vmatpush1.msra.mxu0 0.0
      %1150 = vmatprep.subr.mxu0 0.0
      %1151 = vmatpush1.msra.mxu0 0.0
      %1152 = vmatprep.subr.mxu0 0.0
      %1153 = vmatpush1.msra.mxu0 0.0
      %1154 = vmatprep.subr.mxu0 0.0
      %1155 = vmatpush1.msra.mxu0 0.0
      %1156 = vmatprep.subr.mxu0 0.0
      %1157 = vmatpush1.msra.mxu0 0.0
      %1158 = vmatprep.subr.mxu0 0.0
      %1159 = vmatpush1.msra.mxu0 0.0
      %1160 = vmatprep.subr.mxu0 0.0
      %1161 = vmatpush1.msra.mxu0 0.0
      %1162 = vmatprep.subr.mxu0 0.0
      %1163 = vmatpush1.msra.mxu0 0.0
      %1164 = vmatprep.subr.mxu0 0.0
      %1165 = vmatpush1.msra.mxu0 0.0
      %1166 = vmatprep.subr.mxu0 0.0
      %1167 = vmatpush1.msra.mxu0 0.0
      %1168 = vmatprep.subr.mxu0 0.0
      %1169 = vmatpush1.msra.mxu0 0.0
      %1170 = vmatprep.subr.mxu0 0.0
      %1171 = vmatpush1.msra.mxu0 0.0
      %1172 = vmatprep.subr.mxu0 0.0
      %1173 = vmatpush1.msra.mxu0 0.0
      %1174 = vmatprep.subr.mxu0 0.0
      %1175 = vmatpush1.msra.mxu0 0.0
      %1176 = vmatprep.subr.mxu0 0.0
      %1177 = vmatpush1.msra.mxu0 0.0
      %1178 = vmatprep.subr.mxu0 0.0
      %1179 = vmatpush1.msra.mxu0 0.0
      %1180 = vmatprep.subr.mxu0 0.0
      %1181 = vmatpush1.msra.mxu0 0.0
      %1182 = vmatprep.subr.mxu0 0.0
      %1183 = vmatpush1.msra.mxu0 0.0
      %1184 = vmatprep.subr.mxu0 0.0
      %1185 = vmatpush1.msra.mxu0 0.0
      %1186 = vmatprep.mubr.f32.mxu0 0.0
      %1187 = vmatmul.mubr.f32.gmra.mrb[0].mxu0 %v1099
      %v1188 = vpop.f32.mrb[0].mxu0
      %v1189 = vadd.f32 0.0, %v1188
      %v1190 = vpop.f32.mrb[0].mxu0
      %1191 = vmatprep.mubr.f32.mxu0 0.0
      %1192 = vmatmul.mubr.f32.gmra.mrb[0].mxu0 %v1102
      %v1193 = vpop.f32.mrb[0].mxu0
      %v1194 = vadd.f32 0.0, %v1193
      %v1195 = vpop.f32.mrb[0].mxu0
      %1196 = vmatprep.mubr.f32.mxu0 0.0
      %1197 = vmatmul.mubr.f32.gmra.mrb[0].mxu0 %v1105
      %v1198 = vpop.f32.mrb[0].mxu0
      %v1199 = vadd.f32 0.0, %v1198
      %v1200 = vpop.f32.mrb[0].mxu0
      %1201 = vmatprep.mubr.f32.mxu0 0.0
      %1202 = vmatmul.mubr.f32.gmra.mrb[0].mxu0 %v1108
      %v1203 = vpop.f32.mrb[0].mxu0
      %v1204 = vadd.f32 0.0, %v1203
      %v1205 = vpop.f32.mrb[0].mxu0
      %1206 = vmatprep.mubr.f32.mxu0 0.0
      %1207 = vmatmul.mubr.f32.gmra.mrb[0].mxu0 %v1111
      %v1208 = vpop.f32.mrb[0].mxu0
      %v1209 = vadd.f32 0.0, %v1208
      %v1210 = vpop.f32.mrb[0].mxu0
      %1211 = vmatprep.mubr.f32.mxu0 0.0
      %1212 = vmatmul.mubr.f32.gmra.mrb[0].mxu0 %v1114
      %v1213 = vpop.f32.mrb[0].mxu0
      %v1214 = vadd.f32 0.0, %v1213
      %v1215 = vpop.f32.mrb[0].mxu0
      %1216 = vmatprep.mubr.f32.mxu0 0.0
      %1217 = vmatmul.mubr.f32.gmra.mrb[0].mxu0 %v1117
      %v1218 = vpop.f32.mrb[0].mxu0
      %v1219 = vadd.f32 0.0, %v1218
      %v1220 = vpop.f32.mrb[0].mxu0
      %1221 = vmatprep.mubr.f32.mxu0 0.0
      %1222 = vmatmul.mubr.f32.gmra.mrb[0].mxu0 %v1120
      %v1223 = vpop.f32.mrb[0].mxu0
      %v1224 = vadd.f32 0.0, %v1223
      %v1225 = vpop.f32.mrb[0].mxu0
      %1226 = vdwg.mxu0
      %v1227 = vadd.f32 %v1064, %v1189
      %v1228 = vadd.f32 %v1065, %v1194
      %v1229 = vadd.f32 %v1066, %v1199
      %v1230 = vadd.f32 %v1067, %v1204
      %v1231 = vadd.f32 %v1068, %v1209
      %v1232 = vadd.f32 %v1069, %v1214
      %v1233 = vadd.f32 %v1070, %v1219
      %v1234 = vadd.f32 %v1071, %v1224
      %s1235 = scalar_lea.vmem %s3, 128
      %v1236 = vld [vmem:[%s1235] sm:$0xff]
      %v1237 = vld [vmem:[%s1235 + $0x8] sm:$0xff]
      %v1238 = vld [vmem:[%s1235 + $0x10] sm:$0xff]
      %v1239 = vld [vmem:[%s1235 + $0x18] sm:$0xff]
      %v1240 = vld [vmem:[%s1235 + $0x20] sm:$0xff]
      %v1241 = vld [vmem:[%s1235 + $0x28] sm:$0xff]
      %v1242 = vld [vmem:[%s1235 + $0x30] sm:$0xff]
      %v1243 = vld [vmem:[%s1235 + $0x38] sm:$0xff]
      %v1245 = vsel %vm625, %v1236, 0
      %v1248 = vsel %vm625, %v1237, 0
      %v1251 = vsel %vm625, %v1238, 0
      %v1254 = vsel %vm625, %v1239, 0
      %v1257 = vsel %vm625, %v1240, 0
      %v1260 = vsel %vm625, %v1241, 0
      %v1263 = vsel %vm625, %v1242, 0
      %v1266 = vsel %vm625, %v1243, 0
      %1268 = vmatprep.subr.mxu0 0.0
      %1269 = vmatpush1.msra.mxu0 %v1087
      %1270 = vmatprep.subr.mxu0 0.0
      %1271 = vmatpush1.msra.mxu0 %v1088
      %1272 = vmatprep.subr.mxu0 0.0
      %1273 = vmatpush1.msra.mxu0 0.0
      %1274 = vmatprep.subr.mxu0 0.0
      %1275 = vmatpush1.msra.mxu0 0.0
      %1276 = vmatprep.subr.mxu0 0.0
      %1277 = vmatpush1.msra.mxu0 0.0
      %1278 = vmatprep.subr.mxu0 0.0
      %1279 = vmatpush1.msra.mxu0 0.0
      %1280 = vmatprep.subr.mxu0 0.0
      %1281 = vmatpush1.msra.mxu0 0.0
      %1282 = vmatprep.subr.mxu0 0.0
      %1283 = vmatpush1.msra.mxu0 0.0
      %1284 = vmatprep.subr.mxu0 0.0
      %1285 = vmatpush1.msra.mxu0 0.0
      %1286 = vmatprep.subr.mxu0 0.0
      %1287 = vmatpush1.msra.mxu0 0.0
      %1288 = vmatprep.subr.mxu0 0.0
      %1289 = vmatpush1.msra.mxu0 0.0
      %1290 = vmatprep.subr.mxu0 0.0
      %1291 = vmatpush1.msra.mxu0 0.0
      %1292 = vmatprep.subr.mxu0 0.0
      %1293 = vmatpush1.msra.mxu0 0.0
      %1294 = vmatprep.subr.mxu0 0.0
      %1295 = vmatpush1.msra.mxu0 0.0
      %1296 = vmatprep.subr.mxu0 0.0
      %1297 = vmatpush1.msra.mxu0 0.0
      %1298 = vmatprep.subr.mxu0 0.0
      %1299 = vmatpush1.msra.mxu0 0.0
      %1300 = vmatprep.subr.mxu0 0.0
      %1301 = vmatpush1.msra.mxu0 0.0
      %1302 = vmatprep.subr.mxu0 0.0
      %1303 = vmatpush1.msra.mxu0 0.0
      %1304 = vmatprep.subr.mxu0 0.0
      %1305 = vmatpush1.msra.mxu0 0.0
      %1306 = vmatprep.subr.mxu0 0.0
      %1307 = vmatpush1.msra.mxu0 0.0
      %1308 = vmatprep.subr.mxu0 0.0
      %1309 = vmatpush1.msra.mxu0 0.0
      %1310 = vmatprep.subr.mxu0 0.0
      %1311 = vmatpush1.msra.mxu0 0.0
      %1312 = vmatprep.subr.mxu0 0.0
      %1313 = vmatpush1.msra.mxu0 0.0
      %1314 = vmatprep.subr.mxu0 0.0
      %1315 = vmatpush1.msra.mxu0 0.0
      %1316 = vmatprep.subr.mxu0 0.0
      %1317 = vmatpush1.msra.mxu0 0.0
      %1318 = vmatprep.subr.mxu0 0.0
      %1319 = vmatpush1.msra.mxu0 0.0
      %1320 = vmatprep.subr.mxu0 0.0
      %1321 = vmatpush1.msra.mxu0 0.0
      %1322 = vmatprep.subr.mxu0 0.0
      %1323 = vmatpush1.msra.mxu0 0.0
      %1324 = vmatprep.subr.mxu0 0.0
      %1325 = vmatpush1.msra.mxu0 0.0
      %1326 = vmatprep.subr.mxu0 0.0
      %1327 = vmatpush1.msra.mxu0 0.0
      %1328 = vmatprep.subr.mxu0 0.0
      %1329 = vmatpush1.msra.mxu0 0.0
      %1330 = vmatprep.subr.mxu0 0.0
      %1331 = vmatpush1.msra.mxu0 0.0
      %1332 = vmatprep.mubr.f32.mxu0 0.0
      %1333 = vmatmul.mubr.f32.gmra.mrb[0].mxu0 %v1245
      %v1334 = vpop.f32.mrb[0].mxu0
      %v1335 = vadd.f32 0.0, %v1334
      %v1336 = vpop.f32.mrb[0].mxu0
      %1337 = vmatprep.mubr.f32.mxu0 0.0
      %1338 = vmatmul.mubr.f32.gmra.mrb[0].mxu0 %v1248
      %v1339 = vpop.f32.mrb[0].mxu0
      %v1340 = vadd.f32 0.0, %v1339
      %v1341 = vpop.f32.mrb[0].mxu0
      %1342 = vmatprep.mubr.f32.mxu0 0.0
      %1343 = vmatmul.mubr.f32.gmra.mrb[0].mxu0 %v1251
      %v1344 = vpop.f32.mrb[0].mxu0
      %v1345 = vadd.f32 0.0, %v1344
      %v1346 = vpop.f32.mrb[0].mxu0
      %1347 = vmatprep.mubr.f32.mxu0 0.0
      %1348 = vmatmul.mubr.f32.gmra.mrb[0].mxu0 %v1254
      %v1349 = vpop.f32.mrb[0].mxu0
      %v1350 = vadd.f32 0.0, %v1349
      %v1351 = vpop.f32.mrb[0].mxu0
      %1352 = vmatprep.mubr.f32.mxu0 0.0
      %1353 = vmatmul.mubr.f32.gmra.mrb[0].mxu0 %v1257
      %v1354 = vpop.f32.mrb[0].mxu0
      %v1355 = vadd.f32 0.0, %v1354
      %v1356 = vpop.f32.mrb[0].mxu0
      %1357 = vmatprep.mubr.f32.mxu0 0.0
      %1358 = vmatmul.mubr.f32.gmra.mrb[0].mxu0 %v1260
      %v1359 = vpop.f32.mrb[0].mxu0
      %v1360 = vadd.f32 0.0, %v1359
      %v1361 = vpop.f32.mrb[0].mxu0
      %1362 = vmatprep.mubr.f32.mxu0 0.0
      %1363 = vmatmul.mubr.f32.gmra.mrb[0].mxu0 %v1263
      %v1364 = vpop.f32.mrb[0].mxu0
      %v1365 = vadd.f32 0.0, %v1364
      %v1366 = vpop.f32.mrb[0].mxu0
      %1367 = vmatprep.mubr.f32.mxu0 0.0
      %1368 = vmatmul.mubr.f32.gmra.mrb[0].mxu0 %v1266
      %v1369 = vpop.f32.mrb[0].mxu0
      %v1370 = vadd.f32 0.0, %v1369
      %v1371 = vpop.f32.mrb[0].mxu0
      %1372 = vdwg.mxu0
      %v1373 = vadd.f32 %v1227, %v1335
      %v1374 = vadd.f32 %v1228, %v1340
      %v1375 = vadd.f32 %v1229, %v1345
      %v1376 = vadd.f32 %v1230, %v1350
      %v1377 = vadd.f32 %v1231, %v1355
      %v1378 = vadd.f32 %v1232, %v1360
      %v1379 = vadd.f32 %v1233, %v1365
      %v1380 = vadd.f32 %v1234, %v1370
      %1381 = vrot.lane.b32.xlu0 %v404, 1
      %v1382 = vpop.permute.xlu0 %1381
      %1383 = vrot.lane.b32.xlu0 %v405, 1
      %v1384 = vpop.permute.xlu0 %1383
      %1385 = vrot.lane.b32.xlu0 %v406, 1
      %v1386 = vpop.permute.xlu0 %1385
      %s1387 = scalar_lea.vmem %s1, 3
      %v1388 = vld [vmem:[%s1387] sm:$0x1]
      %v1390 = vlaneseq
      %v1391 = vshrl.u32 %v1390, 7
      %v1392 = vsub.s32 0, %v1391
      %v1393 = vrot.slane %v1388, %v1392
      %v1395 = vmul.f32 %v1382, %v1393
      %v1396 = vmul.f32 %v1384, %v1393
      %v1397 = vmul.f32 %v1386, %v1393
      %s1398 = scalar_lea.vmem %s2, 192
      %v1399 = vld [vmem:[%s1398] sm:$0xff]
      %v1400 = vld [vmem:[%s1398 + $0x8] sm:$0xff]
      %v1401 = vld [vmem:[%s1398 + $0x10] sm:$0xff]
      %v1402 = vld [vmem:[%s1398 + $0x18] sm:$0xff]
      %v1403 = vld [vmem:[%s1398 + $0x20] sm:$0xff]
      %v1404 = vld [vmem:[%s1398 + $0x28] sm:$0xff]
      %v1405 = vld [vmem:[%s1398 + $0x30] sm:$0xff]
      %v1406 = vld [vmem:[%s1398 + $0x38] sm:$0xff]
      %v1408 = vsel %vm479, %v1399, 0
      %v1411 = vsel %vm479, %v1400, 0
      %v1414 = vsel %vm479, %v1401, 0
      %v1417 = vsel %vm479, %v1402, 0
      %v1420 = vsel %vm479, %v1403, 0
      %v1423 = vsel %vm479, %v1404, 0
      %v1426 = vsel %vm479, %v1405, 0
      %v1429 = vsel %vm479, %v1406, 0
      %1431 = vmatprep.subr.mxu0 0.0
      %1432 = vmatpush1.msra.mxu0 %v1395
      %1433 = vmatprep.subr.mxu0 0.0
      %1434 = vmatpush1.msra.mxu0 0.0
      %1435 = vmatprep.subr.mxu0 0.0
      %1436 = vmatpush1.msra.mxu0 0.0
      %1437 = vmatprep.subr.mxu0 0.0
      %1438 = vmatpush1.msra.mxu0 0.0
      %1439 = vmatprep.subr.mxu0 0.0
      %1440 = vmatpush1.msra.mxu0 0.0
      %1441 = vmatprep.subr.mxu0 0.0
      %1442 = vmatpush1.msra.mxu0 0.0
      %1443 = vmatprep.subr.mxu0 0.0
      %1444 = vmatpush1.msra.mxu0 0.0
      %1445 = vmatprep.subr.mxu0 0.0
      %1446 = vmatpush1.msra.mxu0 0.0
      %1447 = vmatprep.subr.mxu0 0.0
      %1448 = vmatpush1.msra.mxu0 0.0
      %1449 = vmatprep.subr.mxu0 0.0
      %1450 = vmatpush1.msra.mxu0 0.0
      %1451 = vmatprep.subr.mxu0 0.0
      %1452 = vmatpush1.msra.mxu0 0.0
      %1453 = vmatprep.subr.mxu0 0.0
      %1454 = vmatpush1.msra.mxu0 0.0
      %1455 = vmatprep.subr.mxu0 0.0
      %1456 = vmatpush1.msra.mxu0 0.0
      %1457 = vmatprep.subr.mxu0 0.0
      %1458 = vmatpush1.msra.mxu0 0.0
      %1459 = vmatprep.subr.mxu0 0.0
      %1460 = vmatpush1.msra.mxu0 0.0
      %1461 = vmatprep.subr.mxu0 0.0
      %1462 = vmatpush1.msra.mxu0 0.0
      %1463 = vmatprep.subr.mxu0 0.0
      %1464 = vmatpush1.msra.mxu0 0.0
      %1465 = vmatprep.subr.mxu0 0.0
      %1466 = vmatpush1.msra.mxu0 0.0
      %1467 = vmatprep.subr.mxu0 0.0
      %1468 = vmatpush1.msra.mxu0 0.0
      %1469 = vmatprep.subr.mxu0 0.0
      %1470 = vmatpush1.msra.mxu0 0.0
      %1471 = vmatprep.subr.mxu0 0.0
      %1472 = vmatpush1.msra.mxu0 0.0
      %1473 = vmatprep.subr.mxu0 0.0
      %1474 = vmatpush1.msra.mxu0 0.0
      %1475 = vmatprep.subr.mxu0 0.0
      %1476 = vmatpush1.msra.mxu0 0.0
      %1477 = vmatprep.subr.mxu0 0.0
      %1478 = vmatpush1.msra.mxu0 0.0
      %1479 = vmatprep.subr.mxu0 0.0
      %1480 = vmatpush1.msra.mxu0 0.0
      %1481 = vmatprep.subr.mxu0 0.0
      %1482 = vmatpush1.msra.mxu0 0.0
      %1483 = vmatprep.subr.mxu0 0.0
      %1484 = vmatpush1.msra.mxu0 0.0
      %1485 = vmatprep.subr.mxu0 0.0
      %1486 = vmatpush1.msra.mxu0 0.0
      %1487 = vmatprep.subr.mxu0 0.0
      %1488 = vmatpush1.msra.mxu0 0.0
      %1489 = vmatprep.subr.mxu0 0.0
      %1490 = vmatpush1.msra.mxu0 0.0
      %1491 = vmatprep.subr.mxu0 0.0
      %1492 = vmatpush1.msra.mxu0 0.0
      %1493 = vmatprep.subr.mxu0 0.0
      %1494 = vmatpush1.msra.mxu0 0.0
      %1495 = vmatprep.mubr.f32.mxu0 0.0
      %1496 = vmatmul.mubr.f32.gmra.mrb[0].mxu0 %v1408
      %v1497 = vpop.f32.mrb[0].mxu0
      %v1498 = vadd.f32 0.0, %v1497
      %v1499 = vpop.f32.mrb[0].mxu0
      %1500 = vmatprep.mubr.f32.mxu0 0.0
      %1501 = vmatmul.mubr.f32.gmra.mrb[0].mxu0 %v1411
      %v1502 = vpop.f32.mrb[0].mxu0
      %v1503 = vadd.f32 0.0, %v1502
      %v1504 = vpop.f32.mrb[0].mxu0
      %1505 = vmatprep.mubr.f32.mxu0 0.0
      %1506 = vmatmul.mubr.f32.gmra.mrb[0].mxu0 %v1414
      %v1507 = vpop.f32.mrb[0].mxu0
      %v1508 = vadd.f32 0.0, %v1507
      %v1509 = vpop.f32.mrb[0].mxu0
      %1510 = vmatprep.mubr.f32.mxu0 0.0
      %1511 = vmatmul.mubr.f32.gmra.mrb[0].mxu0 %v1417
      %v1512 = vpop.f32.mrb[0].mxu0
      %v1513 = vadd.f32 0.0, %v1512
      %v1514 = vpop.f32.mrb[0].mxu0
      %1515 = vmatprep.mubr.f32.mxu0 0.0
      %1516 = vmatmul.mubr.f32.gmra.mrb[0].mxu0 %v1420
      %v1517 = vpop.f32.mrb[0].mxu0
      %v1518 = vadd.f32 0.0, %v1517
      %v1519 = vpop.f32.mrb[0].mxu0
      %1520 = vmatprep.mubr.f32.mxu0 0.0
      %1521 = vmatmul.mubr.f32.gmra.mrb[0].mxu0 %v1423
      %v1522 = vpop.f32.mrb[0].mxu0
      %v1523 = vadd.f32 0.0, %v1522
      %v1524 = vpop.f32.mrb[0].mxu0
      %1525 = vmatprep.mubr.f32.mxu0 0.0
      %1526 = vmatmul.mubr.f32.gmra.mrb[0].mxu0 %v1426
      %v1527 = vpop.f32.mrb[0].mxu0
      %v1528 = vadd.f32 0.0, %v1527
      %v1529 = vpop.f32.mrb[0].mxu0
      %1530 = vmatprep.mubr.f32.mxu0 0.0
      %1531 = vmatmul.mubr.f32.gmra.mrb[0].mxu0 %v1429
      %v1532 = vpop.f32.mrb[0].mxu0
      %v1533 = vadd.f32 0.0, %v1532
      %v1534 = vpop.f32.mrb[0].mxu0
      %1535 = vdwg.mxu0
      %v1536 = vadd.f32 %v1373, %v1498
      %v1537 = vadd.f32 %v1374, %v1503
      %v1538 = vadd.f32 %v1375, %v1508
      %v1539 = vadd.f32 %v1376, %v1513
      %v1540 = vadd.f32 %v1377, %v1518
      %v1541 = vadd.f32 %v1378, %v1523
      %v1542 = vadd.f32 %v1379, %v1528
      %v1543 = vadd.f32 %v1380, %v1533
      %s1544 = scalar_lea.vmem %s3, 192
      %v1545 = vld [vmem:[%s1544] sm:$0xff]
      %v1546 = vld [vmem:[%s1544 + $0x8] sm:$0xff]
      %v1547 = vld [vmem:[%s1544 + $0x10] sm:$0xff]
      %v1548 = vld [vmem:[%s1544 + $0x18] sm:$0xff]
      %v1549 = vld [vmem:[%s1544 + $0x20] sm:$0xff]
      %v1550 = vld [vmem:[%s1544 + $0x28] sm:$0xff]
      %v1551 = vld [vmem:[%s1544 + $0x30] sm:$0xff]
      %v1552 = vld [vmem:[%s1544 + $0x38] sm:$0xff]
      %v1554 = vsel %vm625, %v1545, 0
      %v1557 = vsel %vm625, %v1546, 0
      %v1560 = vsel %vm625, %v1547, 0
      %v1563 = vsel %vm625, %v1548, 0
      %v1566 = vsel %vm625, %v1549, 0
      %v1569 = vsel %vm625, %v1550, 0
      %v1572 = vsel %vm625, %v1551, 0
      %v1575 = vsel %vm625, %v1552, 0
      %1577 = vmatprep.subr.mxu0 0.0
      %1578 = vmatpush1.msra.mxu0 %v1396
      %1579 = vmatprep.subr.mxu0 0.0
      %1580 = vmatpush1.msra.mxu0 %v1397
      %1581 = vmatprep.subr.mxu0 0.0
      %1582 = vmatpush1.msra.mxu0 0.0
      %1583 = vmatprep.subr.mxu0 0.0
      %1584 = vmatpush1.msra.mxu0 0.0
      %1585 = vmatprep.subr.mxu0 0.0
      %1586 = vmatpush1.msra.mxu0 0.0
      %1587 = vmatprep.subr.mxu0 0.0
      %1588 = vmatpush1.msra.mxu0 0.0
      %1589 = vmatprep.subr.mxu0 0.0
      %1590 = vmatpush1.msra.mxu0 0.0
      %1591 = vmatprep.subr.mxu0 0.0
      %1592 = vmatpush1.msra.mxu0 0.0
      %1593 = vmatprep.subr.mxu0 0.0
      %1594 = vmatpush1.msra.mxu0 0.0
      %1595 = vmatprep.subr.mxu0 0.0
      %1596 = vmatpush1.msra.mxu0 0.0
      %1597 = vmatprep.subr.mxu0 0.0
      %1598 = vmatpush1.msra.mxu0 0.0
      %1599 = vmatprep.subr.mxu0 0.0
      %1600 = vmatpush1.msra.mxu0 0.0
      %1601 = vmatprep.subr.mxu0 0.0
      %1602 = vmatpush1.msra.mxu0 0.0
      %1603 = vmatprep.subr.mxu0 0.0
      %1604 = vmatpush1.msra.mxu0 0.0
      %1605 = vmatprep.subr.mxu0 0.0
      %1606 = vmatpush1.msra.mxu0 0.0
      %1607 = vmatprep.subr.mxu0 0.0
      %1608 = vmatpush1.msra.mxu0 0.0
      %1609 = vmatprep.subr.mxu0 0.0
      %1610 = vmatpush1.msra.mxu0 0.0
      %1611 = vmatprep.subr.mxu0 0.0
      %1612 = vmatpush1.msra.mxu0 0.0
      %1613 = vmatprep.subr.mxu0 0.0
      %1614 = vmatpush1.msra.mxu0 0.0
      %1615 = vmatprep.subr.mxu0 0.0
      %1616 = vmatpush1.msra.mxu0 0.0
      %1617 = vmatprep.subr.mxu0 0.0
      %1618 = vmatpush1.msra.mxu0 0.0
      %1619 = vmatprep.subr.mxu0 0.0
      %1620 = vmatpush1.msra.mxu0 0.0
      %1621 = vmatprep.subr.mxu0 0.0
      %1622 = vmatpush1.msra.mxu0 0.0
      %1623 = vmatprep.subr.mxu0 0.0
      %1624 = vmatpush1.msra.mxu0 0.0
      %1625 = vmatprep.subr.mxu0 0.0
      %1626 = vmatpush1.msra.mxu0 0.0
      %1627 = vmatprep.subr.mxu0 0.0
      %1628 = vmatpush1.msra.mxu0 0.0
      %1629 = vmatprep.subr.mxu0 0.0
      %1630 = vmatpush1.msra.mxu0 0.0
      %1631 = vmatprep.subr.mxu0 0.0
      %1632 = vmatpush1.msra.mxu0 0.0
      %1633 = vmatprep.subr.mxu0 0.0
      %1634 = vmatpush1.msra.mxu0 0.0
      %1635 = vmatprep.subr.mxu0 0.0
      %1636 = vmatpush1.msra.mxu0 0.0
      %1637 = vmatprep.subr.mxu0 0.0
      %1638 = vmatpush1.msra.mxu0 0.0
      %1639 = vmatprep.subr.mxu0 0.0
      %1640 = vmatpush1.msra.mxu0 0.0
      %1641 = vmatprep.mubr.f32.mxu0 0.0
      %1642 = vmatmul.mubr.f32.gmra.mrb[0].mxu0 %v1554
      %v1643 = vpop.f32.mrb[0].mxu0
      %v1644 = vadd.f32 0.0, %v1643
      %v1645 = vpop.f32.mrb[0].mxu0
      %1646 = vmatprep.mubr.f32.mxu0 0.0
      %1647 = vmatmul.mubr.f32.gmra.mrb[0].mxu0 %v1557
      %v1648 = vpop.f32.mrb[0].mxu0
      %v1649 = vadd.f32 0.0, %v1648
      %v1650 = vpop.f32.mrb[0].mxu0
      %1651 = vmatprep.mubr.f32.mxu0 0.0
      %1652 = vmatmul.mubr.f32.gmra.mrb[0].mxu0 %v1560
      %v1653 = vpop.f32.mrb[0].mxu0
      %v1654 = vadd.f32 0.0, %v1653
      %v1655 = vpop.f32.mrb[0].mxu0
      %1656 = vmatprep.mubr.f32.mxu0 0.0
      %1657 = vmatmul.mubr.f32.gmra.mrb[0].mxu0 %v1563
      %v1658 = vpop.f32.mrb[0].mxu0
      %v1659 = vadd.f32 0.0, %v1658
      %v1660 = vpop.f32.mrb[0].mxu0
      %1661 = vmatprep.mubr.f32.mxu0 0.0
      %1662 = vmatmul.mubr.f32.gmra.mrb[0].mxu0 %v1566
      %v1663 = vpop.f32.mrb[0].mxu0
      %v1664 = vadd.f32 0.0, %v1663
      %v1665 = vpop.f32.mrb[0].mxu0
      %1666 = vmatprep.mubr.f32.mxu0 0.0
      %1667 = vmatmul.mubr.f32.gmra.mrb[0].mxu0 %v1569
      %v1668 = vpop.f32.mrb[0].mxu0
      %v1669 = vadd.f32 0.0, %v1668
      %v1670 = vpop.f32.mrb[0].mxu0
      %1671 = vmatprep.mubr.f32.mxu0 0.0
      %1672 = vmatmul.mubr.f32.gmra.mrb[0].mxu0 %v1572
      %v1673 = vpop.f32.mrb[0].mxu0
      %v1674 = vadd.f32 0.0, %v1673
      %v1675 = vpop.f32.mrb[0].mxu0
      %1676 = vmatprep.mubr.f32.mxu0 0.0
      %1677 = vmatmul.mubr.f32.gmra.mrb[0].mxu0 %v1575
      %v1678 = vpop.f32.mrb[0].mxu0
      %v1679 = vadd.f32 0.0, %v1678
      %v1680 = vpop.f32.mrb[0].mxu0
      %1681 = vdwg.mxu0
      %v1682 = vadd.f32 %v1536, %v1644
      %v1683 = vadd.f32 %v1537, %v1649
      %v1684 = vadd.f32 %v1538, %v1654
      %v1685 = vadd.f32 %v1539, %v1659
      %v1686 = vadd.f32 %v1540, %v1664
      %v1687 = vadd.f32 %v1541, %v1669
      %v1688 = vadd.f32 %v1542, %v1674
      %v1689 = vadd.f32 %v1543, %v1679
      %s1690 = scalar_lea.vmem %s2, 256
      %v1691 = vld [vmem:[%s1690] sm:$0xff]
      %v1692 = vld [vmem:[%s1690 + $0x8] sm:$0xff]
      %v1693 = vld [vmem:[%s1690 + $0x10] sm:$0xff]
      %v1694 = vld [vmem:[%s1690 + $0x18] sm:$0xff]
      %v1695 = vld [vmem:[%s1690 + $0x20] sm:$0xff]
      %v1696 = vld [vmem:[%s1690 + $0x28] sm:$0xff]
      %v1697 = vld [vmem:[%s1690 + $0x30] sm:$0xff]
      %v1698 = vld [vmem:[%s1690 + $0x38] sm:$0xff]
      %v1700 = vsel %vm479, %v1691, 0
      %v1703 = vsel %vm479, %v1692, 0
      %v1706 = vsel %vm479, %v1693, 0
      %v1709 = vsel %vm479, %v1694, 0
      %v1712 = vsel %vm479, %v1695, 0
      %v1715 = vsel %vm479, %v1696, 0
      %v1718 = vsel %vm479, %v1697, 0
      %v1721 = vsel %vm479, %v1698, 0
      %1723 = vmatprep.subr.mxu0 0.0
      %1724 = vmatpush1.msra.mxu0 %v404
      %1725 = vmatprep.subr.mxu0 0.0
      %1726 = vmatpush1.msra.mxu0 0.0
      %1727 = vmatprep.subr.mxu0 0.0
      %1728 = vmatpush1.msra.mxu0 0.0
      %1729 = vmatprep.subr.mxu0 0.0
      %1730 = vmatpush1.msra.mxu0 0.0
      %1731 = vmatprep.subr.mxu0 0.0
      %1732 = vmatpush1.msra.mxu0 0.0
      %1733 = vmatprep.subr.mxu0 0.0
      %1734 = vmatpush1.msra.mxu0 0.0
      %1735 = vmatprep.subr.mxu0 0.0
      %1736 = vmatpush1.msra.mxu0 0.0
      %1737 = vmatprep.subr.mxu0 0.0
      %1738 = vmatpush1.msra.mxu0 0.0
      %1739 = vmatprep.subr.mxu0 0.0
      %1740 = vmatpush1.msra.mxu0 0.0
      %1741 = vmatprep.subr.mxu0 0.0
      %1742 = vmatpush1.msra.mxu0 0.0
      %1743 = vmatprep.subr.mxu0 0.0
      %1744 = vmatpush1.msra.mxu0 0.0
      %1745 = vmatprep.subr.mxu0 0.0
      %1746 = vmatpush1.msra.mxu0 0.0
      %1747 = vmatprep.subr.mxu0 0.0
      %1748 = vmatpush1.msra.mxu0 0.0
      %1749 = vmatprep.subr.mxu0 0.0
      %1750 = vmatpush1.msra.mxu0 0.0
      %1751 = vmatprep.subr.mxu0 0.0
      %1752 = vmatpush1.msra.mxu0 0.0
      %1753 = vmatprep.subr.mxu0 0.0
      %1754 = vmatpush1.msra.mxu0 0.0
      %1755 = vmatprep.subr.mxu0 0.0
      %1756 = vmatpush1.msra.mxu0 0.0
      %1757 = vmatprep.subr.mxu0 0.0
      %1758 = vmatpush1.msra.mxu0 0.0
      %1759 = vmatprep.subr.mxu0 0.0
      %1760 = vmatpush1.msra.mxu0 0.0
      %1761 = vmatprep.subr.mxu0 0.0
      %1762 = vmatpush1.msra.mxu0 0.0
      %1763 = vmatprep.subr.mxu0 0.0
      %1764 = vmatpush1.msra.mxu0 0.0
      %1765 = vmatprep.subr.mxu0 0.0
      %1766 = vmatpush1.msra.mxu0 0.0
      %1767 = vmatprep.subr.mxu0 0.0
      %1768 = vmatpush1.msra.mxu0 0.0
      %1769 = vmatprep.subr.mxu0 0.0
      %1770 = vmatpush1.msra.mxu0 0.0
      %1771 = vmatprep.subr.mxu0 0.0
      %1772 = vmatpush1.msra.mxu0 0.0
      %1773 = vmatprep.subr.mxu0 0.0
      %1774 = vmatpush1.msra.mxu0 0.0
      %1775 = vmatprep.subr.mxu0 0.0
      %1776 = vmatpush1.msra.mxu0 0.0
      %1777 = vmatprep.subr.mxu0 0.0
      %1778 = vmatpush1.msra.mxu0 0.0
      %1779 = vmatprep.subr.mxu0 0.0
      %1780 = vmatpush1.msra.mxu0 0.0
      %1781 = vmatprep.subr.mxu0 0.0
      %1782 = vmatpush1.msra.mxu0 0.0
      %1783 = vmatprep.subr.mxu0 0.0
      %1784 = vmatpush1.msra.mxu0 0.0
      %1785 = vmatprep.subr.mxu0 0.0
      %1786 = vmatpush1.msra.mxu0 0.0
      %1787 = vmatprep.mubr.f32.mxu0 0.0
      %1788 = vmatmul.mubr.f32.gmra.mrb[0].mxu0 %v1700
      %v1789 = vpop.f32.mrb[0].mxu0
      %v1790 = vadd.f32 0.0, %v1789
      %v1791 = vpop.f32.mrb[0].mxu0
      %1792 = vmatprep.mubr.f32.mxu0 0.0
      %1793 = vmatmul.mubr.f32.gmra.mrb[0].mxu0 %v1703
      %v1794 = vpop.f32.mrb[0].mxu0
      %v1795 = vadd.f32 0.0, %v1794
      %v1796 = vpop.f32.mrb[0].mxu0
      %1797 = vmatprep.mubr.f32.mxu0 0.0
      %1798 = vmatmul.mubr.f32.gmra.mrb[0].mxu0 %v1706
      %v1799 = vpop.f32.mrb[0].mxu0
      %v1800 = vadd.f32 0.0, %v1799
      %v1801 = vpop.f32.mrb[0].mxu0
      %1802 = vmatprep.mubr.f32.mxu0 0.0
      %1803 = vmatmul.mubr.f32.gmra.mrb[0].mxu0 %v1709
      %v1804 = vpop.f32.mrb[0].mxu0
      %v1805 = vadd.f32 0.0, %v1804
      %v1806 = vpop.f32.mrb[0].mxu0
      %1807 = vmatprep.mubr.f32.mxu0 0.0
      %1808 = vmatmul.mubr.f32.gmra.mrb[0].mxu0 %v1712
      %v1809 = vpop.f32.mrb[0].mxu0
      %v1810 = vadd.f32 0.0, %v1809
      %v1811 = vpop.f32.mrb[0].mxu0
      %1812 = vmatprep.mubr.f32.mxu0 0.0
      %1813 = vmatmul.mubr.f32.gmra.mrb[0].mxu0 %v1715
      %v1814 = vpop.f32.mrb[0].mxu0
      %v1815 = vadd.f32 0.0, %v1814
      %v1816 = vpop.f32.mrb[0].mxu0
      %1817 = vmatprep.mubr.f32.mxu0 0.0
      %1818 = vmatmul.mubr.f32.gmra.mrb[0].mxu0 %v1718
      %v1819 = vpop.f32.mrb[0].mxu0
      %v1820 = vadd.f32 0.0, %v1819
      %v1821 = vpop.f32.mrb[0].mxu0
      %1822 = vmatprep.mubr.f32.mxu0 0.0
      %1823 = vmatmul.mubr.f32.gmra.mrb[0].mxu0 %v1721
      %v1824 = vpop.f32.mrb[0].mxu0
      %v1825 = vadd.f32 0.0, %v1824
      %v1826 = vpop.f32.mrb[0].mxu0
      %1827 = vdwg.mxu0
      %v1828 = vadd.f32 %v1682, %v1790
      %v1829 = vadd.f32 %v1683, %v1795
      %v1830 = vadd.f32 %v1684, %v1800
      %v1831 = vadd.f32 %v1685, %v1805
      %v1832 = vadd.f32 %v1686, %v1810
      %v1833 = vadd.f32 %v1687, %v1815
      %v1834 = vadd.f32 %v1688, %v1820
      %v1835 = vadd.f32 %v1689, %v1825
      %s1836 = scalar_lea.vmem %s3, 256
      %v1837 = vld [vmem:[%s1836] sm:$0xff]
      %v1838 = vld [vmem:[%s1836 + $0x8] sm:$0xff]
      %v1839 = vld [vmem:[%s1836 + $0x10] sm:$0xff]
      %v1840 = vld [vmem:[%s1836 + $0x18] sm:$0xff]
      %v1841 = vld [vmem:[%s1836 + $0x20] sm:$0xff]
      %v1842 = vld [vmem:[%s1836 + $0x28] sm:$0xff]
      %v1843 = vld [vmem:[%s1836 + $0x30] sm:$0xff]
      %v1844 = vld [vmem:[%s1836 + $0x38] sm:$0xff]
      %v1846 = vsel %vm625, %v1837, 0
      %v1849 = vsel %vm625, %v1838, 0
      %v1852 = vsel %vm625, %v1839, 0
      %v1855 = vsel %vm625, %v1840, 0
      %v1858 = vsel %vm625, %v1841, 0
      %v1861 = vsel %vm625, %v1842, 0
      %v1864 = vsel %vm625, %v1843, 0
      %v1867 = vsel %vm625, %v1844, 0
      %1869 = vmatprep.subr.mxu0 0.0
      %1870 = vmatpush1.msra.mxu0 %v405
      %1871 = vmatprep.subr.mxu0 0.0
      %1872 = vmatpush1.msra.mxu0 %v406
      %1873 = vmatprep.subr.mxu0 0.0
      %1874 = vmatpush1.msra.mxu0 0.0
      %1875 = vmatprep.subr.mxu0 0.0
      %1876 = vmatpush1.msra.mxu0 0.0
      %1877 = vmatprep.subr.mxu0 0.0
      %1878 = vmatpush1.msra.mxu0 0.0
      %1879 = vmatprep.subr.mxu0 0.0
      %1880 = vmatpush1.msra.mxu0 0.0
      %1881 = vmatprep.subr.mxu0 0.0
      %1882 = vmatpush1.msra.mxu0 0.0
      %1883 = vmatprep.subr.mxu0 0.0
      %1884 = vmatpush1.msra.mxu0 0.0
      %1885 = vmatprep.subr.mxu0 0.0
      %1886 = vmatpush1.msra.mxu0 0.0
      %1887 = vmatprep.subr.mxu0 0.0
      %1888 = vmatpush1.msra.mxu0 0.0
      %1889 = vmatprep.subr.mxu0 0.0
      %1890 = vmatpush1.msra.mxu0 0.0
      %1891 = vmatprep.subr.mxu0 0.0
      %1892 = vmatpush1.msra.mxu0 0.0
      %1893 = vmatprep.subr.mxu0 0.0
      %1894 = vmatpush1.msra.mxu0 0.0
      %1895 = vmatprep.subr.mxu0 0.0
      %1896 = vmatpush1.msra.mxu0 0.0
      %1897 = vmatprep.subr.mxu0 0.0
      %1898 = vmatpush1.msra.mxu0 0.0
      %1899 = vmatprep.subr.mxu0 0.0
      %1900 = vmatpush1.msra.mxu0 0.0
      %1901 = vmatprep.subr.mxu0 0.0
      %1902 = vmatpush1.msra.mxu0 0.0
      %1903 = vmatprep.subr.mxu0 0.0
      %1904 = vmatpush1.msra.mxu0 0.0
      %1905 = vmatprep.subr.mxu0 0.0
      %1906 = vmatpush1.msra.mxu0 0.0
      %1907 = vmatprep.subr.mxu0 0.0
      %1908 = vmatpush1.msra.mxu0 0.0
      %1909 = vmatprep.subr.mxu0 0.0
      %1910 = vmatpush1.msra.mxu0 0.0
      %1911 = vmatprep.subr.mxu0 0.0
      %1912 = vmatpush1.msra.mxu0 0.0
      %1913 = vmatprep.subr.mxu0 0.0
      %1914 = vmatpush1.msra.mxu0 0.0
      %1915 = vmatprep.subr.mxu0 0.0
      %1916 = vmatpush1.msra.mxu0 0.0
      %1917 = vmatprep.subr.mxu0 0.0
      %1918 = vmatpush1.msra.mxu0 0.0
      %1919 = vmatprep.subr.mxu0 0.0
      %1920 = vmatpush1.msra.mxu0 0.0
      %1921 = vmatprep.subr.mxu0 0.0
      %1922 = vmatpush1.msra.mxu0 0.0
      %1923 = vmatprep.subr.mxu0 0.0
      %1924 = vmatpush1.msra.mxu0 0.0
      %1925 = vmatprep.subr.mxu0 0.0
      %1926 = vmatpush1.msra.mxu0 0.0
      %1927 = vmatprep.subr.mxu0 0.0
      %1928 = vmatpush1.msra.mxu0 0.0
      %1929 = vmatprep.subr.mxu0 0.0
      %1930 = vmatpush1.msra.mxu0 0.0
      %1931 = vmatprep.subr.mxu0 0.0
      %1932 = vmatpush1.msra.mxu0 0.0
      %1933 = vmatprep.mubr.f32.mxu0 0.0
      %1934 = vmatmul.mubr.f32.gmra.mrb[0].mxu0 %v1846
      %v1935 = vpop.f32.mrb[0].mxu0
      %v1936 = vadd.f32 0.0, %v1935
      %v1937 = vpop.f32.mrb[0].mxu0
      %1938 = vmatprep.mubr.f32.mxu0 0.0
      %1939 = vmatmul.mubr.f32.gmra.mrb[0].mxu0 %v1849
      %v1940 = vpop.f32.mrb[0].mxu0
      %v1941 = vadd.f32 0.0, %v1940
      %v1942 = vpop.f32.mrb[0].mxu0
      %1943 = vmatprep.mubr.f32.mxu0 0.0
      %1944 = vmatmul.mubr.f32.gmra.mrb[0].mxu0 %v1852
      %v1945 = vpop.f32.mrb[0].mxu0
      %v1946 = vadd.f32 0.0, %v1945
      %v1947 = vpop.f32.mrb[0].mxu0
      %1948 = vmatprep.mubr.f32.mxu0 0.0
      %1949 = vmatmul.mubr.f32.gmra.mrb[0].mxu0 %v1855
      %v1950 = vpop.f32.mrb[0].mxu0
      %v1951 = vadd.f32 0.0, %v1950
      %v1952 = vpop.f32.mrb[0].mxu0
      %1953 = vmatprep.mubr.f32.mxu0 0.0
      %1954 = vmatmul.mubr.f32.gmra.mrb[0].mxu0 %v1858
      %v1955 = vpop.f32.mrb[0].mxu0
      %v1956 = vadd.f32 0.0, %v1955
      %v1957 = vpop.f32.mrb[0].mxu0
      %1958 = vmatprep.mubr.f32.mxu0 0.0
      %1959 = vmatmul.mubr.f32.gmra.mrb[0].mxu0 %v1861
      %v1960 = vpop.f32.mrb[0].mxu0
      %v1961 = vadd.f32 0.0, %v1960
      %v1962 = vpop.f32.mrb[0].mxu0
      %1963 = vmatprep.mubr.f32.mxu0 0.0
      %1964 = vmatmul.mubr.f32.gmra.mrb[0].mxu0 %v1864
      %v1965 = vpop.f32.mrb[0].mxu0
      %v1966 = vadd.f32 0.0, %v1965
      %v1967 = vpop.f32.mrb[0].mxu0
      %1968 = vmatprep.mubr.f32.mxu0 0.0
      %1969 = vmatmul.mubr.f32.gmra.mrb[0].mxu0 %v1867
      %v1970 = vpop.f32.mrb[0].mxu0
      %v1971 = vadd.f32 0.0, %v1970
      %v1972 = vpop.f32.mrb[0].mxu0
      %1973 = vdwg.mxu0
      %v1974 = vadd.f32 %v1828, %v1936
      %v1975 = vadd.f32 %v1829, %v1941
      %v1976 = vadd.f32 %v1830, %v1946
      %v1977 = vadd.f32 %v1831, %v1951
      %v1978 = vadd.f32 %v1832, %v1956
      %v1979 = vadd.f32 %v1833, %v1961
      %v1980 = vadd.f32 %v1834, %v1966
      %v1981 = vadd.f32 %v1835, %v1971
      %1982 = vrot.lane.b32.xlu0 %v404, 127
      %v1983 = vpop.permute.xlu0 %1982
      %1984 = vrot.lane.b32.xlu0 %v405, 127
      %v1985 = vpop.permute.xlu0 %1984
      %1986 = vrot.lane.b32.xlu0 %v406, 127
      %v1987 = vpop.permute.xlu0 %1986
      %s1988 = scalar_lea.vmem %s1, 5
      %v1989 = vld [vmem:[%s1988] sm:$0x1]
      %v1991 = vlaneseq
      %v1992 = vshrl.u32 %v1991, 7
      %v1993 = vsub.s32 0, %v1992
      %v1994 = vrot.slane %v1989, %v1993
      %v1996 = vmul.f32 %v1983, %v1994
      %v1997 = vmul.f32 %v1985, %v1994
      %v1998 = vmul.f32 %v1987, %v1994
      %s1999 = scalar_lea.vmem %s2, 320
      %v2000 = vld [vmem:[%s1999] sm:$0xff]
      %v2001 = vld [vmem:[%s1999 + $0x8] sm:$0xff]
      %v2002 = vld [vmem:[%s1999 + $0x10] sm:$0xff]
      %v2003 = vld [vmem:[%s1999 + $0x18] sm:$0xff]
      %v2004 = vld [vmem:[%s1999 + $0x20] sm:$0xff]
      %v2005 = vld [vmem:[%s1999 + $0x28] sm:$0xff]
      %v2006 = vld [vmem:[%s1999 + $0x30] sm:$0xff]
      %v2007 = vld [vmem:[%s1999 + $0x38] sm:$0xff]
      %v2009 = vsel %vm479, %v2000, 0
      %v2012 = vsel %vm479, %v2001, 0
      %v2015 = vsel %vm479, %v2002, 0
      %v2018 = vsel %vm479, %v2003, 0
      %v2021 = vsel %vm479, %v2004, 0
      %v2024 = vsel %vm479, %v2005, 0
      %v2027 = vsel %vm479, %v2006, 0
      %v2030 = vsel %vm479, %v2007, 0
      %2032 = vmatprep.subr.mxu0 0.0
      %2033 = vmatpush1.msra.mxu0 %v1996
      %2034 = vmatprep.subr.mxu0 0.0
      %2035 = vmatpush1.msra.mxu0 0.0
      %2036 = vmatprep.subr.mxu0 0.0
      %2037 = vmatpush1.msra.mxu0 0.0
      %2038 = vmatprep.subr.mxu0 0.0
      %2039 = vmatpush1.msra.mxu0 0.0
      %2040 = vmatprep.subr.mxu0 0.0
      %2041 = vmatpush1.msra.mxu0 0.0
      %2042 = vmatprep.subr.mxu0 0.0
      %2043 = vmatpush1.msra.mxu0 0.0
      %2044 = vmatprep.subr.mxu0 0.0
      %2045 = vmatpush1.msra.mxu0 0.0
      %2046 = vmatprep.subr.mxu0 0.0
      %2047 = vmatpush1.msra.mxu0 0.0
      %2048 = vmatprep.subr.mxu0 0.0
      %2049 = vmatpush1.msra.mxu0 0.0
      %2050 = vmatprep.subr.mxu0 0.0
      %2051 = vmatpush1.msra.mxu0 0.0
      %2052 = vmatprep.subr.mxu0 0.0
      %2053 = vmatpush1.msra.mxu0 0.0
      %2054 = vmatprep.subr.mxu0 0.0
      %2055 = vmatpush1.msra.mxu0 0.0
      %2056 = vmatprep.subr.mxu0 0.0
      %2057 = vmatpush1.msra.mxu0 0.0
      %2058 = vmatprep.subr.mxu0 0.0
      %2059 = vmatpush1.msra.mxu0 0.0
      %2060 = vmatprep.subr.mxu0 0.0
      %2061 = vmatpush1.msra.mxu0 0.0
      %2062 = vmatprep.subr.mxu0 0.0
      %2063 = vmatpush1.msra.mxu0 0.0
      %2064 = vmatprep.subr.mxu0 0.0
      %2065 = vmatpush1.msra.mxu0 0.0
      %2066 = vmatprep.subr.mxu0 0.0
      %2067 = vmatpush1.msra.mxu0 0.0
      %2068 = vmatprep.subr.mxu0 0.0
      %2069 = vmatpush1.msra.mxu0 0.0
      %2070 = vmatprep.subr.mxu0 0.0
      %2071 = vmatpush1.msra.mxu0 0.0
      %2072 = vmatprep.subr.mxu0 0.0
      %2073 = vmatpush1.msra.mxu0 0.0
      %2074 = vmatprep.subr.mxu0 0.0
      %2075 = vmatpush1.msra.mxu0 0.0
      %2076 = vmatprep.subr.mxu0 0.0
      %2077 = vmatpush1.msra.mxu0 0.0
      %2078 = vmatprep.subr.mxu0 0.0
      %2079 = vmatpush1.msra.mxu0 0.0
      %2080 = vmatprep.subr.mxu0 0.0
      %2081 = vmatpush1.msra.mxu0 0.0
      %2082 = vmatprep.subr.mxu0 0.0
      %2083 = vmatpush1.msra.mxu0 0.0
      %2084 = vmatprep.subr.mxu0 0.0
      %2085 = vmatpush1.msra.mxu0 0.0
      %2086 = vmatprep.subr.mxu0 0.0
      %2087 = vmatpush1.msra.mxu0 0.0
      %2088 = vmatprep.subr.mxu0 0.0
      %2089 = vmatpush1.msra.mxu0 0.0
      %2090 = vmatprep.subr.mxu0 0.0
      %2091 = vmatpush1.msra.mxu0 0.0
      %2092 = vmatprep.subr.mxu0 0.0
      %2093 = vmatpush1.msra.mxu0 0.0
      %2094 = vmatprep.subr.mxu0 0.0
      %2095 = vmatpush1.msra.mxu0 0.0
      %2096 = vmatprep.mubr.f32.mxu0 0.0
      %2097 = vmatmul.mubr.f32.gmra.mrb[0].mxu0 %v2009
      %v2098 = vpop.f32.mrb[0].mxu0
      %v2099 = vadd.f32 0.0, %v2098
      %v2100 = vpop.f32.mrb[0].mxu0
      %2101 = vmatprep.mubr.f32.mxu0 0.0
      %2102 = vmatmul.mubr.f32.gmra.mrb[0].mxu0 %v2012
      %v2103 = vpop.f32.mrb[0].mxu0
      %v2104 = vadd.f32 0.0, %v2103
      %v2105 = vpop.f32.mrb[0].mxu0
      %2106 = vmatprep.mubr.f32.mxu0 0.0
      %2107 = vmatmul.mubr.f32.gmra.mrb[0].mxu0 %v2015
      %v2108 = vpop.f32.mrb[0].mxu0
      %v2109 = vadd.f32 0.0, %v2108
      %v2110 = vpop.f32.mrb[0].mxu0
      %2111 = vmatprep.mubr.f32.mxu0 0.0
      %2112 = vmatmul.mubr.f32.gmra.mrb[0].mxu0 %v2018
      %v2113 = vpop.f32.mrb[0].mxu0
      %v2114 = vadd.f32 0.0, %v2113
      %v2115 = vpop.f32.mrb[0].mxu0
      %2116 = vmatprep.mubr.f32.mxu0 0.0
      %2117 = vmatmul.mubr.f32.gmra.mrb[0].mxu0 %v2021
      %v2118 = vpop.f32.mrb[0].mxu0
      %v2119 = vadd.f32 0.0, %v2118
      %v2120 = vpop.f32.mrb[0].mxu0
      %2121 = vmatprep.mubr.f32.mxu0 0.0
      %2122 = vmatmul.mubr.f32.gmra.mrb[0].mxu0 %v2024
      %v2123 = vpop.f32.mrb[0].mxu0
      %v2124 = vadd.f32 0.0, %v2123
      %v2125 = vpop.f32.mrb[0].mxu0
      %2126 = vmatprep.mubr.f32.mxu0 0.0
      %2127 = vmatmul.mubr.f32.gmra.mrb[0].mxu0 %v2027
      %v2128 = vpop.f32.mrb[0].mxu0
      %v2129 = vadd.f32 0.0, %v2128
      %v2130 = vpop.f32.mrb[0].mxu0
      %2131 = vmatprep.mubr.f32.mxu0 0.0
      %2132 = vmatmul.mubr.f32.gmra.mrb[0].mxu0 %v2030
      %v2133 = vpop.f32.mrb[0].mxu0
      %v2134 = vadd.f32 0.0, %v2133
      %v2135 = vpop.f32.mrb[0].mxu0
      %2136 = vdwg.mxu0
      %v2137 = vadd.f32 %v1974, %v2099
      %v2138 = vadd.f32 %v1975, %v2104
      %v2139 = vadd.f32 %v1976, %v2109
      %v2140 = vadd.f32 %v1977, %v2114
      %v2141 = vadd.f32 %v1978, %v2119
      %v2142 = vadd.f32 %v1979, %v2124
      %v2143 = vadd.f32 %v1980, %v2129
      %v2144 = vadd.f32 %v1981, %v2134
      %s2145 = scalar_lea.vmem %s3, 320
      %v2146 = vld [vmem:[%s2145] sm:$0xff]
      %v2147 = vld [vmem:[%s2145 + $0x8] sm:$0xff]
      %v2148 = vld [vmem:[%s2145 + $0x10] sm:$0xff]
      %v2149 = vld [vmem:[%s2145 + $0x18] sm:$0xff]
      %v2150 = vld [vmem:[%s2145 + $0x20] sm:$0xff]
      %v2151 = vld [vmem:[%s2145 + $0x28] sm:$0xff]
      %v2152 = vld [vmem:[%s2145 + $0x30] sm:$0xff]
      %v2153 = vld [vmem:[%s2145 + $0x38] sm:$0xff]
      %v2155 = vsel %vm625, %v2146, 0
      %v2158 = vsel %vm625, %v2147, 0
      %v2161 = vsel %vm625, %v2148, 0
      %v2164 = vsel %vm625, %v2149, 0
      %v2167 = vsel %vm625, %v2150, 0
      %v2170 = vsel %vm625, %v2151, 0
      %v2173 = vsel %vm625, %v2152, 0
      %v2176 = vsel %vm625, %v2153, 0
      %2178 = vmatprep.subr.mxu0 0.0
      %2179 = vmatpush1.msra.mxu0 %v1997
      %2180 = vmatprep.subr.mxu0 0.0
      %2181 = vmatpush1.msra.mxu0 %v1998
      %2182 = vmatprep.subr.mxu0 0.0
      %2183 = vmatpush1.msra.mxu0 0.0
      %2184 = vmatprep.subr.mxu0 0.0
      %2185 = vmatpush1.msra.mxu0 0.0
      %2186 = vmatprep.subr.mxu0 0.0
      %2187 = vmatpush1.msra.mxu0 0.0
      %2188 = vmatprep.subr.mxu0 0.0
      %2189 = vmatpush1.msra.mxu0 0.0
      %2190 = vmatprep.subr.mxu0 0.0
      %2191 = vmatpush1.msra.mxu0 0.0
      %2192 = vmatprep.subr.mxu0 0.0
      %2193 = vmatpush1.msra.mxu0 0.0
      %2194 = vmatprep.subr.mxu0 0.0
      %2195 = vmatpush1.msra.mxu0 0.0
      %2196 = vmatprep.subr.mxu0 0.0
      %2197 = vmatpush1.msra.mxu0 0.0
      %2198 = vmatprep.subr.mxu0 0.0
      %2199 = vmatpush1.msra.mxu0 0.0
      %2200 = vmatprep.subr.mxu0 0.0
      %2201 = vmatpush1.msra.mxu0 0.0
      %2202 = vmatprep.subr.mxu0 0.0
      %2203 = vmatpush1.msra.mxu0 0.0
      %2204 = vmatprep.subr.mxu0 0.0
      %2205 = vmatpush1.msra.mxu0 0.0
      %2206 = vmatprep.subr.mxu0 0.0
      %2207 = vmatpush1.msra.mxu0 0.0
      %2208 = vmatprep.subr.mxu0 0.0
      %2209 = vmatpush1.msra.mxu0 0.0
      %2210 = vmatprep.subr.mxu0 0.0
      %2211 = vmatpush1.msra.mxu0 0.0
      %2212 = vmatprep.subr.mxu0 0.0
      %2213 = vmatpush1.msra.mxu0 0.0
      %2214 = vmatprep.subr.mxu0 0.0
      %2215 = vmatpush1.msra.mxu0 0.0
      %2216 = vmatprep.subr.mxu0 0.0
      %2217 = vmatpush1.msra.mxu0 0.0
      %2218 = vmatprep.subr.mxu0 0.0
      %2219 = vmatpush1.msra.mxu0 0.0
      %2220 = vmatprep.subr.mxu0 0.0
      %2221 = vmatpush1.msra.mxu0 0.0
      %2222 = vmatprep.subr.mxu0 0.0
      %2223 = vmatpush1.msra.mxu0 0.0
      %2224 = vmatprep.subr.mxu0 0.0
      %2225 = vmatpush1.msra.mxu0 0.0
      %2226 = vmatprep.subr.mxu0 0.0
      %2227 = vmatpush1.msra.mxu0 0.0
      %2228 = vmatprep.subr.mxu0 0.0
      %2229 = vmatpush1.msra.mxu0 0.0
      %2230 = vmatprep.subr.mxu0 0.0
      %2231 = vmatpush1.msra.mxu0 0.0
      %2232 = vmatprep.subr.mxu0 0.0
      %2233 = vmatpush1.msra.mxu0 0.0
      %2234 = vmatprep.subr.mxu0 0.0
      %2235 = vmatpush1.msra.mxu0 0.0
      %2236 = vmatprep.subr.mxu0 0.0
      %2237 = vmatpush1.msra.mxu0 0.0
      %2238 = vmatprep.subr.mxu0 0.0
      %2239 = vmatpush1.msra.mxu0 0.0
      %2240 = vmatprep.subr.mxu0 0.0
      %2241 = vmatpush1.msra.mxu0 0.0
      %2242 = vmatprep.mubr.f32.mxu0 0.0
      %2243 = vmatmul.mubr.f32.gmra.mrb[0].mxu0 %v2155
      %v2244 = vpop.f32.mrb[0].mxu0
      %v2245 = vadd.f32 0.0, %v2244
      %v2246 = vpop.f32.mrb[0].mxu0
      %2247 = vmatprep.mubr.f32.mxu0 0.0
      %2248 = vmatmul.mubr.f32.gmra.mrb[0].mxu0 %v2158
      %v2249 = vpop.f32.mrb[0].mxu0
      %v2250 = vadd.f32 0.0, %v2249
      %v2251 = vpop.f32.mrb[0].mxu0
      %2252 = vmatprep.mubr.f32.mxu0 0.0
      %2253 = vmatmul.mubr.f32.gmra.mrb[0].mxu0 %v2161
      %v2254 = vpop.f32.mrb[0].mxu0
      %v2255 = vadd.f32 0.0, %v2254
      %v2256 = vpop.f32.mrb[0].mxu0
      %2257 = vmatprep.mubr.f32.mxu0 0.0
      %2258 = vmatmul.mubr.f32.gmra.mrb[0].mxu0 %v2164
      %v2259 = vpop.f32.mrb[0].mxu0
      %v2260 = vadd.f32 0.0, %v2259
      %v2261 = vpop.f32.mrb[0].mxu0
      %2262 = vmatprep.mubr.f32.mxu0 0.0
      %2263 = vmatmul.mubr.f32.gmra.mrb[0].mxu0 %v2167
      %v2264 = vpop.f32.mrb[0].mxu0
      %v2265 = vadd.f32 0.0, %v2264
      %v2266 = vpop.f32.mrb[0].mxu0
      %2267 = vmatprep.mubr.f32.mxu0 0.0
      %2268 = vmatmul.mubr.f32.gmra.mrb[0].mxu0 %v2170
      %v2269 = vpop.f32.mrb[0].mxu0
      %v2270 = vadd.f32 0.0, %v2269
      %v2271 = vpop.f32.mrb[0].mxu0
      %2272 = vmatprep.mubr.f32.mxu0 0.0
      %2273 = vmatmul.mubr.f32.gmra.mrb[0].mxu0 %v2173
      %v2274 = vpop.f32.mrb[0].mxu0
      %v2275 = vadd.f32 0.0, %v2274
      %v2276 = vpop.f32.mrb[0].mxu0
      %2277 = vmatprep.mubr.f32.mxu0 0.0
      %2278 = vmatmul.mubr.f32.gmra.mrb[0].mxu0 %v2176
      %v2279 = vpop.f32.mrb[0].mxu0
      %v2280 = vadd.f32 0.0, %v2279
      %v2281 = vpop.f32.mrb[0].mxu0
      %2282 = vdwg.mxu0
      %v2283 = vadd.f32 %v2137, %v2245
      %v2284 = vadd.f32 %v2138, %v2250
      %v2285 = vadd.f32 %v2139, %v2255
      %v2286 = vadd.f32 %v2140, %v2260
      %v2287 = vadd.f32 %v2141, %v2265
      %v2288 = vadd.f32 %v2142, %v2270
      %v2289 = vadd.f32 %v2143, %v2275
      %v2290 = vadd.f32 %v2144, %v2280
      %2291 = vrot.lane.b32.xlu0 %v404, 121
      %v2292 = vpop.permute.xlu0 %2291
      %2293 = vrot.lane.b32.xlu0 %v405, 121
      %v2294 = vpop.permute.xlu0 %2293
      %2295 = vrot.lane.b32.xlu0 %v406, 121
      %v2296 = vpop.permute.xlu0 %2295
      %s2297 = scalar_lea.vmem %s1, 6
      %v2298 = vld [vmem:[%s2297] sm:$0x1]
      %v2300 = vlaneseq
      %v2301 = vshrl.u32 %v2300, 7
      %v2302 = vsub.s32 0, %v2301
      %v2303 = vrot.slane %v2298, %v2302
      %v2305 = vmul.f32 %v2292, %v2303
      %v2306 = vmul.f32 %v2294, %v2303
      %v2307 = vmul.f32 %v2296, %v2303
      %s2308 = scalar_lea.vmem %s2, 384
      %v2309 = vld [vmem:[%s2308] sm:$0xff]
      %v2310 = vld [vmem:[%s2308 + $0x8] sm:$0xff]
      %v2311 = vld [vmem:[%s2308 + $0x10] sm:$0xff]
      %v2312 = vld [vmem:[%s2308 + $0x18] sm:$0xff]
      %v2313 = vld [vmem:[%s2308 + $0x20] sm:$0xff]
      %v2314 = vld [vmem:[%s2308 + $0x28] sm:$0xff]
      %v2315 = vld [vmem:[%s2308 + $0x30] sm:$0xff]
      %v2316 = vld [vmem:[%s2308 + $0x38] sm:$0xff]
      %v2318 = vsel %vm479, %v2309, 0
      %v2321 = vsel %vm479, %v2310, 0
      %v2324 = vsel %vm479, %v2311, 0
      %v2327 = vsel %vm479, %v2312, 0
      %v2330 = vsel %vm479, %v2313, 0
      %v2333 = vsel %vm479, %v2314, 0
      %v2336 = vsel %vm479, %v2315, 0
      %v2339 = vsel %vm479, %v2316, 0
      %2341 = vmatprep.subr.mxu0 0.0
      %2342 = vmatpush1.msra.mxu0 %v2305
      %2343 = vmatprep.subr.mxu0 0.0
      %2344 = vmatpush1.msra.mxu0 0.0
      %2345 = vmatprep.subr.mxu0 0.0
      %2346 = vmatpush1.msra.mxu0 0.0
      %2347 = vmatprep.subr.mxu0 0.0
      %2348 = vmatpush1.msra.mxu0 0.0
      %2349 = vmatprep.subr.mxu0 0.0
      %2350 = vmatpush1.msra.mxu0 0.0
      %2351 = vmatprep.subr.mxu0 0.0
      %2352 = vmatpush1.msra.mxu0 0.0
      %2353 = vmatprep.subr.mxu0 0.0
      %2354 = vmatpush1.msra.mxu0 0.0
      %2355 = vmatprep.subr.mxu0 0.0
      %2356 = vmatpush1.msra.mxu0 0.0
      %2357 = vmatprep.subr.mxu0 0.0
      %2358 = vmatpush1.msra.mxu0 0.0
      %2359 = vmatprep.subr.mxu0 0.0
      %2360 = vmatpush1.msra.mxu0 0.0
      %2361 = vmatprep.subr.mxu0 0.0
      %2362 = vmatpush1.msra.mxu0 0.0
      %2363 = vmatprep.subr.mxu0 0.0
      %2364 = vmatpush1.msra.mxu0 0.0
      %2365 = vmatprep.subr.mxu0 0.0
      %2366 = vmatpush1.msra.mxu0 0.0
      %2367 = vmatprep.subr.mxu0 0.0
      %2368 = vmatpush1.msra.mxu0 0.0
      %2369 = vmatprep.subr.mxu0 0.0
      %2370 = vmatpush1.msra.mxu0 0.0
      %2371 = vmatprep.subr.mxu0 0.0
      %2372 = vmatpush1.msra.mxu0 0.0
      %2373 = vmatprep.subr.mxu0 0.0
      %2374 = vmatpush1.msra.mxu0 0.0
      %2375 = vmatprep.subr.mxu0 0.0
      %2376 = vmatpush1.msra.mxu0 0.0
      %2377 = vmatprep.subr.mxu0 0.0
      %2378 = vmatpush1.msra.mxu0 0.0
      %2379 = vmatprep.subr.mxu0 0.0
      %2380 = vmatpush1.msra.mxu0 0.0
      %2381 = vmatprep.subr.mxu0 0.0
      %2382 = vmatpush1.msra.mxu0 0.0
      %2383 = vmatprep.subr.mxu0 0.0
      %2384 = vmatpush1.msra.mxu0 0.0
      %2385 = vmatprep.subr.mxu0 0.0
      %2386 = vmatpush1.msra.mxu0 0.0
      %2387 = vmatprep.subr.mxu0 0.0
      %2388 = vmatpush1.msra.mxu0 0.0
      %2389 = vmatprep.subr.mxu0 0.0
      %2390 = vmatpush1.msra.mxu0 0.0
      %2391 = vmatprep.subr.mxu0 0.0
      %2392 = vmatpush1.msra.mxu0 0.0
      %2393 = vmatprep.subr.mxu0 0.0
      %2394 = vmatpush1.msra.mxu0 0.0
      %2395 = vmatprep.subr.mxu0 0.0
      %2396 = vmatpush1.msra.mxu0 0.0
      %2397 = vmatprep.subr.mxu0 0.0
      %2398 = vmatpush1.msra.mxu0 0.0
      %2399 = vmatprep.subr.mxu0 0.0
      %2400 = vmatpush1.msra.mxu0 0.0
      %2401 = vmatprep.subr.mxu0 0.0
      %2402 = vmatpush1.msra.mxu0 0.0
      %2403 = vmatprep.subr.mxu0 0.0
      %2404 = vmatpush1.msra.mxu0 0.0
      %2405 = vmatprep.mubr.f32.mxu0 0.0
      %2406 = vmatmul.mubr.f32.gmra.mrb[0].mxu0 %v2318
      %v2407 = vpop.f32.mrb[0].mxu0
      %v2408 = vadd.f32 0.0, %v2407
      %v2409 = vpop.f32.mrb[0].mxu0
      %2410 = vmatprep.mubr.f32.mxu0 0.0
      %2411 = vmatmul.mubr.f32.gmra.mrb[0].mxu0 %v2321
      %v2412 = vpop.f32.mrb[0].mxu0
      %v2413 = vadd.f32 0.0, %v2412
      %v2414 = vpop.f32.mrb[0].mxu0
      %2415 = vmatprep.mubr.f32.mxu0 0.0
      %2416 = vmatmul.mubr.f32.gmra.mrb[0].mxu0 %v2324
      %v2417 = vpop.f32.mrb[0].mxu0
      %v2418 = vadd.f32 0.0, %v2417
      %v2419 = vpop.f32.mrb[0].mxu0
      %2420 = vmatprep.mubr.f32.mxu0 0.0
      %2421 = vmatmul.mubr.f32.gmra.mrb[0].mxu0 %v2327
      %v2422 = vpop.f32.mrb[0].mxu0
      %v2423 = vadd.f32 0.0, %v2422
      %v2424 = vpop.f32.mrb[0].mxu0
      %2425 = vmatprep.mubr.f32.mxu0 0.0
      %2426 = vmatmul.mubr.f32.gmra.mrb[0].mxu0 %v2330
      %v2427 = vpop.f32.mrb[0].mxu0
      %v2428 = vadd.f32 0.0, %v2427
      %v2429 = vpop.f32.mrb[0].mxu0
      %2430 = vmatprep.mubr.f32.mxu0 0.0
      %2431 = vmatmul.mubr.f32.gmra.mrb[0].mxu0 %v2333
      %v2432 = vpop.f32.mrb[0].mxu0
      %v2433 = vadd.f32 0.0, %v2432
      %v2434 = vpop.f32.mrb[0].mxu0
      %2435 = vmatprep.mubr.f32.mxu0 0.0
      %2436 = vmatmul.mubr.f32.gmra.mrb[0].mxu0 %v2336
      %v2437 = vpop.f32.mrb[0].mxu0
      %v2438 = vadd.f32 0.0, %v2437
      %v2439 = vpop.f32.mrb[0].mxu0
      %2440 = vmatprep.mubr.f32.mxu0 0.0
      %2441 = vmatmul.mubr.f32.gmra.mrb[0].mxu0 %v2339
      %v2442 = vpop.f32.mrb[0].mxu0
      %v2443 = vadd.f32 0.0, %v2442
      %v2444 = vpop.f32.mrb[0].mxu0
      %2445 = vdwg.mxu0
      %v2446 = vadd.f32 %v2283, %v2408
      %v2447 = vadd.f32 %v2284, %v2413
      %v2448 = vadd.f32 %v2285, %v2418
      %v2449 = vadd.f32 %v2286, %v2423
      %v2450 = vadd.f32 %v2287, %v2428
      %v2451 = vadd.f32 %v2288, %v2433
      %v2452 = vadd.f32 %v2289, %v2438
      %v2453 = vadd.f32 %v2290, %v2443
      %s2454 = scalar_lea.vmem %s3, 384
      %v2455 = vld [vmem:[%s2454] sm:$0xff]
      %v2456 = vld [vmem:[%s2454 + $0x8] sm:$0xff]
      %v2457 = vld [vmem:[%s2454 + $0x10] sm:$0xff]
      %v2458 = vld [vmem:[%s2454 + $0x18] sm:$0xff]
      %v2459 = vld [vmem:[%s2454 + $0x20] sm:$0xff]
      %v2460 = vld [vmem:[%s2454 + $0x28] sm:$0xff]
      %v2461 = vld [vmem:[%s2454 + $0x30] sm:$0xff]
      %v2462 = vld [vmem:[%s2454 + $0x38] sm:$0xff]
      %v2464 = vsel %vm625, %v2455, 0
      %v2467 = vsel %vm625, %v2456, 0
      %v2470 = vsel %vm625, %v2457, 0
      %v2473 = vsel %vm625, %v2458, 0
      %v2476 = vsel %vm625, %v2459, 0
      %v2479 = vsel %vm625, %v2460, 0
      %v2482 = vsel %vm625, %v2461, 0
      %v2485 = vsel %vm625, %v2462, 0
      %2487 = vmatprep.subr.mxu0 0.0
      %2488 = vmatpush1.msra.mxu0 %v2306
      %2489 = vmatprep.subr.mxu0 0.0
      %2490 = vmatpush1.msra.mxu0 %v2307
      %2491 = vmatprep.subr.mxu0 0.0
      %2492 = vmatpush1.msra.mxu0 0.0
      %2493 = vmatprep.subr.mxu0 0.0
      %2494 = vmatpush1.msra.mxu0 0.0
      %2495 = vmatprep.subr.mxu0 0.0
      %2496 = vmatpush1.msra.mxu0 0.0
      %2497 = vmatprep.subr.mxu0 0.0
      %2498 = vmatpush1.msra.mxu0 0.0
      %2499 = vmatprep.subr.mxu0 0.0
      %2500 = vmatpush1.msra.mxu0 0.0
      %2501 = vmatprep.subr.mxu0 0.0
      %2502 = vmatpush1.msra.mxu0 0.0
      %2503 = vmatprep.subr.mxu0 0.0
      %2504 = vmatpush1.msra.mxu0 0.0
      %2505 = vmatprep.subr.mxu0 0.0
      %2506 = vmatpush1.msra.mxu0 0.0
      %2507 = vmatprep.subr.mxu0 0.0
      %2508 = vmatpush1.msra.mxu0 0.0
      %2509 = vmatprep.subr.mxu0 0.0
      %2510 = vmatpush1.msra.mxu0 0.0
      %2511 = vmatprep.subr.mxu0 0.0
      %2512 = vmatpush1.msra.mxu0 0.0
      %2513 = vmatprep.subr.mxu0 0.0
      %2514 = vmatpush1.msra.mxu0 0.0
      %2515 = vmatprep.subr.mxu0 0.0
      %2516 = vmatpush1.msra.mxu0 0.0
      %2517 = vmatprep.subr.mxu0 0.0
      %2518 = vmatpush1.msra.mxu0 0.0
      %2519 = vmatprep.subr.mxu0 0.0
      %2520 = vmatpush1.msra.mxu0 0.0
      %2521 = vmatprep.subr.mxu0 0.0
      %2522 = vmatpush1.msra.mxu0 0.0
      %2523 = vmatprep.subr.mxu0 0.0
      %2524 = vmatpush1.msra.mxu0 0.0
      %2525 = vmatprep.subr.mxu0 0.0
      %2526 = vmatpush1.msra.mxu0 0.0
      %2527 = vmatprep.subr.mxu0 0.0
      %2528 = vmatpush1.msra.mxu0 0.0
      %2529 = vmatprep.subr.mxu0 0.0
      %2530 = vmatpush1.msra.mxu0 0.0
      %2531 = vmatprep.subr.mxu0 0.0
      %2532 = vmatpush1.msra.mxu0 0.0
      %2533 = vmatprep.subr.mxu0 0.0
      %2534 = vmatpush1.msra.mxu0 0.0
      %2535 = vmatprep.subr.mxu0 0.0
      %2536 = vmatpush1.msra.mxu0 0.0
      %2537 = vmatprep.subr.mxu0 0.0
      %2538 = vmatpush1.msra.mxu0 0.0
      %2539 = vmatprep.subr.mxu0 0.0
      %2540 = vmatpush1.msra.mxu0 0.0
      %2541 = vmatprep.subr.mxu0 0.0
      %2542 = vmatpush1.msra.mxu0 0.0
      %2543 = vmatprep.subr.mxu0 0.0
      %2544 = vmatpush1.msra.mxu0 0.0
      %2545 = vmatprep.subr.mxu0 0.0
      %2546 = vmatpush1.msra.mxu0 0.0
      %2547 = vmatprep.subr.mxu0 0.0
      %2548 = vmatpush1.msra.mxu0 0.0
      %2549 = vmatprep.subr.mxu0 0.0
      %2550 = vmatpush1.msra.mxu0 0.0
      %2551 = vmatprep.mubr.f32.mxu0 0.0
      %2552 = vmatmul.mubr.f32.gmra.mrb[0].mxu0 %v2464
      %v2553 = vpop.f32.mrb[0].mxu0
      %v2554 = vadd.f32 0.0, %v2553
      %v2555 = vpop.f32.mrb[0].mxu0
      %2556 = vmatprep.mubr.f32.mxu0 0.0
      %2557 = vmatmul.mubr.f32.gmra.mrb[0].mxu0 %v2467
      %v2558 = vpop.f32.mrb[0].mxu0
      %v2559 = vadd.f32 0.0, %v2558
      %v2560 = vpop.f32.mrb[0].mxu0
      %2561 = vmatprep.mubr.f32.mxu0 0.0
      %2562 = vmatmul.mubr.f32.gmra.mrb[0].mxu0 %v2470
      %v2563 = vpop.f32.mrb[0].mxu0
      %v2564 = vadd.f32 0.0, %v2563
      %v2565 = vpop.f32.mrb[0].mxu0
      %2566 = vmatprep.mubr.f32.mxu0 0.0
      %2567 = vmatmul.mubr.f32.gmra.mrb[0].mxu0 %v2473
      %v2568 = vpop.f32.mrb[0].mxu0
      %v2569 = vadd.f32 0.0, %v2568
      %v2570 = vpop.f32.mrb[0].mxu0
      %2571 = vmatprep.mubr.f32.mxu0 0.0
      %2572 = vmatmul.mubr.f32.gmra.mrb[0].mxu0 %v2476
      %v2573 = vpop.f32.mrb[0].mxu0
      %v2574 = vadd.f32 0.0, %v2573
      %v2575 = vpop.f32.mrb[0].mxu0
      %2576 = vmatprep.mubr.f32.mxu0 0.0
      %2577 = vmatmul.mubr.f32.gmra.mrb[0].mxu0 %v2479
      %v2578 = vpop.f32.mrb[0].mxu0
      %v2579 = vadd.f32 0.0, %v2578
      %v2580 = vpop.f32.mrb[0].mxu0
      %2581 = vmatprep.mubr.f32.mxu0 0.0
      %2582 = vmatmul.mubr.f32.gmra.mrb[0].mxu0 %v2482
      %v2583 = vpop.f32.mrb[0].mxu0
      %v2584 = vadd.f32 0.0, %v2583
      %v2585 = vpop.f32.mrb[0].mxu0
      %2586 = vmatprep.mubr.f32.mxu0 0.0
      %2587 = vmatmul.mubr.f32.gmra.mrb[0].mxu0 %v2485
      %v2588 = vpop.f32.mrb[0].mxu0
      %v2589 = vadd.f32 0.0, %v2588
      %v2590 = vpop.f32.mrb[0].mxu0
      %2591 = vdwg.mxu0
      %v2592 = vadd.f32 %v2446, %v2554
      %v2593 = vadd.f32 %v2447, %v2559
      %v2594 = vadd.f32 %v2448, %v2564
      %v2595 = vadd.f32 %v2449, %v2569
      %v2596 = vadd.f32 %v2450, %v2574
      %v2597 = vadd.f32 %v2451, %v2579
      %v2598 = vadd.f32 %v2452, %v2584
      %v2599 = vadd.f32 %v2453, %v2589
      %2600 = vrot.lane.b32.xlu0 %v404, 120
      %v2601 = vpop.permute.xlu0 %2600
      %2602 = vrot.lane.b32.xlu0 %v405, 120
      %v2603 = vpop.permute.xlu0 %2602
      %2604 = vrot.lane.b32.xlu0 %v406, 120
      %v2605 = vpop.permute.xlu0 %2604
      %s2606 = scalar_lea.vmem %s1, 7
      %v2607 = vld [vmem:[%s2606] sm:$0x1]
      %v2609 = vlaneseq
      %v2610 = vshrl.u32 %v2609, 7
      %v2611 = vsub.s32 0, %v2610
      %v2612 = vrot.slane %v2607, %v2611
      %v2614 = vmul.f32 %v2601, %v2612
      %v2615 = vmul.f32 %v2603, %v2612
      %v2616 = vmul.f32 %v2605, %v2612
      %s2617 = scalar_lea.vmem %s2, 448
      %v2618 = vld [vmem:[%s2617] sm:$0xff]
      %v2619 = vld [vmem:[%s2617 + $0x8] sm:$0xff]
      %v2620 = vld [vmem:[%s2617 + $0x10] sm:$0xff]
      %v2621 = vld [vmem:[%s2617 + $0x18] sm:$0xff]
      %v2622 = vld [vmem:[%s2617 + $0x20] sm:$0xff]
      %v2623 = vld [vmem:[%s2617 + $0x28] sm:$0xff]
      %v2624 = vld [vmem:[%s2617 + $0x30] sm:$0xff]
      %v2625 = vld [vmem:[%s2617 + $0x38] sm:$0xff]
      %v2627 = vsel %vm479, %v2618, 0
      %v2630 = vsel %vm479, %v2619, 0
      %v2633 = vsel %vm479, %v2620, 0
      %v2636 = vsel %vm479, %v2621, 0
      %v2639 = vsel %vm479, %v2622, 0
      %v2642 = vsel %vm479, %v2623, 0
      %v2645 = vsel %vm479, %v2624, 0
      %v2648 = vsel %vm479, %v2625, 0
      %2650 = vmatprep.subr.mxu0 0.0
      %2651 = vmatpush1.msra.mxu0 %v2614
      %2652 = vmatprep.subr.mxu0 0.0
      %2653 = vmatpush1.msra.mxu0 0.0
      %2654 = vmatprep.subr.mxu0 0.0
      %2655 = vmatpush1.msra.mxu0 0.0
      %2656 = vmatprep.subr.mxu0 0.0
      %2657 = vmatpush1.msra.mxu0 0.0
      %2658 = vmatprep.subr.mxu0 0.0
      %2659 = vmatpush1.msra.mxu0 0.0
      %2660 = vmatprep.subr.mxu0 0.0
      %2661 = vmatpush1.msra.mxu0 0.0
      %2662 = vmatprep.subr.mxu0 0.0
      %2663 = vmatpush1.msra.mxu0 0.0
      %2664 = vmatprep.subr.mxu0 0.0
      %2665 = vmatpush1.msra.mxu0 0.0
      %2666 = vmatprep.subr.mxu0 0.0
      %2667 = vmatpush1.msra.mxu0 0.0
      %2668 = vmatprep.subr.mxu0 0.0
      %2669 = vmatpush1.msra.mxu0 0.0
      %2670 = vmatprep.subr.mxu0 0.0
      %2671 = vmatpush1.msra.mxu0 0.0
      %2672 = vmatprep.subr.mxu0 0.0
      %2673 = vmatpush1.msra.mxu0 0.0
      %2674 = vmatprep.subr.mxu0 0.0
      %2675 = vmatpush1.msra.mxu0 0.0
      %2676 = vmatprep.subr.mxu0 0.0
      %2677 = vmatpush1.msra.mxu0 0.0
      %2678 = vmatprep.subr.mxu0 0.0
      %2679 = vmatpush1.msra.mxu0 0.0
      %2680 = vmatprep.subr.mxu0 0.0
      %2681 = vmatpush1.msra.mxu0 0.0
      %2682 = vmatprep.subr.mxu0 0.0
      %2683 = vmatpush1.msra.mxu0 0.0
      %2684 = vmatprep.subr.mxu0 0.0
      %2685 = vmatpush1.msra.mxu0 0.0
      %2686 = vmatprep.subr.mxu0 0.0
      %2687 = vmatpush1.msra.mxu0 0.0
      %2688 = vmatprep.subr.mxu0 0.0
      %2689 = vmatpush1.msra.mxu0 0.0
      %2690 = vmatprep.subr.mxu0 0.0
      %2691 = vmatpush1.msra.mxu0 0.0
      %2692 = vmatprep.subr.mxu0 0.0
      %2693 = vmatpush1.msra.mxu0 0.0
      %2694 = vmatprep.subr.mxu0 0.0
      %2695 = vmatpush1.msra.mxu0 0.0
      %2696 = vmatprep.subr.mxu0 0.0
      %2697 = vmatpush1.msra.mxu0 0.0
      %2698 = vmatprep.subr.mxu0 0.0
      %2699 = vmatpush1.msra.mxu0 0.0
      %2700 = vmatprep.subr.mxu0 0.0
      %2701 = vmatpush1.msra.mxu0 0.0
      %2702 = vmatprep.subr.mxu0 0.0
      %2703 = vmatpush1.msra.mxu0 0.0
      %2704 = vmatprep.subr.mxu0 0.0
      %2705 = vmatpush1.msra.mxu0 0.0
      %2706 = vmatprep.subr.mxu0 0.0
      %2707 = vmatpush1.msra.mxu0 0.0
      %2708 = vmatprep.subr.mxu0 0.0
      %2709 = vmatpush1.msra.mxu0 0.0
      %2710 = vmatprep.subr.mxu0 0.0
      %2711 = vmatpush1.msra.mxu0 0.0
      %2712 = vmatprep.subr.mxu0 0.0
      %2713 = vmatpush1.msra.mxu0 0.0
      %2714 = vmatprep.mubr.f32.mxu0 0.0
      %2715 = vmatmul.mubr.f32.gmra.mrb[0].mxu0 %v2627
      %v2716 = vpop.f32.mrb[0].mxu0
      %v2717 = vadd.f32 0.0, %v2716
      %v2718 = vpop.f32.mrb[0].mxu0
      %2719 = vmatprep.mubr.f32.mxu0 0.0
      %2720 = vmatmul.mubr.f32.gmra.mrb[0].mxu0 %v2630
      %v2721 = vpop.f32.mrb[0].mxu0
      %v2722 = vadd.f32 0.0, %v2721
      %v2723 = vpop.f32.mrb[0].mxu0
      %2724 = vmatprep.mubr.f32.mxu0 0.0
      %2725 = vmatmul.mubr.f32.gmra.mrb[0].mxu0 %v2633
      %v2726 = vpop.f32.mrb[0].mxu0
      %v2727 = vadd.f32 0.0, %v2726
      %v2728 = vpop.f32.mrb[0].mxu0
      %2729 = vmatprep.mubr.f32.mxu0 0.0
      %2730 = vmatmul.mubr.f32.gmra.mrb[0].mxu0 %v2636
      %v2731 = vpop.f32.mrb[0].mxu0
      %v2732 = vadd.f32 0.0, %v2731
      %v2733 = vpop.f32.mrb[0].mxu0
      %2734 = vmatprep.mubr.f32.mxu0 0.0
      %2735 = vmatmul.mubr.f32.gmra.mrb[0].mxu0 %v2639
      %v2736 = vpop.f32.mrb[0].mxu0
      %v2737 = vadd.f32 0.0, %v2736
      %v2738 = vpop.f32.mrb[0].mxu0
      %2739 = vmatprep.mubr.f32.mxu0 0.0
      %2740 = vmatmul.mubr.f32.gmra.mrb[0].mxu0 %v2642
      %v2741 = vpop.f32.mrb[0].mxu0
      %v2742 = vadd.f32 0.0, %v2741
      %v2743 = vpop.f32.mrb[0].mxu0
      %2744 = vmatprep.mubr.f32.mxu0 0.0
      %2745 = vmatmul.mubr.f32.gmra.mrb[0].mxu0 %v2645
      %v2746 = vpop.f32.mrb[0].mxu0
      %v2747 = vadd.f32 0.0, %v2746
      %v2748 = vpop.f32.mrb[0].mxu0
      %2749 = vmatprep.mubr.f32.mxu0 0.0
      %2750 = vmatmul.mubr.f32.gmra.mrb[0].mxu0 %v2648
      %v2751 = vpop.f32.mrb[0].mxu0
      %v2752 = vadd.f32 0.0, %v2751
      %v2753 = vpop.f32.mrb[0].mxu0
      %2754 = vdwg.mxu0
      %v2755 = vadd.f32 %v2592, %v2717
      %v2756 = vadd.f32 %v2593, %v2722
      %v2757 = vadd.f32 %v2594, %v2727
      %v2758 = vadd.f32 %v2595, %v2732
      %v2759 = vadd.f32 %v2596, %v2737
      %v2760 = vadd.f32 %v2597, %v2742
      %v2761 = vadd.f32 %v2598, %v2747
      %v2762 = vadd.f32 %v2599, %v2752
      %s2763 = scalar_lea.vmem %s3, 448
      %v2764 = vld [vmem:[%s2763] sm:$0xff]
      %v2765 = vld [vmem:[%s2763 + $0x8] sm:$0xff]
      %v2766 = vld [vmem:[%s2763 + $0x10] sm:$0xff]
      %v2767 = vld [vmem:[%s2763 + $0x18] sm:$0xff]
      %v2768 = vld [vmem:[%s2763 + $0x20] sm:$0xff]
      %v2769 = vld [vmem:[%s2763 + $0x28] sm:$0xff]
      %v2770 = vld [vmem:[%s2763 + $0x30] sm:$0xff]
      %v2771 = vld [vmem:[%s2763 + $0x38] sm:$0xff]
      %v2773 = vsel %vm625, %v2764, 0
      %v2776 = vsel %vm625, %v2765, 0
      %v2779 = vsel %vm625, %v2766, 0
      %v2782 = vsel %vm625, %v2767, 0
      %v2785 = vsel %vm625, %v2768, 0
      %v2788 = vsel %vm625, %v2769, 0
      %v2791 = vsel %vm625, %v2770, 0
      %v2794 = vsel %vm625, %v2771, 0
      %2796 = vmatprep.subr.mxu0 0.0
      %2797 = vmatpush1.msra.mxu0 %v2615
      %2798 = vmatprep.subr.mxu0 0.0
      %2799 = vmatpush1.msra.mxu0 %v2616
      %2800 = vmatprep.subr.mxu0 0.0
      %2801 = vmatpush1.msra.mxu0 0.0
      %2802 = vmatprep.subr.mxu0 0.0
      %2803 = vmatpush1.msra.mxu0 0.0
      %2804 = vmatprep.subr.mxu0 0.0
      %2805 = vmatpush1.msra.mxu0 0.0
      %2806 = vmatprep.subr.mxu0 0.0
      %2807 = vmatpush1.msra.mxu0 0.0
      %2808 = vmatprep.subr.mxu0 0.0
      %2809 = vmatpush1.msra.mxu0 0.0
      %2810 = vmatprep.subr.mxu0 0.0
      %2811 = vmatpush1.msra.mxu0 0.0
      %2812 = vmatprep.subr.mxu0 0.0
      %2813 = vmatpush1.msra.mxu0 0.0
      %2814 = vmatprep.subr.mxu0 0.0
      %2815 = vmatpush1.msra.mxu0 0.0
      %2816 = vmatprep.subr.mxu0 0.0
      %2817 = vmatpush1.msra.mxu0 0.0
      %2818 = vmatprep.subr.mxu0 0.0
      %2819 = vmatpush1.msra.mxu0 0.0
      %2820 = vmatprep.subr.mxu0 0.0
      %2821 = vmatpush1.msra.mxu0 0.0
      %2822 = vmatprep.subr.mxu0 0.0
      %2823 = vmatpush1.msra.mxu0 0.0
      %2824 = vmatprep.subr.mxu0 0.0
      %2825 = vmatpush1.msra.mxu0 0.0
      %2826 = vmatprep.subr.mxu0 0.0
      %2827 = vmatpush1.msra.mxu0 0.0
      %2828 = vmatprep.subr.mxu0 0.0
      %2829 = vmatpush1.msra.mxu0 0.0
      %2830 = vmatprep.subr.mxu0 0.0
      %2831 = vmatpush1.msra.mxu0 0.0
      %2832 = vmatprep.subr.mxu0 0.0
      %2833 = vmatpush1.msra.mxu0 0.0
      %2834 = vmatprep.subr.mxu0 0.0
      %2835 = vmatpush1.msra.mxu0 0.0
      %2836 = vmatprep.subr.mxu0 0.0
      %2837 = vmatpush1.msra.mxu0 0.0
      %2838 = vmatprep.subr.mxu0 0.0
      %2839 = vmatpush1.msra.mxu0 0.0
      %2840 = vmatprep.subr.mxu0 0.0
      %2841 = vmatpush1.msra.mxu0 0.0
      %2842 = vmatprep.subr.mxu0 0.0
      %2843 = vmatpush1.msra.mxu0 0.0
      %2844 = vmatprep.subr.mxu0 0.0
      %2845 = vmatpush1.msra.mxu0 0.0
      %2846 = vmatprep.subr.mxu0 0.0
      %2847 = vmatpush1.msra.mxu0 0.0
      %2848 = vmatprep.subr.mxu0 0.0
      %2849 = vmatpush1.msra.mxu0 0.0
      %2850 = vmatprep.subr.mxu0 0.0
      %2851 = vmatpush1.msra.mxu0 0.0
      %2852 = vmatprep.subr.mxu0 0.0
      %2853 = vmatpush1.msra.mxu0 0.0
      %2854 = vmatprep.subr.mxu0 0.0
      %2855 = vmatpush1.msra.mxu0 0.0
      %2856 = vmatprep.subr.mxu0 0.0
      %2857 = vmatpush1.msra.mxu0 0.0
      %2858 = vmatprep.subr.mxu0 0.0
      %2859 = vmatpush1.msra.mxu0 0.0
      %2860 = vmatprep.mubr.f32.mxu0 0.0
      %2861 = vmatmul.mubr.f32.gmra.mrb[0].mxu0 %v2773
      %v2862 = vpop.f32.mrb[0].mxu0
      %v2863 = vadd.f32 0.0, %v2862
      %v2864 = vpop.f32.mrb[0].mxu0
      %2865 = vmatprep.mubr.f32.mxu0 0.0
      %2866 = vmatmul.mubr.f32.gmra.mrb[0].mxu0 %v2776
      %v2867 = vpop.f32.mrb[0].mxu0
      %v2868 = vadd.f32 0.0, %v2867
      %v2869 = vpop.f32.mrb[0].mxu0
      %2870 = vmatprep.mubr.f32.mxu0 0.0
      %2871 = vmatmul.mubr.f32.gmra.mrb[0].mxu0 %v2779
      %v2872 = vpop.f32.mrb[0].mxu0
      %v2873 = vadd.f32 0.0, %v2872
      %v2874 = vpop.f32.mrb[0].mxu0
      %2875 = vmatprep.mubr.f32.mxu0 0.0
      %2876 = vmatmul.mubr.f32.gmra.mrb[0].mxu0 %v2782
      %v2877 = vpop.f32.mrb[0].mxu0
      %v2878 = vadd.f32 0.0, %v2877
      %v2879 = vpop.f32.mrb[0].mxu0
      %2880 = vmatprep.mubr.f32.mxu0 0.0
      %2881 = vmatmul.mubr.f32.gmra.mrb[0].mxu0 %v2785
      %v2882 = vpop.f32.mrb[0].mxu0
      %v2883 = vadd.f32 0.0, %v2882
      %v2884 = vpop.f32.mrb[0].mxu0
      %2885 = vmatprep.mubr.f32.mxu0 0.0
      %2886 = vmatmul.mubr.f32.gmra.mrb[0].mxu0 %v2788
      %v2887 = vpop.f32.mrb[0].mxu0
      %v2888 = vadd.f32 0.0, %v2887
      %v2889 = vpop.f32.mrb[0].mxu0
      %2890 = vmatprep.mubr.f32.mxu0 0.0
      %2891 = vmatmul.mubr.f32.gmra.mrb[0].mxu0 %v2791
      %v2892 = vpop.f32.mrb[0].mxu0
      %v2893 = vadd.f32 0.0, %v2892
      %v2894 = vpop.f32.mrb[0].mxu0
      %2895 = vmatprep.mubr.f32.mxu0 0.0
      %2896 = vmatmul.mubr.f32.gmra.mrb[0].mxu0 %v2794
      %v2897 = vpop.f32.mrb[0].mxu0
      %v2898 = vadd.f32 0.0, %v2897
      %v2899 = vpop.f32.mrb[0].mxu0
      %2900 = vdwg.mxu0
      %v2901 = vadd.f32 %v2755, %v2863
      %v2902 = vadd.f32 %v2756, %v2868
      %v2903 = vadd.f32 %v2757, %v2873
      %v2904 = vadd.f32 %v2758, %v2878
      %v2905 = vadd.f32 %v2759, %v2883
      %v2906 = vadd.f32 %v2760, %v2888
      %v2907 = vadd.f32 %v2761, %v2893
      %v2908 = vadd.f32 %v2762, %v2898
      %2909 = vrot.lane.b32.xlu0 %v404, 119
      %v2910 = vpop.permute.xlu0 %2909
      %2911 = vrot.lane.b32.xlu0 %v405, 119
      %v2912 = vpop.permute.xlu0 %2911
      %2913 = vrot.lane.b32.xlu0 %v406, 119
      %v2914 = vpop.permute.xlu0 %2913
      %s2915 = scalar_lea.vmem %s1, 8
      %v2916 = vld [vmem:[%s2915] sm:$0x1]
      %v2918 = vlaneseq
      %v2919 = vshrl.u32 %v2918, 7
      %v2920 = vsub.s32 0, %v2919
      %v2921 = vrot.slane %v2916, %v2920
      %v2923 = vmul.f32 %v2910, %v2921
      %v2924 = vmul.f32 %v2912, %v2921
      %v2925 = vmul.f32 %v2914, %v2921
      %s2926 = scalar_lea.vmem %s2, 512
      %v2927 = vld [vmem:[%s2926] sm:$0xff]
      %v2928 = vld [vmem:[%s2926 + $0x8] sm:$0xff]
      %v2929 = vld [vmem:[%s2926 + $0x10] sm:$0xff]
      %v2930 = vld [vmem:[%s2926 + $0x18] sm:$0xff]
      %v2931 = vld [vmem:[%s2926 + $0x20] sm:$0xff]
      %v2932 = vld [vmem:[%s2926 + $0x28] sm:$0xff]
      %v2933 = vld [vmem:[%s2926 + $0x30] sm:$0xff]
      %v2934 = vld [vmem:[%s2926 + $0x38] sm:$0xff]
      %v2936 = vsel %vm479, %v2927, 0
      %v2939 = vsel %vm479, %v2928, 0
      %v2942 = vsel %vm479, %v2929, 0
      %v2945 = vsel %vm479, %v2930, 0
      %v2948 = vsel %vm479, %v2931, 0
      %v2951 = vsel %vm479, %v2932, 0
      %v2954 = vsel %vm479, %v2933, 0
      %v2957 = vsel %vm479, %v2934, 0
      %2959 = vmatprep.subr.mxu0 0.0
      %2960 = vmatpush1.msra.mxu0 %v2923
      %2961 = vmatprep.subr.mxu0 0.0
      %2962 = vmatpush1.msra.mxu0 0.0
      %2963 = vmatprep.subr.mxu0 0.0
      %2964 = vmatpush1.msra.mxu0 0.0
      %2965 = vmatprep.subr.mxu0 0.0
      %2966 = vmatpush1.msra.mxu0 0.0
      %2967 = vmatprep.subr.mxu0 0.0
      %2968 = vmatpush1.msra.mxu0 0.0
      %2969 = vmatprep.subr.mxu0 0.0
      %2970 = vmatpush1.msra.mxu0 0.0
      %2971 = vmatprep.subr.mxu0 0.0
      %2972 = vmatpush1.msra.mxu0 0.0
      %2973 = vmatprep.subr.mxu0 0.0
      %2974 = vmatpush1.msra.mxu0 0.0
      %2975 = vmatprep.subr.mxu0 0.0
      %2976 = vmatpush1.msra.mxu0 0.0
      %2977 = vmatprep.subr.mxu0 0.0
      %2978 = vmatpush1.msra.mxu0 0.0
      %2979 = vmatprep.subr.mxu0 0.0
      %2980 = vmatpush1.msra.mxu0 0.0
      %2981 = vmatprep.subr.mxu0 0.0
      %2982 = vmatpush1.msra.mxu0 0.0
      %2983 = vmatprep.subr.mxu0 0.0
      %2984 = vmatpush1.msra.mxu0 0.0
      %2985 = vmatprep.subr.mxu0 0.0
      %2986 = vmatpush1.msra.mxu0 0.0
      %2987 = vmatprep.subr.mxu0 0.0
      %2988 = vmatpush1.msra.mxu0 0.0
      %2989 = vmatprep.subr.mxu0 0.0
      %2990 = vmatpush1.msra.mxu0 0.0
      %2991 = vmatprep.subr.mxu0 0.0
      %2992 = vmatpush1.msra.mxu0 0.0
      %2993 = vmatprep.subr.mxu0 0.0
      %2994 = vmatpush1.msra.mxu0 0.0
      %2995 = vmatprep.subr.mxu0 0.0
      %2996 = vmatpush1.msra.mxu0 0.0
      %2997 = vmatprep.subr.mxu0 0.0
      %2998 = vmatpush1.msra.mxu0 0.0
      %2999 = vmatprep.subr.mxu0 0.0
      %3000 = vmatpush1.msra.mxu0 0.0
      %3001 = vmatprep.subr.mxu0 0.0
      %3002 = vmatpush1.msra.mxu0 0.0
      %3003 = vmatprep.subr.mxu0 0.0
      %3004 = vmatpush1.msra.mxu0 0.0
      %3005 = vmatprep.subr.mxu0 0.0
      %3006 = vmatpush1.msra.mxu0 0.0
      %3007 = vmatprep.subr.mxu0 0.0
      %3008 = vmatpush1.msra.mxu0 0.0
      %3009 = vmatprep.subr.mxu0 0.0
      %3010 = vmatpush1.msra.mxu0 0.0
      %3011 = vmatprep.subr.mxu0 0.0
      %3012 = vmatpush1.msra.mxu0 0.0
      %3013 = vmatprep.subr.mxu0 0.0
      %3014 = vmatpush1.msra.mxu0 0.0
      %3015 = vmatprep.subr.mxu0 0.0
      %3016 = vmatpush1.msra.mxu0 0.0
      %3017 = vmatprep.subr.mxu0 0.0
      %3018 = vmatpush1.msra.mxu0 0.0
      %3019 = vmatprep.subr.mxu0 0.0
      %3020 = vmatpush1.msra.mxu0 0.0
      %3021 = vmatprep.subr.mxu0 0.0
      %3022 = vmatpush1.msra.mxu0 0.0
      %3023 = vmatprep.mubr.f32.mxu0 0.0
      %3024 = vmatmul.mubr.f32.gmra.mrb[0].mxu0 %v2936
      %v3025 = vpop.f32.mrb[0].mxu0
      %v3026 = vadd.f32 0.0, %v3025
      %v3027 = vpop.f32.mrb[0].mxu0
      %3028 = vmatprep.mubr.f32.mxu0 0.0
      %3029 = vmatmul.mubr.f32.gmra.mrb[0].mxu0 %v2939
      %v3030 = vpop.f32.mrb[0].mxu0
      %v3031 = vadd.f32 0.0, %v3030
      %v3032 = vpop.f32.mrb[0].mxu0
      %3033 = vmatprep.mubr.f32.mxu0 0.0
      %3034 = vmatmul.mubr.f32.gmra.mrb[0].mxu0 %v2942
      %v3035 = vpop.f32.mrb[0].mxu0
      %v3036 = vadd.f32 0.0, %v3035
      %v3037 = vpop.f32.mrb[0].mxu0
      %3038 = vmatprep.mubr.f32.mxu0 0.0
      %3039 = vmatmul.mubr.f32.gmra.mrb[0].mxu0 %v2945
      %v3040 = vpop.f32.mrb[0].mxu0
      %v3041 = vadd.f32 0.0, %v3040
      %v3042 = vpop.f32.mrb[0].mxu0
      %3043 = vmatprep.mubr.f32.mxu0 0.0
      %3044 = vmatmul.mubr.f32.gmra.mrb[0].mxu0 %v2948
      %v3045 = vpop.f32.mrb[0].mxu0
      %v3046 = vadd.f32 0.0, %v3045
      %v3047 = vpop.f32.mrb[0].mxu0
      %3048 = vmatprep.mubr.f32.mxu0 0.0
      %3049 = vmatmul.mubr.f32.gmra.mrb[0].mxu0 %v2951
      %v3050 = vpop.f32.mrb[0].mxu0
      %v3051 = vadd.f32 0.0, %v3050
      %v3052 = vpop.f32.mrb[0].mxu0
      %3053 = vmatprep.mubr.f32.mxu0 0.0
      %3054 = vmatmul.mubr.f32.gmra.mrb[0].mxu0 %v2954
      %v3055 = vpop.f32.mrb[0].mxu0
      %v3056 = vadd.f32 0.0, %v3055
      %v3057 = vpop.f32.mrb[0].mxu0
      %3058 = vmatprep.mubr.f32.mxu0 0.0
      %3059 = vmatmul.mubr.f32.gmra.mrb[0].mxu0 %v2957
      %v3060 = vpop.f32.mrb[0].mxu0
      %v3061 = vadd.f32 0.0, %v3060
      %v3062 = vpop.f32.mrb[0].mxu0
      %3063 = vdwg.mxu0
      %v3064 = vadd.f32 %v2901, %v3026
      %v3065 = vadd.f32 %v2902, %v3031
      %v3066 = vadd.f32 %v2903, %v3036
      %v3067 = vadd.f32 %v2904, %v3041
      %v3068 = vadd.f32 %v2905, %v3046
      %v3069 = vadd.f32 %v2906, %v3051
      %v3070 = vadd.f32 %v2907, %v3056
      %v3071 = vadd.f32 %v2908, %v3061
      %s3072 = scalar_lea.vmem %s3, 512
      %v3073 = vld [vmem:[%s3072] sm:$0xff]
      %v3074 = vld [vmem:[%s3072 + $0x8] sm:$0xff]
      %v3075 = vld [vmem:[%s3072 + $0x10] sm:$0xff]
      %v3076 = vld [vmem:[%s3072 + $0x18] sm:$0xff]
      %v3077 = vld [vmem:[%s3072 + $0x20] sm:$0xff]
      %v3078 = vld [vmem:[%s3072 + $0x28] sm:$0xff]
      %v3079 = vld [vmem:[%s3072 + $0x30] sm:$0xff]
      %v3080 = vld [vmem:[%s3072 + $0x38] sm:$0xff]
      %v3082 = vsel %vm625, %v3073, 0
      %v3085 = vsel %vm625, %v3074, 0
      %v3088 = vsel %vm625, %v3075, 0
      %v3091 = vsel %vm625, %v3076, 0
      %v3094 = vsel %vm625, %v3077, 0
      %v3097 = vsel %vm625, %v3078, 0
      %v3100 = vsel %vm625, %v3079, 0
      %v3103 = vsel %vm625, %v3080, 0
      %3105 = vmatprep.subr.mxu0 0.0
      %3106 = vmatpush1.msra.mxu0 %v2924
      %3107 = vmatprep.subr.mxu0 0.0
      %3108 = vmatpush1.msra.mxu0 %v2925
      %3109 = vmatprep.subr.mxu0 0.0
      %3110 = vmatpush1.msra.mxu0 0.0
      %3111 = vmatprep.subr.mxu0 0.0
      %3112 = vmatpush1.msra.mxu0 0.0
      %3113 = vmatprep.subr.mxu0 0.0
      %3114 = vmatpush1.msra.mxu0 0.0
      %3115 = vmatprep.subr.mxu0 0.0
      %3116 = vmatpush1.msra.mxu0 0.0
      %3117 = vmatprep.subr.mxu0 0.0
      %3118 = vmatpush1.msra.mxu0 0.0
      %3119 = vmatprep.subr.mxu0 0.0
      %3120 = vmatpush1.msra.mxu0 0.0
      %3121 = vmatprep.subr.mxu0 0.0
      %3122 = vmatpush1.msra.mxu0 0.0
      %3123 = vmatprep.subr.mxu0 0.0
      %3124 = vmatpush1.msra.mxu0 0.0
      %3125 = vmatprep.subr.mxu0 0.0
      %3126 = vmatpush1.msra.mxu0 0.0
      %3127 = vmatprep.subr.mxu0 0.0
      %3128 = vmatpush1.msra.mxu0 0.0
      %3129 = vmatprep.subr.mxu0 0.0
      %3130 = vmatpush1.msra.mxu0 0.0
      %3131 = vmatprep.subr.mxu0 0.0
      %3132 = vmatpush1.msra.mxu0 0.0
      %3133 = vmatprep.subr.mxu0 0.0
      %3134 = vmatpush1.msra.mxu0 0.0
      %3135 = vmatprep.subr.mxu0 0.0
      %3136 = vmatpush1.msra.mxu0 0.0
      %3137 = vmatprep.subr.mxu0 0.0
      %3138 = vmatpush1.msra.mxu0 0.0
      %3139 = vmatprep.subr.mxu0 0.0
      %3140 = vmatpush1.msra.mxu0 0.0
      %3141 = vmatprep.subr.mxu0 0.0
      %3142 = vmatpush1.msra.mxu0 0.0
      %3143 = vmatprep.subr.mxu0 0.0
      %3144 = vmatpush1.msra.mxu0 0.0
      %3145 = vmatprep.subr.mxu0 0.0
      %3146 = vmatpush1.msra.mxu0 0.0
      %3147 = vmatprep.subr.mxu0 0.0
      %3148 = vmatpush1.msra.mxu0 0.0
      %3149 = vmatprep.subr.mxu0 0.0
      %3150 = vmatpush1.msra.mxu0 0.0
      %3151 = vmatprep.subr.mxu0 0.0
      %3152 = vmatpush1.msra.mxu0 0.0
      %3153 = vmatprep.subr.mxu0 0.0
      %3154 = vmatpush1.msra.mxu0 0.0
      %3155 = vmatprep.subr.mxu0 0.0
      %3156 = vmatpush1.msra.mxu0 0.0
      %3157 = vmatprep.subr.mxu0 0.0
      %3158 = vmatpush1.msra.mxu0 0.0
      %3159 = vmatprep.subr.mxu0 0.0
      %3160 = vmatpush1.msra.mxu0 0.0
      %3161 = vmatprep.subr.mxu0 0.0
      %3162 = vmatpush1.msra.mxu0 0.0
      %3163 = vmatprep.subr.mxu0 0.0
      %3164 = vmatpush1.msra.mxu0 0.0
      %3165 = vmatprep.subr.mxu0 0.0
      %3166 = vmatpush1.msra.mxu0 0.0
      %3167 = vmatprep.subr.mxu0 0.0
      %3168 = vmatpush1.msra.mxu0 0.0
      %3169 = vmatprep.mubr.f32.mxu0 0.0
      %3170 = vmatmul.mubr.f32.gmra.mrb[0].mxu0 %v3082
      %v3171 = vpop.f32.mrb[0].mxu0
      %v3172 = vadd.f32 0.0, %v3171
      %v3173 = vpop.f32.mrb[0].mxu0
      %3174 = vmatprep.mubr.f32.mxu0 0.0
      %3175 = vmatmul.mubr.f32.gmra.mrb[0].mxu0 %v3085
      %v3176 = vpop.f32.mrb[0].mxu0
      %v3177 = vadd.f32 0.0, %v3176
      %v3178 = vpop.f32.mrb[0].mxu0
      %3179 = vmatprep.mubr.f32.mxu0 0.0
      %3180 = vmatmul.mubr.f32.gmra.mrb[0].mxu0 %v3088
      %v3181 = vpop.f32.mrb[0].mxu0
      %v3182 = vadd.f32 0.0, %v3181
      %v3183 = vpop.f32.mrb[0].mxu0
      %3184 = vmatprep.mubr.f32.mxu0 0.0
      %3185 = vmatmul.mubr.f32.gmra.mrb[0].mxu0 %v3091
      %v3186 = vpop.f32.mrb[0].mxu0
      %v3187 = vadd.f32 0.0, %v3186
      %v3188 = vpop.f32.mrb[0].mxu0
      %3189 = vmatprep.mubr.f32.mxu0 0.0
      %3190 = vmatmul.mubr.f32.gmra.mrb[0].mxu0 %v3094
      %v3191 = vpop.f32.mrb[0].mxu0
      %v3192 = vadd.f32 0.0, %v3191
      %v3193 = vpop.f32.mrb[0].mxu0
      %3194 = vmatprep.mubr.f32.mxu0 0.0
      %3195 = vmatmul.mubr.f32.gmra.mrb[0].mxu0 %v3097
      %v3196 = vpop.f32.mrb[0].mxu0
      %v3197 = vadd.f32 0.0, %v3196
      %v3198 = vpop.f32.mrb[0].mxu0
      %3199 = vmatprep.mubr.f32.mxu0 0.0
      %3200 = vmatmul.mubr.f32.gmra.mrb[0].mxu0 %v3100
      %v3201 = vpop.f32.mrb[0].mxu0
      %v3202 = vadd.f32 0.0, %v3201
      %v3203 = vpop.f32.mrb[0].mxu0
      %3204 = vmatprep.mubr.f32.mxu0 0.0
      %3205 = vmatmul.mubr.f32.gmra.mrb[0].mxu0 %v3103
      %v3206 = vpop.f32.mrb[0].mxu0
      %v3207 = vadd.f32 0.0, %v3206
      %v3208 = vpop.f32.mrb[0].mxu0
      %3209 = vdwg.mxu0
      %v3210 = vadd.f32 %v3064, %v3172
      %v3211 = vadd.f32 %v3065, %v3177
      %v3212 = vadd.f32 %v3066, %v3182
      %v3213 = vadd.f32 %v3067, %v3187
      %v3214 = vadd.f32 %v3068, %v3192
      %v3215 = vadd.f32 %v3069, %v3197
      %v3216 = vadd.f32 %v3070, %v3202
      %v3217 = vadd.f32 %v3071, %v3207
      %v3218 = vxor.u32 %v3210, 2147483648
      %v3219 = vxor.u32 %v3211, 2147483648
      %v3220 = vmul.f32 %v3218, 1.442695
      %v3221 = vpow.pop %v3220
      %v3222 = vmul.f32 %v3219, 1.442695
      %v3223 = vpow.pop %v3222
      %v3224 = vadd.f32 %v3221, 1.0
      %v3225 = vadd.f32 %v3223, 1.0
      %v3226 = vrcp.pop %v3224
      %v3227 = vmul.f32 1.0, %v3226
      %v3228 = vrcp.pop %v3225
      %v3229 = vmul.f32 1.0, %v3228
      %v3230 = vxor.u32 %v3212, 2147483648
      %v3231 = vxor.u32 %v3213, 2147483648
      %v3232 = vmul.f32 %v3230, 1.442695
      %v3233 = vpow.pop %v3232
      %v3234 = vmul.f32 %v3231, 1.442695
      %v3235 = vpow.pop %v3234
      %v3236 = vadd.f32 %v3233, 1.0
      %v3237 = vadd.f32 %v3235, 1.0
      %v3238 = vrcp.pop %v3236
      %v3239 = vmul.f32 1.0, %v3238
      %v3240 = vrcp.pop %v3237
      %v3241 = vmul.f32 1.0, %v3240
      %v3242 = vxor.u32 %v3214, 2147483648
      %v3243 = vxor.u32 %v3215, 2147483648
      %v3244 = vmul.f32 %v3242, 1.442695
      %v3245 = vpow.pop %v3244
      %v3246 = vmul.f32 %v3243, 1.442695
      %v3247 = vpow.pop %v3246
      %v3248 = vadd.f32 %v3245, 1.0
      %v3249 = vadd.f32 %v3247, 1.0
      %v3250 = vrcp.pop %v3248
      %v3251 = vmul.f32 1.0, %v3250
      %v3252 = vrcp.pop %v3249
      %v3253 = vmul.f32 1.0, %v3252
      %v3254 = vtanh.pop %v3216
      %v3255 = vtanh.pop %v3217
      %v3256 = vld [vmem:[#allocation3] sm:$0xff]
      %v3257 = vld [vmem:[#allocation3 + $0x8] sm:$0xff]
      %v3258 = vmul.f32 %v3239, %v3256
      %v3259 = vmul.f32 %v3241, %v3257
      %v3260 = vmul.f32 %v3227, %v3254
      %v3261 = vmul.f32 %v3229, %v3255
      %v3262 = vadd.f32 %v3258, %v3260
      %v3263 = vadd.f32 %v3259, %v3261
      %v3264 = vtanh.pop %v3262
      %v3265 = vtanh.pop %v3263
      %v3266 = vmul.f32 %v3251, %v3264
      %v3267 = vmul.f32 %v3253, %v3265
      %3268 = vst [vmem:[#allocation3] sm:$0xff] %v3262
      %3269 = vst [vmem:[#allocation3 + $0x8] sm:$0xff] %v3263
      %3270 = vst [vmem:[#allocation2] sm:$0xff] %v3266
      %3271 = vst [vmem:[#allocation2 + $0x8] sm:$0xff] %v3267
      %p3272 = scmp.eq.s32.totalorder %s23, 7
      // Predicated region
      $region73: #{flood_predictor_forward.1} parent=67 // pred_check
        %p3273 = pneg %p3272
      $region74: #{flood_predictor_forward.1} parent=67 // pred_check_branch
        %3275 = sbr.rel (%p3273) target = $region76
      $region75: #{flood_predictor_forward.1} parent=67 // pred_region
        %v3276 = vld [vmem:[%s5] sm:$0xff]
        %v3277 = vld [vmem:[%s5 + $0x8] sm:$0xff]
        %v3278 = vld [vmem:[%s5 + $0x10] sm:$0xff]
        %v3279 = vld [vmem:[%s5 + $0x18] sm:$0xff]
        %v3280 = vld [vmem:[%s5 + $0x20] sm:$0xff]
        %v3281 = vld [vmem:[%s5 + $0x28] sm:$0xff]
        %v3282 = vld [vmem:[%s5 + $0x30] sm:$0xff]
        %v3283 = vld [vmem:[%s5 + $0x38] sm:$0xff]
        %v3284 = vld [vmem:[%s5 + $0x40] sm:$0xff]
        %v3285 = vld [vmem:[%s5 + $0x48] sm:$0xff]
        %v3286 = vld [vmem:[%s5 + $0x50] sm:$0xff]
        %v3287 = vld [vmem:[%s5 + $0x58] sm:$0xff]
        %v3288 = vld [vmem:[%s5 + $0x60] sm:$0xff]
        %v3289 = vld [vmem:[%s5 + $0x68] sm:$0xff]
        %v3290 = vld [vmem:[%s5 + $0x70] sm:$0xff]
        %v3291 = vld [vmem:[%s5 + $0x78] sm:$0xff]
        %3292 = vmatprep.subr.mxu0 0.0
        %3293 = vmatpush1.msra.mxu0 %v3276
        %3294 = vmatprep.subr.mxu0 0.0
        %3295 = vmatpush1.msra.mxu0 %v3277
        %3296 = vmatprep.subr.mxu0 0.0
        %3297 = vmatpush1.msra.mxu0 %v3278
        %3298 = vmatprep.subr.mxu0 0.0
        %3299 = vmatpush1.msra.mxu0 %v3279
        %3300 = vmatprep.subr.mxu0 0.0
        %3301 = vmatpush1.msra.mxu0 %v3280
        %3302 = vmatprep.subr.mxu0 0.0
        %3303 = vmatpush1.msra.mxu0 %v3281
        %3304 = vmatprep.subr.mxu0 0.0
        %3305 = vmatpush1.msra.mxu0 %v3282
        %3306 = vmatprep.subr.mxu0 0.0
        %3307 = vmatpush1.msra.mxu0 %v3283
        %3308 = vmatprep.subr.mxu0 0.0
        %3309 = vmatpush1.msra.mxu0 %v3284
        %3310 = vmatprep.subr.mxu0 0.0
        %3311 = vmatpush1.msra.mxu0 %v3285
        %3312 = vmatprep.subr.mxu0 0.0
        %3313 = vmatpush1.msra.mxu0 %v3286
        %3314 = vmatprep.subr.mxu0 0.0
        %3315 = vmatpush1.msra.mxu0 %v3287
        %3316 = vmatprep.subr.mxu0 0.0
        %3317 = vmatpush1.msra.mxu0 %v3288
        %3318 = vmatprep.subr.mxu0 0.0
        %3319 = vmatpush1.msra.mxu0 %v3289
        %3320 = vmatprep.subr.mxu0 0.0
        %3321 = vmatpush1.msra.mxu0 %v3290
        %3322 = vmatprep.subr.mxu0 0.0
        %3323 = vmatpush1.msra.mxu0 %v3291
        %3324 = vmatprep.subr.mxu0 0.0
        %3325 = vmatpush1.msra.mxu0 0.0
        %3326 = vmatprep.subr.mxu0 0.0
        %3327 = vmatpush1.msra.mxu0 0.0
        %3328 = vmatprep.subr.mxu0 0.0
        %3329 = vmatpush1.msra.mxu0 0.0
        %3330 = vmatprep.subr.mxu0 0.0
        %3331 = vmatpush1.msra.mxu0 0.0
        %3332 = vmatprep.subr.mxu0 0.0
        %3333 = vmatpush1.msra.mxu0 0.0
        %3334 = vmatprep.subr.mxu0 0.0
        %3335 = vmatpush1.msra.mxu0 0.0
        %3336 = vmatprep.subr.mxu0 0.0
        %3337 = vmatpush1.msra.mxu0 0.0
        %3338 = vmatprep.subr.mxu0 0.0
        %3339 = vmatpush1.msra.mxu0 0.0
        %3340 = vmatprep.subr.mxu0 0.0
        %3341 = vmatpush1.msra.mxu0 0.0
        %3342 = vmatprep.subr.mxu0 0.0
        %3343 = vmatpush1.msra.mxu0 0.0
        %3344 = vmatprep.subr.mxu0 0.0
        %3345 = vmatpush1.msra.mxu0 0.0
        %3346 = vmatprep.subr.mxu0 0.0
        %3347 = vmatpush1.msra.mxu0 0.0
        %3348 = vmatprep.subr.mxu0 0.0
        %3349 = vmatpush1.msra.mxu0 0.0
        %3350 = vmatprep.subr.mxu0 0.0
        %3351 = vmatpush1.msra.mxu0 0.0
        %3352 = vmatprep.subr.mxu0 0.0
        %3353 = vmatpush1.msra.mxu0 0.0
        %3354 = vmatprep.subr.mxu0 0.0
        %3355 = vmatpush1.msra.mxu0 0.0
        %3356 = vmatprep.mubr.f32.mxu0 0.0
        %3357 = vmatmul.mubr.f32.gmra.mrb[0].mxu0 %v3266
        %v3358 = vpop.f32.mrb[0].mxu0
        %v3359 = vadd.f32 0.0, %v3358
        %v3360 = vpop.f32.mrb[0].mxu0
        %3361 = vmatprep.mubr.f32.mxu0 0.0
        %3362 = vmatmul.mubr.f32.gmra.mrb[0].mxu0 %v3267
        %v3363 = vpop.f32.mrb[0].mxu0
        %v3364 = vadd.f32 0.0, %v3363
        %v3365 = vpop.f32.mrb[0].mxu0
        %3366 = vdwg.mxu0
        %v3367 = vld [vmem:[%s7] sm:$0xff]
        %v3368 = vld [vmem:[%s7 + $0x8] sm:$0xff]
        %v3369 = vld [vmem:[%s7 + $0x10] sm:$0xff]
        %v3370 = vld [vmem:[%s7 + $0x18] sm:$0xff]
        %v3371 = vld [vmem:[%s7 + $0x20] sm:$0xff]
        %v3372 = vld [vmem:[%s7 + $0x28] sm:$0xff]
        %v3373 = vld [vmem:[%s7 + $0x30] sm:$0xff]
        %v3374 = vld [vmem:[%s7 + $0x38] sm:$0xff]
        %v3375 = vld [vmem:[%s8] sm:$0xff]
        %v3376 = vld [vmem:[%s8 + $0x8] sm:$0xff]
        %v3377 = vld [vmem:[%s8 + $0x10] sm:$0xff]
        %v3378 = vld [vmem:[%s8 + $0x18] sm:$0xff]
        %v3379 = vld [vmem:[%s8 + $0x20] sm:$0xff]
        %v3380 = vld [vmem:[%s8 + $0x28] sm:$0xff]
        %v3381 = vld [vmem:[%s8 + $0x30] sm:$0xff]
        %v3382 = vld [vmem:[%s8 + $0x38] sm:$0xff]
        %v3383 = vld [vmem:[%s6] sm:$0xff]
        %v3385 = vsel %vm479, %v3375, 0
        %v3388 = vsel %vm479, %v3376, 0
        %v3391 = vsel %vm479, %v3377, 0
        %v3394 = vsel %vm479, %v3378, 0
        %v3397 = vsel %vm479, %v3379, 0
        %v3400 = vsel %vm479, %v3380, 0
        %v3403 = vsel %vm479, %v3381, 0
        %v3406 = vsel %vm479, %v3382, 0
        %3408 = vmatprep.subr.mxu0 0.0
        %3409 = vmatpush1.msra.mxu0 %v3383
        %3410 = vmatprep.subr.mxu0 0.0
        %3411 = vmatpush1.msra.mxu0 0.0
        %3412 = vmatprep.subr.mxu0 0.0
        %3413 = vmatpush1.msra.mxu0 0.0
        %3414 = vmatprep.subr.mxu0 0.0
        %3415 = vmatpush1.msra.mxu0 0.0
        %3416 = vmatprep.subr.mxu0 0.0
        %3417 = vmatpush1.msra.mxu0 0.0
        %3418 = vmatprep.subr.mxu0 0.0
        %3419 = vmatpush1.msra.mxu0 0.0
        %3420 = vmatprep.subr.mxu0 0.0
        %3421 = vmatpush1.msra.mxu0 0.0
        %3422 = vmatprep.subr.mxu0 0.0
        %3423 = vmatpush1.msra.mxu0 0.0
        %3424 = vmatprep.subr.mxu0 0.0
        %3425 = vmatpush1.msra.mxu0 0.0
        %3426 = vmatprep.subr.mxu0 0.0
        %3427 = vmatpush1.msra.mxu0 0.0
        %3428 = vmatprep.subr.mxu0 0.0
        %3429 = vmatpush1.msra.mxu0 0.0
        %3430 = vmatprep.subr.mxu0 0.0
        %3431 = vmatpush1.msra.mxu0 0.0
        %3432 = vmatprep.subr.mxu0 0.0
        %3433 = vmatpush1.msra.mxu0 0.0
        %3434 = vmatprep.subr.mxu0 0.0
        %3435 = vmatpush1.msra.mxu0 0.0
        %3436 = vmatprep.subr.mxu0 0.0
        %3437 = vmatpush1.msra.mxu0 0.0
        %3438 = vmatprep.subr.mxu0 0.0
        %3439 = vmatpush1.msra.mxu0 0.0
        %3440 = vmatprep.subr.mxu0 0.0
        %3441 = vmatpush1.msra.mxu0 0.0
        %3442 = vmatprep.subr.mxu0 0.0
        %3443 = vmatpush1.msra.mxu0 0.0
        %3444 = vmatprep.subr.mxu0 0.0
        %3445 = vmatpush1.msra.mxu0 0.0
        %3446 = vmatprep.subr.mxu0 0.0
        %3447 = vmatpush1.msra.mxu0 0.0
        %3448 = vmatprep.subr.mxu0 0.0
        %3449 = vmatpush1.msra.mxu0 0.0
        %3450 = vmatprep.subr.mxu0 0.0
        %3451 = vmatpush1.msra.mxu0 0.0
        %3452 = vmatprep.subr.mxu0 0.0
        %3453 = vmatpush1.msra.mxu0 0.0
        %3454 = vmatprep.subr.mxu0 0.0
        %3455 = vmatpush1.msra.mxu0 0.0
        %3456 = vmatprep.subr.mxu0 0.0
        %3457 = vmatpush1.msra.mxu0 0.0
        %3458 = vmatprep.subr.mxu0 0.0
        %3459 = vmatpush1.msra.mxu0 0.0
        %3460 = vmatprep.subr.mxu0 0.0
        %3461 = vmatpush1.msra.mxu0 0.0
        %3462 = vmatprep.subr.mxu0 0.0
        %3463 = vmatpush1.msra.mxu0 0.0
        %3464 = vmatprep.subr.mxu0 0.0
        %3465 = vmatpush1.msra.mxu0 0.0
        %3466 = vmatprep.subr.mxu0 0.0
        %3467 = vmatpush1.msra.mxu0 0.0
        %3468 = vmatprep.subr.mxu0 0.0
        %3469 = vmatpush1.msra.mxu0 0.0
        %3470 = vmatprep.subr.mxu0 0.0
        %3471 = vmatpush1.msra.mxu0 0.0
        %3472 = vmatprep.mubr.f32.mxu0 0.0
        %3473 = vmatmul.mubr.f32.gmra.mrb[0].mxu0 %v3385
        %v3474 = vpop.f32.mrb[0].mxu0
        %v3475 = vadd.f32 0.0, %v3474
        %v3476 = vpop.f32.mrb[0].mxu0
        %3477 = vmatprep.mubr.f32.mxu0 0.0
        %3478 = vmatmul.mubr.f32.gmra.mrb[0].mxu0 %v3388
        %v3479 = vpop.f32.mrb[0].mxu0
        %v3480 = vadd.f32 0.0, %v3479
        %v3481 = vpop.f32.mrb[0].mxu0
        %3482 = vmatprep.mubr.f32.mxu0 0.0
        %3483 = vmatmul.mubr.f32.gmra.mrb[0].mxu0 %v3391
        %v3484 = vpop.f32.mrb[0].mxu0
        %v3485 = vadd.f32 0.0, %v3484
        %v3486 = vpop.f32.mrb[0].mxu0
        %3487 = vmatprep.mubr.f32.mxu0 0.0
        %3488 = vmatmul.mubr.f32.gmra.mrb[0].mxu0 %v3394
        %v3489 = vpop.f32.mrb[0].mxu0
        %v3490 = vadd.f32 0.0, %v3489
        %v3491 = vpop.f32.mrb[0].mxu0
        %3492 = vmatprep.mubr.f32.mxu0 0.0
        %3493 = vmatmul.mubr.f32.gmra.mrb[0].mxu0 %v3397
        %v3494 = vpop.f32.mrb[0].mxu0
        %v3495 = vadd.f32 0.0, %v3494
        %v3496 = vpop.f32.mrb[0].mxu0
        %3497 = vmatprep.mubr.f32.mxu0 0.0
        %3498 = vmatmul.mubr.f32.gmra.mrb[0].mxu0 %v3400
        %v3499 = vpop.f32.mrb[0].mxu0
        %v3500 = vadd.f32 0.0, %v3499
        %v3501 = vpop.f32.mrb[0].mxu0
        %3502 = vmatprep.mubr.f32.mxu0 0.0
        %3503 = vmatmul.mubr.f32.gmra.mrb[0].mxu0 %v3403
        %v3504 = vpop.f32.mrb[0].mxu0
        %v3505 = vadd.f32 0.0, %v3504
        %v3506 = vpop.f32.mrb[0].mxu0
        %3507 = vmatprep.mubr.f32.mxu0 0.0
        %3508 = vmatmul.mubr.f32.gmra.mrb[0].mxu0 %v3406
        %v3509 = vpop.f32.mrb[0].mxu0
        %v3510 = vadd.f32 0.0, %v3509
        %v3511 = vpop.f32.mrb[0].mxu0
        %3512 = vdwg.mxu0
        %v3514 = vsel %vm625, %v3367, 0
        %v3517 = vsel %vm625, %v3368, 0
        %v3520 = vsel %vm625, %v3369, 0
        %v3523 = vsel %vm625, %v3370, 0
        %v3526 = vsel %vm625, %v3371, 0
        %v3529 = vsel %vm625, %v3372, 0
        %v3532 = vsel %vm625, %v3373, 0
        %v3535 = vsel %vm625, %v3374, 0
        %3537 = vmatprep.subr.mxu0 0.0
        %3538 = vmatpush1.msra.mxu0 %v3359
        %3539 = vmatprep.subr.mxu0 0.0
        %3540 = vmatpush1.msra.mxu0 %v3364
        %3541 = vmatprep.subr.mxu0 0.0
        %3542 = vmatpush1.msra.mxu0 0.0
        %3543 = vmatprep.subr.mxu0 0.0
        %3544 = vmatpush1.msra.mxu0 0.0
        %3545 = vmatprep.subr.mxu0 0.0
        %3546 = vmatpush1.msra.mxu0 0.0
        %3547 = vmatprep.subr.mxu0 0.0
        %3548 = vmatpush1.msra.mxu0 0.0
        %3549 = vmatprep.subr.mxu0 0.0
        %3550 = vmatpush1.msra.mxu0 0.0
        %3551 = vmatprep.subr.mxu0 0.0
        %3552 = vmatpush1.msra.mxu0 0.0
        %3553 = vmatprep.subr.mxu0 0.0
        %3554 = vmatpush1.msra.mxu0 0.0
        %3555 = vmatprep.subr.mxu0 0.0
        %3556 = vmatpush1.msra.mxu0 0.0
        %3557 = vmatprep.subr.mxu0 0.0
        %3558 = vmatpush1.msra.mxu0 0.0
        %3559 = vmatprep.subr.mxu0 0.0
        %3560 = vmatpush1.msra.mxu0 0.0
        %3561 = vmatprep.subr.mxu0 0.0
        %3562 = vmatpush1.msra.mxu0 0.0
        %3563 = vmatprep.subr.mxu0 0.0
        %3564 = vmatpush1.msra.mxu0 0.0
        %3565 = vmatprep.subr.mxu0 0.0
        %3566 = vmatpush1.msra.mxu0 0.0
        %3567 = vmatprep.subr.mxu0 0.0
        %3568 = vmatpush1.msra.mxu0 0.0
        %3569 = vmatprep.subr.mxu0 0.0
        %3570 = vmatpush1.msra.mxu0 0.0
        %3571 = vmatprep.subr.mxu0 0.0
        %3572 = vmatpush1.msra.mxu0 0.0
        %3573 = vmatprep.subr.mxu0 0.0
        %3574 = vmatpush1.msra.mxu0 0.0
        %3575 = vmatprep.subr.mxu0 0.0
        %3576 = vmatpush1.msra.mxu0 0.0
        %3577 = vmatprep.subr.mxu0 0.0
        %3578 = vmatpush1.msra.mxu0 0.0
        %3579 = vmatprep.subr.mxu0 0.0
        %3580 = vmatpush1.msra.mxu0 0.0
        %3581 = vmatprep.subr.mxu0 0.0
        %3582 = vmatpush1.msra.mxu0 0.0
        %3583 = vmatprep.subr.mxu0 0.0
        %3584 = vmatpush1.msra.mxu0 0.0
        %3585 = vmatprep.subr.mxu0 0.0
        %3586 = vmatpush1.msra.mxu0 0.0
        %3587 = vmatprep.subr.mxu0 0.0
        %3588 = vmatpush1.msra.mxu0 0.0
        %3589 = vmatprep.subr.mxu0 0.0
        %3590 = vmatpush1.msra.mxu0 0.0
        %3591 = vmatprep.subr.mxu0 0.0
        %3592 = vmatpush1.msra.mxu0 0.0
        %3593 = vmatprep.subr.mxu0 0.0
        %3594 = vmatpush1.msra.mxu0 0.0
        %3595 = vmatprep.subr.mxu0 0.0
        %3596 = vmatpush1.msra.mxu0 0.0
        %3597 = vmatprep.subr.mxu0 0.0
        %3598 = vmatpush1.msra.mxu0 0.0
        %3599 = vmatprep.subr.mxu0 0.0
        %3600 = vmatpush1.msra.mxu0 0.0
        %3601 = vmatprep.mubr.f32.mxu0 0.0
        %3602 = vmatmul.mubr.f32.gmra.mrb[0].mxu0 %v3514
        %v3603 = vpop.f32.mrb[0].mxu0
        %v3604 = vadd.f32 %v3475, %v3603
        %v3605 = vpop.f32.mrb[0].mxu0
        %3606 = vmatprep.mubr.f32.mxu0 0.0
        %3607 = vmatmul.mubr.f32.gmra.mrb[0].mxu0 %v3517
        %v3608 = vpop.f32.mrb[0].mxu0
        %v3609 = vadd.f32 %v3480, %v3608
        %v3610 = vpop.f32.mrb[0].mxu0
        %3611 = vmatprep.mubr.f32.mxu0 0.0
        %3612 = vmatmul.mubr.f32.gmra.mrb[0].mxu0 %v3520
        %v3613 = vpop.f32.mrb[0].mxu0
        %v3614 = vadd.f32 %v3485, %v3613
        %v3615 = vpop.f32.mrb[0].mxu0
        %3616 = vmatprep.mubr.f32.mxu0 0.0
        %3617 = vmatmul.mubr.f32.gmra.mrb[0].mxu0 %v3523
        %v3618 = vpop.f32.mrb[0].mxu0
        %v3619 = vadd.f32 %v3490, %v3618
        %v3620 = vpop.f32.mrb[0].mxu0
        %3621 = vmatprep.mubr.f32.mxu0 0.0
        %3622 = vmatmul.mubr.f32.gmra.mrb[0].mxu0 %v3526
        %v3623 = vpop.f32.mrb[0].mxu0
        %v3624 = vadd.f32 %v3495, %v3623
        %v3625 = vpop.f32.mrb[0].mxu0
        %3626 = vmatprep.mubr.f32.mxu0 0.0
        %3627 = vmatmul.mubr.f32.gmra.mrb[0].mxu0 %v3529
        %v3628 = vpop.f32.mrb[0].mxu0
        %v3629 = vadd.f32 %v3500, %v3628
        %v3630 = vpop.f32.mrb[0].mxu0
        %3631 = vmatprep.mubr.f32.mxu0 0.0
        %3632 = vmatmul.mubr.f32.gmra.mrb[0].mxu0 %v3532
        %v3633 = vpop.f32.mrb[0].mxu0
        %v3634 = vadd.f32 %v3505, %v3633
        %v3635 = vpop.f32.mrb[0].mxu0
        %3636 = vmatprep.mubr.f32.mxu0 0.0
        %3637 = vmatmul.mubr.f32.gmra.mrb[0].mxu0 %v3535
        %v3638 = vpop.f32.mrb[0].mxu0
        %v3639 = vadd.f32 %v3510, %v3638
        %v3640 = vpop.f32.mrb[0].mxu0
        %3641 = vdwg.mxu0
        %v3642 = vld [vmem:[%s9] sm:$0xff]
        %v3643 = vld [vmem:[%s9 + $0x8] sm:$0xff]
        %v3644 = vld [vmem:[%s9 + $0x10] sm:$0xff]
        %v3645 = vld [vmem:[%s9 + $0x18] sm:$0xff]
        %v3646 = vld [vmem:[%s9 + $0x20] sm:$0xff]
        %v3647 = vld [vmem:[%s9 + $0x28] sm:$0xff]
        %v3648 = vld [vmem:[%s9 + $0x30] sm:$0xff]
        %v3649 = vld [vmem:[%s9 + $0x38] sm:$0xff]
        %3651 = vset.pattern.permute.xlu0 0
        %3652 = vperm.xlu0 %3651, %v3642
        %v3653 = vpop.permute.xlu0 %3652
        %3656 = vset.pattern.permute.xlu0 0
        %3657 = vperm.xlu0 %3656, %v3643
        %v3658 = vpop.permute.xlu0 %3657
        %3661 = vset.pattern.permute.xlu0 0
        %3662 = vperm.xlu0 %3661, %v3644
        %v3663 = vpop.permute.xlu0 %3662
        %3666 = vset.pattern.permute.xlu0 0
        %3667 = vperm.xlu0 %3666, %v3645
        %v3668 = vpop.permute.xlu0 %3667
        %3671 = vset.pattern.permute.xlu0 0
        %3672 = vperm.xlu0 %3671, %v3646
        %v3673 = vpop.permute.xlu0 %3672
        %3676 = vset.pattern.permute.xlu0 0
        %3677 = vperm.xlu0 %3676, %v3647
        %v3678 = vpop.permute.xlu0 %3677
        %3681 = vset.pattern.permute.xlu0 0
        %3682 = vperm.xlu0 %3681, %v3648
        %v3683 = vpop.permute.xlu0 %3682
        %3686 = vset.pattern.permute.xlu0 0
        %3687 = vperm.xlu0 %3686, %v3649
        %v3688 = vpop.permute.xlu0 %3687
        %v3690 = vadd.f32 %v3604, %v3653
        %v3691 = vadd.f32 %v3609, %v3658
        %v3692 = vadd.f32 %v3614, %v3663
        %v3693 = vadd.f32 %v3619, %v3668
        %v3694 = vadd.f32 %v3624, %v3673
        %v3695 = vadd.f32 %v3629, %v3678
        %v3696 = vadd.f32 %v3634, %v3683
        %v3697 = vadd.f32 %v3639, %v3688
        %v3698 = vmax.f32 %v3690, 0.0
        %v3699 = vmax.f32 %v3691, 0.0
        %v3700 = vmax.f32 %v3692, 0.0
        %v3701 = vmax.f32 %v3693, 0.0
        %v3702 = vmax.f32 %v3694, 0.0
        %v3703 = vmax.f32 %v3695, 0.0
        %v3704 = vmax.f32 %v3696, 0.0
        %v3705 = vmax.f32 %v3697, 0.0
        %v3706 = vld [vmem:[%s10] sm:$0xff]
        %v3707 = vld [vmem:[%s11] sm:$0xff]
        %3709 = vset.pattern.permute.xlu0 0
        %3710 = vperm.xlu0 %3709, %v3707
        %v3711 = vpop.permute.xlu0 %3710
        %vm3713 = vcmask 523264
        %v3715 = vsel %vm3713, %v3706, 0
        %3717 = vmatprep.subr.mxu0 0.0
        %3718 = vmatpush1.msra.mxu0 %v3698
        %3719 = vmatprep.subr.mxu0 0.0
        %3720 = vmatpush1.msra.mxu0 %v3699
        %3721 = vmatprep.subr.mxu0 0.0
        %3722 = vmatpush1.msra.mxu0 %v3700
        %3723 = vmatprep.subr.mxu0 0.0
        %3724 = vmatpush1.msra.mxu0 %v3701
        %3725 = vmatprep.subr.mxu0 0.0
        %3726 = vmatpush1.msra.mxu0 %v3702
        %3727 = vmatprep.subr.mxu0 0.0
        %3728 = vmatpush1.msra.mxu0 %v3703
        %3729 = vmatprep.subr.mxu0 0.0
        %3730 = vmatpush1.msra.mxu0 %v3704
        %3731 = vmatprep.subr.mxu0 0.0
        %3732 = vmatpush1.msra.mxu0 %v3705
        %3733 = vmatprep.subr.mxu0 0.0
        %3734 = vmatpush1.msra.mxu0 0.0
        %3735 = vmatprep.subr.mxu0 0.0
        %3736 = vmatpush1.msra.mxu0 0.0
        %3737 = vmatprep.subr.mxu0 0.0
        %3738 = vmatpush1.msra.mxu0 0.0
        %3739 = vmatprep.subr.mxu0 0.0
        %3740 = vmatpush1.msra.mxu0 0.0
        %3741 = vmatprep.subr.mxu0 0.0
        %3742 = vmatpush1.msra.mxu0 0.0
        %3743 = vmatprep.subr.mxu0 0.0
        %3744 = vmatpush1.msra.mxu0 0.0
        %3745 = vmatprep.subr.mxu0 0.0
        %3746 = vmatpush1.msra.mxu0 0.0
        %3747 = vmatprep.subr.mxu0 0.0
        %3748 = vmatpush1.msra.mxu0 0.0
        %3749 = vmatprep.subr.mxu0 0.0
        %3750 = vmatpush1.msra.mxu0 0.0
        %3751 = vmatprep.subr.mxu0 0.0
        %3752 = vmatpush1.msra.mxu0 0.0
        %3753 = vmatprep.subr.mxu0 0.0
        %3754 = vmatpush1.msra.mxu0 0.0
        %3755 = vmatprep.subr.mxu0 0.0
        %3756 = vmatpush1.msra.mxu0 0.0
        %3757 = vmatprep.subr.mxu0 0.0
        %3758 = vmatpush1.msra.mxu0 0.0
        %3759 = vmatprep.subr.mxu0 0.0
        %3760 = vmatpush1.msra.mxu0 0.0
        %3761 = vmatprep.subr.mxu0 0.0
        %3762 = vmatpush1.msra.mxu0 0.0
        %3763 = vmatprep.subr.mxu0 0.0
        %3764 = vmatpush1.msra.mxu0 0.0
        %3765 = vmatprep.subr.mxu0 0.0
        %3766 = vmatpush1.msra.mxu0 0.0
        %3767 = vmatprep.subr.mxu0 0.0
        %3768 = vmatpush1.msra.mxu0 0.0
        %3769 = vmatprep.subr.mxu0 0.0
        %3770 = vmatpush1.msra.mxu0 0.0
        %3771 = vmatprep.subr.mxu0 0.0
        %3772 = vmatpush1.msra.mxu0 0.0
        %3773 = vmatprep.subr.mxu0 0.0
        %3774 = vmatpush1.msra.mxu0 0.0
        %3775 = vmatprep.subr.mxu0 0.0
        %3776 = vmatpush1.msra.mxu0 0.0
        %3777 = vmatprep.subr.mxu0 0.0
        %3778 = vmatpush1.msra.mxu0 0.0
        %3779 = vmatprep.subr.mxu0 0.0
        %3780 = vmatpush1.msra.mxu0 0.0
        %3781 = vmatprep.mubr.f32.mxu0 0.0
        %3782 = vmatmul.mubr.f32.gmra.mrb[0].mxu0 %v3715
        %v3783 = vpop.f32.mrb[0].mxu0
        %v3784 = vadd.f32 %v3711, %v3783
        %v3785 = vpop.f32.mrb[0].mxu0
        %3786 = vdwg.mxu0
        %3787 = vst.msk [vmem:[%s12] sm:$0xff] %vm479, %v3784
      $region76: #{flood_predictor_forward.1} parent=67 // pred_fallthru
        _
      // Predicated region
      $region77: #{flood_predictor_forward.1} parent=67 // pred_check
        %p3788 = pneg %p293
      $region78: #{flood_predictor_forward.1} parent=67 // pred_check_branch
        %3790 = sbr.rel (%p3788) target = $region80
      $region79: #{flood_predictor_forward.1} parent=67 // pred_region
        _
      $region80: #{flood_predictor_forward.1} parent=67 // pred_fallthru
        _
      // Predicated region
      $region81: #{flood_predictor_forward.1} parent=67 // pred_check
        %p3791 = pneg %p293
      $region82: #{flood_predictor_forward.1} parent=67 // pred_check_branch
        %3793 = sbr.rel (%p3791) target = $region84
      $region83: #{flood_predictor_forward.1} parent=67 // pred_region
        _
      $region84: #{flood_predictor_forward.1} parent=67 // pred_fallthru
        _
    $region68: #{flood_predictor_forward.1} parent=5 // pred_fallthru
      _
    %p3794 = scmp.le.s32.totalorder 2, %s18
    // Predicated region
    $region85: #{flood_predictor_forward.1} parent=5 // pred_check
      %p3795 = pneg %p3794
    $region86: #{flood_predictor_forward.1} parent=5 // pred_check_branch
      %3797 = sbr.rel (%p3795) target = $region88
    $region87: #{flood_predictor_forward.1} parent=5 // pred_region
      %s3798 = ssub.s32 %s18, 2
    $region88: #{flood_predictor_forward.1} parent=5 // pred_fallthru
      _
  $region6: #{flood_predictor_forward.1} parent=0 // loop_footer
    %s22 = sadd.s32 1, %s18
  $region7: #{flood_predictor_forward.1} parent=0 // loop_footer_branch
    %17 = sbr.rel target = $region3
  $region8: #{flood_predictor_forward.1} parent=0 // loop_exit
    _

</llo_original>
